<compile_context>
chip_gen: v5e
topology: v5e:2x2
jax: 0.10.0
libtpu: 0.0.40
codegen_flags: <defaults>
</compile_context>

<pallas_src>
import functools

import jax
import jax.numpy as jnp
from jax.experimental import pallas as pl
from jax.experimental.pallas import tpu as pltpu


# ---------------------------------------------------------------------------
# Pallas kernel: neox-style rotary rotation on query/key tiles using
# pre-gathered per-token cos/sin rows.
# ---------------------------------------------------------------------------
def _rope_lora_kernel(q_ref, k_ref, cs_ref, q_out_ref, k_out_ref,
                      *, head_size, rotary_dim, num_q_heads, num_kv_heads):
    rd2 = rotary_dim // 2
    # cos/sin shared across all heads of both q and k; upcast once.
    cos = cs_ref[:, :rd2].astype(jnp.float32)          # [tile_t, rd2]
    sin = cs_ref[:, rd2:rotary_dim].astype(jnp.float32)  # [tile_t, rd2]

    def apply_rope(x_ref, o_ref, nheads):
        for h in range(nheads):                        # static head loop, static lane slices
            b = h * head_size
            # Only the rotary lanes are upcast to f32.
            x1 = x_ref[:, b:b + rd2].astype(jnp.float32)
            x2 = x_ref[:, b + rd2:b + rotary_dim].astype(jnp.float32)
            # Direct per-head stores (no concatenate -> bounded vreg pressure).
            o_ref[:, b:b + rd2] = (x1 * cos - x2 * sin).astype(o_ref.dtype)
            o_ref[:, b + rd2:b + rotary_dim] = (x2 * cos + x1 * sin).astype(o_ref.dtype)
            if rotary_dim < head_size:
                # Pass-through channels: copy in native dtype, no f32 round-trip.
                o_ref[:, b + rotary_dim:b + head_size] = x_ref[:, b + rotary_dim:b + head_size]

    apply_rope(q_ref, q_out_ref, num_q_heads)
    apply_rope(k_ref, k_out_ref, num_kv_heads)


# ---------------------------------------------------------------------------
# Wrapper: index combine + XLA gather of cos/sin rows + pallas_call plumbing.
# ---------------------------------------------------------------------------
@functools.partial(jax.jit, static_argnames=("head_size", "rotary_dim", "tile_t"))
def rope_lora_forward(positions, long_lora_offsets, query, key, cos_sin_cache,
                      *, head_size, rotary_dim, tile_t=256):
    num_tokens = query.shape[0]
    nq = query.shape[-1] // head_size
    nk = key.shape[-1] // head_size

    # offsets = punica_wrapper.long_lora_indices (per-token cache offset)
    idx = (positions + long_lora_offsets).astype(jnp.int32)
    # Pre-gather per-token cos/sin rows with XLA; the (potentially huge)
    # multi-scaling-factor cache never enters VMEM.
    cs = jnp.take(cos_sin_cache, idx, axis=0)          # [num_tokens, rotary_dim]

    # Pad the token axis to a multiple of tile_t (tail tile handled by padding;
    # padded rows are discarded after the call).
    tp = pl.cdiv(num_tokens, tile_t) * tile_t
    if tp != num_tokens:
        pad = tp - num_tokens
        query = jnp.pad(query, ((0, pad), (0, 0)))
        key = jnp.pad(key, ((0, pad), (0, 0)))
        cs = jnp.pad(cs, ((0, pad), (0, 0)))

    kernel = functools.partial(
        _rope_lora_kernel,
        head_size=head_size, rotary_dim=rotary_dim,
        num_q_heads=nq, num_kv_heads=nk)

    q_out, k_out = pl.pallas_call(
        kernel,
        grid=(tp // tile_t,),
        in_specs=[
            pl.BlockSpec((tile_t, nq * head_size), lambda i: (i, 0)),
            pl.BlockSpec((tile_t, nk * head_size), lambda i: (i, 0)),
            pl.BlockSpec((tile_t, rotary_dim), lambda i: (i, 0)),
        ],
        out_specs=(
            pl.BlockSpec((tile_t, nq * head_size), lambda i: (i, 0)),
            pl.BlockSpec((tile_t, nk * head_size), lambda i: (i, 0)),
        ),
        out_shape=(jax.ShapeDtypeStruct(query.shape, query.dtype),
                   jax.ShapeDtypeStruct(key.shape, key.dtype)),
        # vLLM RoPE is in-place: alias q/k inputs to the outputs.
        input_output_aliases={0: 0, 1: 1},
        compiler_params=pltpu.CompilerParams(dimension_semantics=("parallel",)),
    )(query, key, cs)

    if tp != num_tokens:
        q_out = q_out[:num_tokens]
        k_out = k_out[:num_tokens]
    return q_out, k_out


# ---------------------------------------------------------------------------
# LinearScalingRotaryEmbedding cache construction (deterministic, in-script)
# ---------------------------------------------------------------------------
def build_linear_scaling_cos_sin_cache(rotary_dim, max_position, base, scaling_factors):
    inv_freq = 1.0 / (base ** (jnp.arange(0, rotary_dim, 2, dtype=jnp.float32) / rotary_dim))
    caches, offsets, offset = [], {}, 0
    for s in sorted(set(scaling_factors)):
        max_len = int(max_position * s)
        t = jnp.arange(max_len, dtype=jnp.float32) / s
        freqs = jnp.einsum("i,j->ij", t, inv_freq)
        caches.append(jnp.concatenate([jnp.cos(freqs), jnp.sin(freqs)], axis=-1))
        offsets[s] = offset
        offset += max_len
    return jnp.concatenate(caches, axis=0), offsets  # scaling_factor_to_offset


# ---------------------------------------------------------------------------
# Pure-JAX reference (forward_native semantics, neox style)
# ---------------------------------------------------------------------------
def _ref_forward(positions, long_lora_offsets, query, key, cache, head_size, rotary_dim):
    idx = positions + long_lora_offsets
    cs = cache[idx]
    cos, sin = jnp.split(cs, 2, axis=-1)

    def app(x):
        T = x.shape[0]
        n = x.shape[-1] // head_size
        xr = x.reshape(T, n, head_size)
        x_rot, x_pass = xr[..., :rotary_dim], xr[..., rotary_dim:]
        x1, x2 = jnp.split(x_rot, 2, axis=-1)
        c, s = cos[:, None, :], sin[:, None, :]
        o1 = x1 * c - x2 * s
        o2 = x2 * c + x1 * s
        return jnp.concatenate([o1, o2, x_pass], axis=-1).reshape(T, n * head_size)

    return app(query), app(key)


if __name__ == "__main__":
    # Small, deterministic config consistent with the module; lane-dense widths.
    head_size = 64
    rotary_dim = 32            # partial rotary: rotate first 32 channels per head
    num_q_heads = 4            # q width 256 -> lane-dense (multiple of 128)
    num_kv_heads = 2           # k width 128 -> lane-dense
    max_position = 128
    base = 10000.0
    scaling_factors = [1.0, 4.0]   # base factor + one long-lora factor
    num_tokens = 500           # pads to 512 -> grid of 2 tiles (tile_t=256)
    tile_t = 256
    # TODO(synk): non-neox (interleaved) rotary style not implemented; neox-style only.

    cache, factor_to_offset = build_linear_scaling_cos_sin_cache(
        rotary_dim, max_position, base, scaling_factors)

    key0 = jax.random.PRNGKey(0)
    kq, kk, kp, kl = jax.random.split(key0, 4)
    query = jax.random.normal(kq, (num_tokens, num_q_heads * head_size), dtype=jnp.float32)
    keyt = jax.random.normal(kk, (num_tokens, num_kv_heads * head_size), dtype=jnp.float32)
    positions = jax.random.randint(kp, (num_tokens,), 0, max_position, dtype=jnp.int32)
    # punica_wrapper.long_lora_indices: per-token offset into the multi-factor cache.
    which_factor = jax.random.randint(kl, (num_tokens,), 0, len(scaling_factors))
    offset_table = jnp.array([factor_to_offset[f] for f in sorted(set(scaling_factors))],
                             dtype=jnp.int32)
    long_lora_offsets = offset_table[which_factor]

    q_out, k_out = rope_lora_forward(
        positions, long_lora_offsets, query, keyt, cache,
        head_size=head_size, rotary_dim=rotary_dim, tile_t=tile_t)
    jax.block_until_ready((q_out, k_out))

    q_ref, k_ref = _ref_forward(positions, long_lora_offsets, query, keyt, cache,
                                head_size, rotary_dim)
    assert jnp.allclose(q_out, q_ref, atol=1e-5), "query mismatch"
    assert jnp.allclose(k_out, k_ref, atol=1e-5), "key mismatch"
    print("KERNEL_OK")
</pallas_src>

<mosaic_0001>
module attributes {stable_mosaic.version = 11 : i64} {
  func.func @_rope_lora_kernel(%arg0: i32, %arg1: memref<256x256xf32, #tpu.memory_space<vmem>>, %arg2: memref<256x128xf32, #tpu.memory_space<vmem>>, %arg3: memref<256x32xf32, #tpu.memory_space<vmem>>, %arg4: memref<256x256xf32, #tpu.memory_space<vmem>>, %arg5: memref<256x128xf32, #tpu.memory_space<vmem>>) attributes {dimension_semantics = [#tpu.dimension_semantics<parallel>], iteration_bounds = array<i64: 2>, scalar_prefetch = 0 : i64, scratch_operands = 0 : i64, tpu.core_type = #tpu.core_type<tc>, window_params = [{transform_indices = @transform_0, window_bounds = array<i64: 256, 256>}, {transform_indices = @transform_1, window_bounds = array<i64: 256, 128>}, {transform_indices = @transform_2, window_bounds = array<i64: 256, 32>}, {transform_indices = @transform_3, window_bounds = array<i64: 256, 256>}, {transform_indices = @transform_4, window_bounds = array<i64: 256, 128>}]} {
    %c0 = arith.constant 0 : index
    %c0_0 = arith.constant 0 : index
    %0 = vector.load %arg3[%c0, %c0_0] : memref<256x32xf32, #tpu.memory_space<vmem>>, vector<256x16xf32>
    %c0_1 = arith.constant 0 : index
    %c16 = arith.constant 16 : index
    %1 = vector.load %arg3[%c0_1, %c16] : memref<256x32xf32, #tpu.memory_space<vmem>>, vector<256x16xf32>
    %c0_2 = arith.constant 0 : index
    %c0_3 = arith.constant 0 : index
    %2 = vector.load %arg1[%c0_2, %c0_3] : memref<256x256xf32, #tpu.memory_space<vmem>>, vector<256x16xf32>
    %c0_4 = arith.constant 0 : index
    %c16_5 = arith.constant 16 : index
    %3 = vector.load %arg1[%c0_4, %c16_5] : memref<256x256xf32, #tpu.memory_space<vmem>>, vector<256x16xf32>
    %4 = arith.mulf %2, %0 : vector<256x16xf32>
    %5 = arith.mulf %3, %1 : vector<256x16xf32>
    %6 = arith.subf %4, %5 : vector<256x16xf32>
    %c0_6 = arith.constant 0 : index
    %c0_7 = arith.constant 0 : index
    %7 = vector.load %arg4[%c0_6, %c0_7] : memref<256x256xf32, #tpu.memory_space<vmem>>, vector<256x16xf32>
    tpu.vector_store %arg4[%c0_6, %c0_7], %6 {strides = array<i32>} : memref<256x256xf32, #tpu.memory_space<vmem>>, vector<256x16xf32>,
    %8 = arith.mulf %3, %0 : vector<256x16xf32>
    %9 = arith.mulf %2, %1 : vector<256x16xf32>
    %10 = arith.addf %8, %9 : vector<256x16xf32>
    %c0_8 = arith.constant 0 : index
    %c16_9 = arith.constant 16 : index
    %11 = vector.load %arg4[%c0_8, %c16_9] : memref<256x256xf32, #tpu.memory_space<vmem>>, vector<256x16xf32>
    tpu.vector_store %arg4[%c0_8, %c16_9], %10 {strides = array<i32>} : memref<256x256xf32, #tpu.memory_space<vmem>>, vector<256x16xf32>,
    %c0_10 = arith.constant 0 : index
    %c32 = arith.constant 32 : index
    %12 = vector.load %arg1[%c0_10, %c32] : memref<256x256xf32, #tpu.memory_space<vmem>>, vector<256x32xf32>
    %c0_11 = arith.constant 0 : index
    %c32_12 = arith.constant 32 : index
    %13 = vector.load %arg4[%c0_11, %c32_12] : memref<256x256xf32, #tpu.memory_space<vmem>>, vector<256x32xf32>
    tpu.vector_store %arg4[%c0_11, %c32_12], %12 {strides = array<i32>} : memref<256x256xf32, #tpu.memory_space<vmem>>, vector<256x32xf32>,
    %c0_13 = arith.constant 0 : index
    %c64 = arith.constant 64 : index
    %14 = vector.load %arg1[%c0_13, %c64] : memref<256x256xf32, #tpu.memory_space<vmem>>, vector<256x16xf32>
    %c0_14 = arith.constant 0 : index
    %c80 = arith.constant 80 : index
    %15 = vector.load %arg1[%c0_14, %c80] : memref<256x256xf32, #tpu.memory_space<vmem>>, vector<256x16xf32>
    %16 = arith.mulf %14, %0 : vector<256x16xf32>
    %17 = arith.mulf %15, %1 : vector<256x16xf32>
    %18 = arith.subf %16, %17 : vector<256x16xf32>
    %c0_15 = arith.constant 0 : index
    %c64_16 = arith.constant 64 : index
    %19 = vector.load %arg4[%c0_15, %c64_16] : memref<256x256xf32, #tpu.memory_space<vmem>>, vector<256x16xf32>
    tpu.vector_store %arg4[%c0_15, %c64_16], %18 {strides = array<i32>} : memref<256x256xf32, #tpu.memory_space<vmem>>, vector<256x16xf32>,
    %20 = arith.mulf %15, %0 : vector<256x16xf32>
    %21 = arith.mulf %14, %1 : vector<256x16xf32>
    %22 = arith.addf %20, %21 : vector<256x16xf32>
    %c0_17 = arith.constant 0 : index
    %c80_18 = arith.constant 80 : index
    %23 = vector.load %arg4[%c0_17, %c80_18] : memref<256x256xf32, #tpu.memory_space<vmem>>, vector<256x16xf32>
    tpu.vector_store %arg4[%c0_17, %c80_18], %22 {strides = array<i32>} : memref<256x256xf32, #tpu.memory_space<vmem>>, vector<256x16xf32>,
    %c0_19 = arith.constant 0 : index
    %c96 = arith.constant 96 : index
    %24 = vector.load %arg1[%c0_19, %c96] : memref<256x256xf32, #tpu.memory_space<vmem>>, vector<256x32xf32>
    %c0_20 = arith.constant 0 : index
    %c96_21 = arith.constant 96 : index
    %25 = vector.load %arg4[%c0_20, %c96_21] : memref<256x256xf32, #tpu.memory_space<vmem>>, vector<256x32xf32>
    tpu.vector_store %arg4[%c0_20, %c96_21], %24 {strides = array<i32>} : memref<256x256xf32, #tpu.memory_space<vmem>>, vector<256x32xf32>,
    %c0_22 = arith.constant 0 : index
    %c128 = arith.constant 128 : index
    %26 = vector.load %arg1[%c0_22, %c128] : memref<256x256xf32, #tpu.memory_space<vmem>>, vector<256x16xf32>
    %c0_23 = arith.constant 0 : index
    %c144 = arith.constant 144 : index
    %27 = vector.load %arg1[%c0_23, %c144] : memref<256x256xf32, #tpu.memory_space<vmem>>, vector<256x16xf32>
    %28 = arith.mulf %26, %0 : vector<256x16xf32>
    %29 = arith.mulf %27, %1 : vector<256x16xf32>
    %30 = arith.subf %28, %29 : vector<256x16xf32>
    %c0_24 = arith.constant 0 : index
    %c128_25 = arith.constant 128 : index
    %31 = vector.load %arg4[%c0_24, %c128_25] : memref<256x256xf32, #tpu.memory_space<vmem>>, vector<256x16xf32>
    tpu.vector_store %arg4[%c0_24, %c128_25], %30 {strides = array<i32>} : memref<256x256xf32, #tpu.memory_space<vmem>>, vector<256x16xf32>,
    %32 = arith.mulf %27, %0 : vector<256x16xf32>
    %33 = arith.mulf %26, %1 : vector<256x16xf32>
    %34 = arith.addf %32, %33 : vector<256x16xf32>
    %c0_26 = arith.constant 0 : index
    %c144_27 = arith.constant 144 : index
    %35 = vector.load %arg4[%c0_26, %c144_27] : memref<256x256xf32, #tpu.memory_space<vmem>>, vector<256x16xf32>
    tpu.vector_store %arg4[%c0_26, %c144_27], %34 {strides = array<i32>} : memref<256x256xf32, #tpu.memory_space<vmem>>, vector<256x16xf32>,
    %c0_28 = arith.constant 0 : index
    %c160 = arith.constant 160 : index
    %36 = vector.load %arg1[%c0_28, %c160] : memref<256x256xf32, #tpu.memory_space<vmem>>, vector<256x32xf32>
    %c0_29 = arith.constant 0 : index
    %c160_30 = arith.constant 160 : index
    %37 = vector.load %arg4[%c0_29, %c160_30] : memref<256x256xf32, #tpu.memory_space<vmem>>, vector<256x32xf32>
    tpu.vector_store %arg4[%c0_29, %c160_30], %36 {strides = array<i32>} : memref<256x256xf32, #tpu.memory_space<vmem>>, vector<256x32xf32>,
    %c0_31 = arith.constant 0 : index
    %c192 = arith.constant 192 : index
    %38 = vector.load %arg1[%c0_31, %c192] : memref<256x256xf32, #tpu.memory_space<vmem>>, vector<256x16xf32>
    %c0_32 = arith.constant 0 : index
    %c208 = arith.constant 208 : index
    %39 = vector.load %arg1[%c0_32, %c208] : memref<256x256xf32, #tpu.memory_space<vmem>>, vector<256x16xf32>
    %40 = arith.mulf %38, %0 : vector<256x16xf32>
    %41 = arith.mulf %39, %1 : vector<256x16xf32>
    %42 = arith.subf %40, %41 : vector<256x16xf32>
    %c0_33 = arith.constant 0 : index
    %c192_34 = arith.constant 192 : index
    %43 = vector.load %arg4[%c0_33, %c192_34] : memref<256x256xf32, #tpu.memory_space<vmem>>, vector<256x16xf32>
    tpu.vector_store %arg4[%c0_33, %c192_34], %42 {strides = array<i32>} : memref<256x256xf32, #tpu.memory_space<vmem>>, vector<256x16xf32>,
    %44 = arith.mulf %39, %0 : vector<256x16xf32>
    %45 = arith.mulf %38, %1 : vector<256x16xf32>
    %46 = arith.addf %44, %45 : vector<256x16xf32>
    %c0_35 = arith.constant 0 : index
    %c208_36 = arith.constant 208 : index
    %47 = vector.load %arg4[%c0_35, %c208_36] : memref<256x256xf32, #tpu.memory_space<vmem>>, vector<256x16xf32>
    tpu.vector_store %arg4[%c0_35, %c208_36], %46 {strides = array<i32>} : memref<256x256xf32, #tpu.memory_space<vmem>>, vector<256x16xf32>,
    %c0_37 = arith.constant 0 : index
    %c224 = arith.constant 224 : index
    %48 = vector.load %arg1[%c0_37, %c224] : memref<256x256xf32, #tpu.memory_space<vmem>>, vector<256x32xf32>
    %c0_38 = arith.constant 0 : index
    %c224_39 = arith.constant 224 : index
    %49 = vector.load %arg4[%c0_38, %c224_39] : memref<256x256xf32, #tpu.memory_space<vmem>>, vector<256x32xf32>
    tpu.vector_store %arg4[%c0_38, %c224_39], %48 {strides = array<i32>} : memref<256x256xf32, #tpu.memory_space<vmem>>, vector<256x32xf32>,
    %c0_40 = arith.constant 0 : index
    %c0_41 = arith.constant 0 : index
    %50 = vector.load %arg2[%c0_40, %c0_41] : memref<256x128xf32, #tpu.memory_space<vmem>>, vector<256x16xf32>
    %c0_42 = arith.constant 0 : index
    %c16_43 = arith.constant 16 : index
    %51 = vector.load %arg2[%c0_42, %c16_43] : memref<256x128xf32, #tpu.memory_space<vmem>>, vector<256x16xf32>
    %52 = arith.mulf %50, %0 : vector<256x16xf32>
    %53 = arith.mulf %51, %1 : vector<256x16xf32>
    %54 = arith.subf %52, %53 : vector<256x16xf32>
    %c0_44 = arith.constant 0 : index
    %c0_45 = arith.constant 0 : index
    %55 = vector.load %arg5[%c0_44, %c0_45] : memref<256x128xf32, #tpu.memory_space<vmem>>, vector<256x16xf32>
    tpu.vector_store %arg5[%c0_44, %c0_45], %54 {strides = array<i32>} : memref<256x128xf32, #tpu.memory_space<vmem>>, vector<256x16xf32>,
    %56 = arith.mulf %51, %0 : vector<256x16xf32>
    %57 = arith.mulf %50, %1 : vector<256x16xf32>
    %58 = arith.addf %56, %57 : vector<256x16xf32>
    %c0_46 = arith.constant 0 : index
    %c16_47 = arith.constant 16 : index
    %59 = vector.load %arg5[%c0_46, %c16_47] : memref<256x128xf32, #tpu.memory_space<vmem>>, vector<256x16xf32>
    tpu.vector_store %arg5[%c0_46, %c16_47], %58 {strides = array<i32>} : memref<256x128xf32, #tpu.memory_space<vmem>>, vector<256x16xf32>,
    %c0_48 = arith.constant 0 : index
    %c32_49 = arith.constant 32 : index
    %60 = vector.load %arg2[%c0_48, %c32_49] : memref<256x128xf32, #tpu.memory_space<vmem>>, vector<256x32xf32>
    %c0_50 = arith.constant 0 : index
    %c32_51 = arith.constant 32 : index
    %61 = vector.load %arg5[%c0_50, %c32_51] : memref<256x128xf32, #tpu.memory_space<vmem>>, vector<256x32xf32>
    tpu.vector_store %arg5[%c0_50, %c32_51], %60 {strides = array<i32>} : memref<256x128xf32, #tpu.memory_space<vmem>>, vector<256x32xf32>,
    %c0_52 = arith.constant 0 : index
    %c64_53 = arith.constant 64 : index
    %62 = vector.load %arg2[%c0_52, %c64_53] : memref<256x128xf32, #tpu.memory_space<vmem>>, vector<256x16xf32>
    %c0_54 = arith.constant 0 : index
    %c80_55 = arith.constant 80 : index
    %63 = vector.load %arg2[%c0_54, %c80_55] : memref<256x128xf32, #tpu.memory_space<vmem>>, vector<256x16xf32>
    %64 = arith.mulf %62, %0 : vector<256x16xf32>
    %65 = arith.mulf %63, %1 : vector<256x16xf32>
    %66 = arith.subf %64, %65 : vector<256x16xf32>
    %c0_56 = arith.constant 0 : index
    %c64_57 = arith.constant 64 : index
    %67 = vector.load %arg5[%c0_56, %c64_57] : memref<256x128xf32, #tpu.memory_space<vmem>>, vector<256x16xf32>
    tpu.vector_store %arg5[%c0_56, %c64_57], %66 {strides = array<i32>} : memref<256x128xf32, #tpu.memory_space<vmem>>, vector<256x16xf32>,
    %68 = arith.mulf %63, %0 : vector<256x16xf32>
    %69 = arith.mulf %62, %1 : vector<256x16xf32>
    %70 = arith.addf %68, %69 : vector<256x16xf32>
    %c0_58 = arith.constant 0 : index
    %c80_59 = arith.constant 80 : index
    %71 = vector.load %arg5[%c0_58, %c80_59] : memref<256x128xf32, #tpu.memory_space<vmem>>, vector<256x16xf32>
    tpu.vector_store %arg5[%c0_58, %c80_59], %70 {strides = array<i32>} : memref<256x128xf32, #tpu.memory_space<vmem>>, vector<256x16xf32>,
    %c0_60 = arith.constant 0 : index
    %c96_61 = arith.constant 96 : index
    %72 = vector.load %arg2[%c0_60, %c96_61] : memref<256x128xf32, #tpu.memory_space<vmem>>, vector<256x32xf32>
    %c0_62 = arith.constant 0 : index
    %c96_63 = arith.constant 96 : index
    %73 = vector.load %arg5[%c0_62, %c96_63] : memref<256x128xf32, #tpu.memory_space<vmem>>, vector<256x32xf32>
    tpu.vector_store %arg5[%c0_62, %c96_63], %72 {strides = array<i32>} : memref<256x128xf32, #tpu.memory_space<vmem>>, vector<256x32xf32>,
    return
  }
  func.func @transform_0(%arg0: i32) -> (i32, i32) {
    %c0_i32 = arith.constant 0 : i32
    %c0_i32_0 = arith.constant 0 : i32
    return %arg0, %c0_i32 : i32, i32
  }
  func.func @transform_1(%arg0: i32) -> (i32, i32) {
    %c0_i32 = arith.constant 0 : i32
    %c0_i32_0 = arith.constant 0 : i32
    return %arg0, %c0_i32 : i32, i32
  }
  func.func @transform_2(%arg0: i32) -> (i32, i32) {
    %c0_i32 = arith.constant 0 : i32
    %c0_i32_0 = arith.constant 0 : i32
    return %arg0, %c0_i32 : i32, i32
  }
  func.func @transform_3(%arg0: i32) -> (i32, i32) {
    %c0_i32 = arith.constant 0 : i32
    %c0_i32_0 = arith.constant 0 : i32
    return %arg0, %c0_i32 : i32, i32
  }
  func.func @transform_4(%arg0: i32) -> (i32, i32) {
    %c0_i32 = arith.constant 0 : i32
    %c0_i32_0 = arith.constant 0 : i32
    return %arg0, %c0_i32 : i32, i32
  }
}

</mosaic_0001>

<llo_original>
// kernel: rope_lora_forward.1
$region0: #{rope_lora_forward.1}
  #allocation0 [shape = 'u32[]', space=smem, size = 0x4, offset = 0x4, fixed_abs, tag = 'smem constant byte address 0x4 - core index']
  #allocation1 [shape = 'u32[72,128]{1,0:T(1,128)}', space=vmem, size = 0x9000, scoped, tag = 'internal scratch']
  %s0 = inlined_call_operand.vmem [shape: f32[512,256], index: 0, kind: input, shape index: {}, may-alias: {0,3}]
  %s1 = inlined_call_operand.vmem [shape: f32[512,128], index: 1, kind: input, shape index: {}, may-alias: {1,4}]
  %s2 = inlined_call_operand.vmem [shape: f32[512,32], index: 2, kind: input, shape index: {}]
  %s3 = inlined_call_operand.vmem [shape: f32[512,256], index: 3, kind: output, shape index: {0}, may-alias: {0,3}]
  %s4 = inlined_call_operand.vmem [shape: f32[512,128], index: 4, kind: output, shape index: {1}, may-alias: {1,4}]
  %5 = xla_tuple %s3, %s4
  %s6 = sld [smem:[#allocation0]]
  $region53: #{rope_lora_forward.1} parent=0
    _
  %s8 = ssub.s32 1, %s6
  %s9 = scalar_select 0, %s8, %s6
  loop: start=0, step=1, limit=4
  $region2: #{rope_lora_forward.1} parent=0 // loop_pre_header
    _
  $region3: #{rope_lora_forward.1} parent=0 // loop_header
    %s11 = sphi 0, %s15
    %p12 = scmp.ge.s32.totalorder %s11, 4
    %s21 = sphi 0, %s23
    %s24 = sphi 0, %s21
    %s25 = sphi 0, %s24
    %s41 = sphi 0, %s25
    %s47 = sphi 0, %s49
    %s50 = sphi 0, %s47
    %s51 = sphi 0, %s50
    %s67 = sphi 0, %s51
    %s73 = sphi 0, %s75
    %s76 = sphi 0, %s73
    %s77 = sphi 0, %s76
    %s93 = sphi 0, %s77
    %s99 = sphi 0, %s101
    %s102 = sphi 0, %s99
    %s103 = sphi 0, %s102
    %s119 = sphi 0, %s103
    %s125 = sphi 0, %s127
    %s128 = sphi 0, %s125
    %s129 = sphi 0, %s128
    %s145 = sphi 0, %s129
  $region4: #{rope_lora_forward.1} parent=0 // loop_header_branch
    %14 = sbr.rel (%p12) target = $region8
  $region5: #{rope_lora_forward.1} parent=0 // loop_body
    %s16 = ssub.s32 %s11, 1
    %s17 = ssub.s32 %s11, 2
    %s18 = sadd.s32 %s11, 1
    %s19 = ssub.s32 %s11, %s18
    %p20 = scmp.eq.s32.totalorder %s19, 0
    %s22 = sadd.s32 %s21, 1
    %s23 = scalar_select %p20, %s21, %s22
    %p26 = pneg %p20
    %p27 = scmp.eq.s32.totalorder %s11, 1
    %p28 = por %p26, %p27
    %p29 = scmp.ne.s32.totalorder %s21, %s24
    %p30 = scmp.eq.s32.totalorder %s11, 0
    %p31 = por %p29, %p30
    %p32 = scmp.ne.s32.totalorder %s21, %s24
    %p33 = scmp.eq.s32.totalorder %s16, 1
    %p34 = por %p32, %p33
    %p35 = scmp.ne.s32.totalorder %s24, %s25
    %p36 = scmp.eq.s32.totalorder %s16, 0
    %p37 = por %p35, %p36
    %p38 = scmp.ne.s32.totalorder %s24, %s25
    %p39 = scmp.eq.s32.totalorder %s17, 1
    %p40 = por %p38, %p39
    %p42 = scmp.ne.s32.totalorder %s25, %s41
    %p43 = scmp.eq.s32.totalorder %s17, 0
    %p44 = por %p42, %p43
    %s45 = ssub.s32 %s11, %s18
    %p46 = scmp.eq.s32.totalorder %s45, 0
    %s48 = sadd.s32 %s47, 1
    %s49 = scalar_select %p46, %s47, %s48
    %p52 = pneg %p46
    %p53 = scmp.eq.s32.totalorder %s11, 1
    %p54 = por %p52, %p53
    %p55 = scmp.ne.s32.totalorder %s47, %s50
    %p56 = scmp.eq.s32.totalorder %s11, 0
    %p57 = por %p55, %p56
    %p58 = scmp.ne.s32.totalorder %s47, %s50
    %p59 = scmp.eq.s32.totalorder %s16, 1
    %p60 = por %p58, %p59
    %p61 = scmp.ne.s32.totalorder %s50, %s51
    %p62 = scmp.eq.s32.totalorder %s16, 0
    %p63 = por %p61, %p62
    %p64 = scmp.ne.s32.totalorder %s50, %s51
    %p65 = scmp.eq.s32.totalorder %s17, 1
    %p66 = por %p64, %p65
    %p68 = scmp.ne.s32.totalorder %s51, %s67
    %p69 = scmp.eq.s32.totalorder %s17, 0
    %p70 = por %p68, %p69
    %s71 = ssub.s32 %s11, %s18
    %p72 = scmp.eq.s32.totalorder %s71, 0
    %s74 = sadd.s32 %s73, 1
    %s75 = scalar_select %p72, %s73, %s74
    %p78 = pneg %p72
    %p79 = scmp.eq.s32.totalorder %s11, 1
    %p80 = por %p78, %p79
    %p81 = scmp.ne.s32.totalorder %s73, %s76
    %p82 = scmp.eq.s32.totalorder %s11, 0
    %p83 = por %p81, %p82
    %p84 = scmp.ne.s32.totalorder %s73, %s76
    %p85 = scmp.eq.s32.totalorder %s16, 1
    %p86 = por %p84, %p85
    %p87 = scmp.ne.s32.totalorder %s76, %s77
    %p88 = scmp.eq.s32.totalorder %s16, 0
    %p89 = por %p87, %p88
    %p90 = scmp.ne.s32.totalorder %s76, %s77
    %p91 = scmp.eq.s32.totalorder %s17, 1
    %p92 = por %p90, %p91
    %p94 = scmp.ne.s32.totalorder %s77, %s93
    %p95 = scmp.eq.s32.totalorder %s17, 0
    %p96 = por %p94, %p95
    %s97 = ssub.s32 %s11, %s18
    %p98 = scmp.eq.s32.totalorder %s97, 0
    %s100 = sadd.s32 %s99, 1
    %s101 = scalar_select %p98, %s99, %s100
    %p104 = pneg %p98
    %p105 = scmp.eq.s32.totalorder %s11, 1
    %p106 = por %p104, %p105
    %p107 = scmp.ne.s32.totalorder %s99, %s102
    %p108 = scmp.eq.s32.totalorder %s11, 0
    %p109 = por %p107, %p108
    %p110 = scmp.ne.s32.totalorder %s99, %s102
    %p111 = scmp.eq.s32.totalorder %s16, 1
    %p112 = por %p110, %p111
    %p113 = scmp.ne.s32.totalorder %s102, %s103
    %p114 = scmp.eq.s32.totalorder %s16, 0
    %p115 = por %p113, %p114
    %p116 = scmp.ne.s32.totalorder %s102, %s103
    %p117 = scmp.eq.s32.totalorder %s17, 1
    %p118 = por %p116, %p117
    %p120 = scmp.ne.s32.totalorder %s103, %s119
    %p121 = scmp.eq.s32.totalorder %s17, 0
    %p122 = por %p120, %p121
    %s123 = ssub.s32 %s11, %s18
    %p124 = scmp.eq.s32.totalorder %s123, 0
    %s126 = sadd.s32 %s125, 1
    %s127 = scalar_select %p124, %s125, %s126
    %p130 = pneg %p124
    %p131 = scmp.eq.s32.totalorder %s11, 1
    %p132 = por %p130, %p131
    %p133 = scmp.ne.s32.totalorder %s125, %s128
    %p134 = scmp.eq.s32.totalorder %s11, 0
    %p135 = por %p133, %p134
    %p136 = scmp.ne.s32.totalorder %s125, %s128
    %p137 = scmp.eq.s32.totalorder %s16, 1
    %p138 = por %p136, %p137
    %p139 = scmp.ne.s32.totalorder %s128, %s129
    %p140 = scmp.eq.s32.totalorder %s16, 0
    %p141 = por %p139, %p140
    %p142 = scmp.ne.s32.totalorder %s128, %s129
    %p143 = scmp.eq.s32.totalorder %s17, 1
    %p144 = por %p142, %p143
    %p146 = scmp.ne.s32.totalorder %s129, %s145
    %p147 = scmp.eq.s32.totalorder %s17, 0
    %p148 = por %p146, %p147
    %p149 = scmp.le.s32.totalorder 1, %s11
    %p150 = scmp.lt.s32.totalorder %s11, 3
    %p151 = pnand %p149, %p150
    %p152 = pneg %p151
    // Predicated region
    $region9: #{rope_lora_forward.1} parent=5 // pred_check
      _
    $region10: #{rope_lora_forward.1} parent=5 // pred_check_branch
      %154 = sbr.rel (%p151) target = $region12
    $region11: #{rope_lora_forward.1} parent=5 // pred_region
      %s155 = ssub.s32 %s11, 1
    $region12: #{rope_lora_forward.1} parent=5 // pred_fallthru
      _
    %p156 = scmp.lt.s32.totalorder %s11, 2
    // Predicated region
    $region13: #{rope_lora_forward.1} parent=5 // pred_check
      %p157 = pneg %p156
    $region14: #{rope_lora_forward.1} parent=5 // pred_check_branch
      %159 = sbr.rel (%p157) target = $region16
    $region15: #{rope_lora_forward.1} parent=5 // pred_region
      // Predicated region
      $region17: #{rope_lora_forward.1} parent=15 // pred_check
        %p160 = pneg %p31
      $region18: #{rope_lora_forward.1} parent=15 // pred_check_branch
        %162 = sbr.rel (%p160) target = $region20
      $region19: #{rope_lora_forward.1} parent=15 // pred_region
        %s163 = smul.u32 32, %s11
        %p164 = scmp.lt.s32.totalorder %s163, 63
        %s165 = scalar_select %p164, %s163, 63
        %s166 = smul.addr %s165, 2
        %s167 = smul.addr %s166, 8
        %s168 = scalar_lea.vmem %s0, %s167
        %s169 = smul.u32 32, %s11
      $region20: #{rope_lora_forward.1} parent=15 // pred_fallthru
        _
      // Predicated region
      $region21: #{rope_lora_forward.1} parent=15 // pred_check
        %p170 = pneg %p57
      $region22: #{rope_lora_forward.1} parent=15 // pred_check_branch
        %172 = sbr.rel (%p170) target = $region24
      $region23: #{rope_lora_forward.1} parent=15 // pred_region
        %s173 = smul.u32 32, %s11
        %p174 = scmp.lt.s32.totalorder %s173, 63
        %s175 = scalar_select %p174, %s173, 63
        %s176 = smul.addr %s175, 8
        %s177 = scalar_lea.vmem %s1, %s176
        %s178 = smul.u32 32, %s11
      $region24: #{rope_lora_forward.1} parent=15 // pred_fallthru
        _
      // Predicated region
      $region25: #{rope_lora_forward.1} parent=15 // pred_check
        %p179 = pneg %p83
      $region26: #{rope_lora_forward.1} parent=15 // pred_check_branch
        %181 = sbr.rel (%p179) target = $region28
      $region27: #{rope_lora_forward.1} parent=15 // pred_region
        %s182 = smul.u32 32, %s11
        %p183 = scmp.lt.s32.totalorder %s182, 63
        %s184 = scalar_select %p183, %s182, 63
        %s185 = smul.addr %s184, 8
        %s186 = scalar_lea.vmem %s2, %s185
        %s187 = smul.u32 32, %s11
      $region28: #{rope_lora_forward.1} parent=15 // pred_fallthru
        _
    $region16: #{rope_lora_forward.1} parent=5 // pred_fallthru
      _
    %p188 = scmp.le.s32.totalorder 1, %s11
    %p189 = scmp.lt.s32.totalorder %s11, 3
    %p190 = pnand %p188, %p189
    %p191 = pneg %p190
    // Predicated region
    $region29: #{rope_lora_forward.1} parent=5 // pred_check
      _
    $region30: #{rope_lora_forward.1} parent=5 // pred_check_branch
      %193 = sbr.rel (%p190) target = $region32
    $region31: #{rope_lora_forward.1} parent=5 // pred_region
      %s194 = ssub.s32 %s11, 1
      %s195 = smul.u32 32, %s16
      %p196 = scmp.lt.s32.totalorder %s195, 63
      %s197 = scalar_select %p196, %s195, 63
      %s198 = smul.addr %s197, 2
      %s199 = smul.addr %s198, 8
      %s200 = scalar_lea.vmem %s0, %s199
      %p201 = pneg %p37
      %p202 = pneg %p34
      %s203 = smul.u32 32, %s16
      %p204 = scmp.lt.s32.totalorder %s203, 63
      %s205 = scalar_select %p204, %s203, 63
      %s206 = smul.addr %s205, 8
      %s207 = scalar_lea.vmem %s1, %s206
      %p208 = pneg %p63
      %p209 = pneg %p60
      %s210 = smul.u32 32, %s16
      %p211 = scmp.lt.s32.totalorder %s210, 63
      %s212 = scalar_select %p211, %s210, 63
      %s213 = smul.addr %s212, 8
      %s214 = scalar_lea.vmem %s2, %s213
      %p215 = pneg %p89
      %p216 = pneg %p86
      %p217 = pneg %p115
      %p218 = pneg %p112
      %s219 = smul.u32 32, %s16
      %p220 = scmp.lt.s32.totalorder %s219, 63
      %s221 = scalar_select %p220, %s219, 63
      %s222 = smul.addr %s221, 2
      %s223 = smul.addr %s222, 8
      %s224 = scalar_lea.vmem %s3, %s223
      %p225 = pneg %p141
      %p226 = pneg %p138
      %s227 = smul.u32 32, %s16
      %p228 = scmp.lt.s32.totalorder %s227, 63
      %s229 = scalar_select %p228, %s227, 63
      %s230 = smul.addr %s229, 8
      %s231 = scalar_lea.vmem %s4, %s230
      %s232 = smul.u32 32, %s16
      %p233 = scmp.lt.s32.totalorder %s232, 63
      %s234 = scalar_select %p233, %s232, 63
      %s235 = smul.addr %s234, 2
      %s236 = smul.addr %s235, 8
      %s237 = scalar_lea.vmem %s0, %s236
      %s238 = smul.u32 32, %s16
      %s239 = smul.u32 32, %s16
      %p240 = scmp.lt.s32.totalorder %s239, 63
      %s241 = scalar_select %p240, %s239, 63
      %s242 = smul.addr %s241, 8
      %s243 = scalar_lea.vmem %s1, %s242
      %s244 = smul.u32 32, %s16
      %s245 = smul.u32 32, %s16
      %p246 = scmp.lt.s32.totalorder %s245, 63
      %s247 = scalar_select %p246, %s245, 63
      %s248 = smul.addr %s247, 8
      %s249 = scalar_lea.vmem %s2, %s248
      %s250 = smul.u32 32, %s16
      %s251 = smul.u32 32, %s16
      %p252 = scmp.lt.s32.totalorder %s251, 63
      %s253 = scalar_select %p252, %s251, 63
      %s254 = smul.addr %s253, 2
      %s255 = smul.addr %s254, 8
      %s256 = scalar_lea.vmem %s3, %s255
      %s257 = smul.u32 32, %s16
      %s258 = smul.u32 32, %s16
      %p259 = scmp.lt.s32.totalorder %s258, 63
      %s260 = scalar_select %p259, %s258, 63
      %s261 = smul.addr %s260, 8
      %s262 = scalar_lea.vmem %s4, %s261
      %s263 = smul.u32 32, %s16
      %v264 = vld [vmem:[%s249] sm:$0xff]
      %v265 = vld [vmem:[%s249 + $0x8] sm:$0xff]
      %v266 = vld [vmem:[%s249 + $0x10] sm:$0xff]
      %v267 = vld [vmem:[%s249 + $0x18] sm:$0xff]
      %v268 = vld [vmem:[%s249 + $0x20] sm:$0xff]
      %v269 = vld [vmem:[%s249 + $0x28] sm:$0xff]
      %v270 = vld [vmem:[%s249 + $0x30] sm:$0xff]
      %v271 = vld [vmem:[%s249 + $0x38] sm:$0xff]
      %v272 = vld [vmem:[%s249 + $0x40] sm:$0xff]
      %v273 = vld [vmem:[%s249 + $0x48] sm:$0xff]
      %v274 = vld [vmem:[%s249 + $0x50] sm:$0xff]
      %v275 = vld [vmem:[%s249 + $0x58] sm:$0xff]
      %v276 = vld [vmem:[%s249 + $0x60] sm:$0xff]
      %v277 = vld [vmem:[%s249 + $0x68] sm:$0xff]
      %v278 = vld [vmem:[%s249 + $0x70] sm:$0xff]
      %v279 = vld [vmem:[%s249 + $0x78] sm:$0xff]
      %v280 = vld [vmem:[%s249 + $0x80] sm:$0xff]
      %v281 = vld [vmem:[%s249 + $0x88] sm:$0xff]
      %v282 = vld [vmem:[%s249 + $0x90] sm:$0xff]
      %v283 = vld [vmem:[%s249 + $0x98] sm:$0xff]
      %v284 = vld [vmem:[%s249 + $0xa0] sm:$0xff]
      %v285 = vld [vmem:[%s249 + $0xa8] sm:$0xff]
      %v286 = vld [vmem:[%s249 + $0xb0] sm:$0xff]
      %v287 = vld [vmem:[%s249 + $0xb8] sm:$0xff]
      %v288 = vld [vmem:[%s249 + $0xc0] sm:$0xff]
      %v289 = vld [vmem:[%s249 + $0xc8] sm:$0xff]
      %v290 = vld [vmem:[%s249 + $0xd0] sm:$0xff]
      %v291 = vld [vmem:[%s249 + $0xd8] sm:$0xff]
      %v292 = vld [vmem:[%s249 + $0xe0] sm:$0xff]
      %v293 = vld [vmem:[%s249 + $0xe8] sm:$0xff]
      %v294 = vld [vmem:[%s249 + $0xf0] sm:$0xff]
      %v295 = vld [vmem:[%s249 + $0xf8] sm:$0xff]
      %v296 = vld [vmem:[%s237] sm:$0xff]
      %v297 = vld [vmem:[%s237 + $0x10] sm:$0xff]
      %v298 = vld [vmem:[%s237 + $0x20] sm:$0xff]
      %v299 = vld [vmem:[%s237 + $0x30] sm:$0xff]
      %v300 = vld [vmem:[%s237 + $0x40] sm:$0xff]
      %v301 = vld [vmem:[%s237 + $0x50] sm:$0xff]
      %v302 = vld [vmem:[%s237 + $0x60] sm:$0xff]
      %v303 = vld [vmem:[%s237 + $0x70] sm:$0xff]
      %v304 = vld [vmem:[%s237 + $0x80] sm:$0xff]
      %v305 = vld [vmem:[%s237 + $0x90] sm:$0xff]
      %v306 = vld [vmem:[%s237 + $0xa0] sm:$0xff]
      %v307 = vld [vmem:[%s237 + $0xb0] sm:$0xff]
      %v308 = vld [vmem:[%s237 + $0xc0] sm:$0xff]
      %v309 = vld [vmem:[%s237 + $0xd0] sm:$0xff]
      %v310 = vld [vmem:[%s237 + $0xe0] sm:$0xff]
      %v311 = vld [vmem:[%s237 + $0xf0] sm:$0xff]
      %v312 = vld [vmem:[%s237 + $0x100] sm:$0xff]
      %v313 = vld [vmem:[%s237 + $0x110] sm:$0xff]
      %v314 = vld [vmem:[%s237 + $0x120] sm:$0xff]
      %v315 = vld [vmem:[%s237 + $0x130] sm:$0xff]
      %v316 = vld [vmem:[%s237 + $0x140] sm:$0xff]
      %v317 = vld [vmem:[%s237 + $0x150] sm:$0xff]
      %v318 = vld [vmem:[%s237 + $0x160] sm:$0xff]
      %v319 = vld [vmem:[%s237 + $0x170] sm:$0xff]
      %v320 = vld [vmem:[%s237 + $0x180] sm:$0xff]
      %v321 = vld [vmem:[%s237 + $0x190] sm:$0xff]
      %v322 = vld [vmem:[%s237 + $0x1a0] sm:$0xff]
      %v323 = vld [vmem:[%s237 + $0x1b0] sm:$0xff]
      %v324 = vld [vmem:[%s237 + $0x1c0] sm:$0xff]
      %v325 = vld [vmem:[%s237 + $0x1d0] sm:$0xff]
      %v326 = vld [vmem:[%s237 + $0x1e0] sm:$0xff]
      %v327 = vld [vmem:[%s237 + $0x1f0] sm:$0xff]
      %v328 = vmul.f32 %v296, %v264
      %v329 = vmul.f32 %v297, %v265
      %v330 = vmul.f32 %v298, %v266
      %v331 = vmul.f32 %v299, %v267
      %v332 = vmul.f32 %v300, %v268
      %v333 = vmul.f32 %v301, %v269
      %v334 = vmul.f32 %v302, %v270
      %v335 = vmul.f32 %v303, %v271
      %v336 = vmul.f32 %v304, %v272
      %v337 = vmul.f32 %v305, %v273
      %v338 = vmul.f32 %v306, %v274
      %v339 = vmul.f32 %v307, %v275
      %v340 = vmul.f32 %v308, %v276
      %v341 = vmul.f32 %v309, %v277
      %v342 = vmul.f32 %v310, %v278
      %v343 = vmul.f32 %v311, %v279
      %v344 = vmul.f32 %v312, %v280
      %v345 = vmul.f32 %v313, %v281
      %v346 = vmul.f32 %v314, %v282
      %v347 = vmul.f32 %v315, %v283
      %v348 = vmul.f32 %v316, %v284
      %v349 = vmul.f32 %v317, %v285
      %v350 = vmul.f32 %v318, %v286
      %v351 = vmul.f32 %v319, %v287
      %v352 = vmul.f32 %v320, %v288
      %v353 = vmul.f32 %v321, %v289
      %v354 = vmul.f32 %v322, %v290
      %v355 = vmul.f32 %v323, %v291
      %v356 = vmul.f32 %v324, %v292
      %v357 = vmul.f32 %v325, %v293
      %v358 = vmul.f32 %v326, %v294
      %v359 = vmul.f32 %v327, %v295
      %392 = vrot.lane.b32.xlu0 %v328, 112
      %v393 = vpop.permute.xlu0 %392
      %394 = vrot.lane.b32.xlu0 %v329, 112
      %v395 = vpop.permute.xlu0 %394
      %396 = vrot.lane.b32.xlu0 %v330, 112
      %v397 = vpop.permute.xlu0 %396
      %398 = vrot.lane.b32.xlu0 %v331, 112
      %v399 = vpop.permute.xlu0 %398
      %400 = vrot.lane.b32.xlu0 %v332, 112
      %v401 = vpop.permute.xlu0 %400
      %402 = vrot.lane.b32.xlu0 %v333, 112
      %v403 = vpop.permute.xlu0 %402
      %404 = vrot.lane.b32.xlu0 %v334, 112
      %v405 = vpop.permute.xlu0 %404
      %406 = vrot.lane.b32.xlu0 %v335, 112
      %v407 = vpop.permute.xlu0 %406
      %408 = vrot.lane.b32.xlu0 %v336, 112
      %v409 = vpop.permute.xlu0 %408
      %410 = vrot.lane.b32.xlu0 %v337, 112
      %v411 = vpop.permute.xlu0 %410
      %412 = vrot.lane.b32.xlu0 %v338, 112
      %v413 = vpop.permute.xlu0 %412
      %414 = vrot.lane.b32.xlu0 %v339, 112
      %v415 = vpop.permute.xlu0 %414
      %416 = vrot.lane.b32.xlu0 %v340, 112
      %v417 = vpop.permute.xlu0 %416
      %418 = vrot.lane.b32.xlu0 %v341, 112
      %v419 = vpop.permute.xlu0 %418
      %420 = vrot.lane.b32.xlu0 %v342, 112
      %v421 = vpop.permute.xlu0 %420
      %422 = vrot.lane.b32.xlu0 %v343, 112
      %v423 = vpop.permute.xlu0 %422
      %424 = vrot.lane.b32.xlu0 %v344, 112
      %v425 = vpop.permute.xlu0 %424
      %426 = vrot.lane.b32.xlu0 %v345, 112
      %v427 = vpop.permute.xlu0 %426
      %428 = vrot.lane.b32.xlu0 %v346, 112
      %v429 = vpop.permute.xlu0 %428
      %430 = vrot.lane.b32.xlu0 %v347, 112
      %v431 = vpop.permute.xlu0 %430
      %432 = vrot.lane.b32.xlu0 %v348, 112
      %v433 = vpop.permute.xlu0 %432
      %434 = vrot.lane.b32.xlu0 %v349, 112
      %v435 = vpop.permute.xlu0 %434
      %436 = vrot.lane.b32.xlu0 %v350, 112
      %v437 = vpop.permute.xlu0 %436
      %438 = vrot.lane.b32.xlu0 %v351, 112
      %v439 = vpop.permute.xlu0 %438
      %440 = vrot.lane.b32.xlu0 %v352, 112
      %v441 = vpop.permute.xlu0 %440
      %442 = vrot.lane.b32.xlu0 %v353, 112
      %v443 = vpop.permute.xlu0 %442
      %444 = vrot.lane.b32.xlu0 %v354, 112
      %v445 = vpop.permute.xlu0 %444
      %446 = vrot.lane.b32.xlu0 %v355, 112
      %v447 = vpop.permute.xlu0 %446
      %448 = vrot.lane.b32.xlu0 %v356, 112
      %v449 = vpop.permute.xlu0 %448
      %450 = vrot.lane.b32.xlu0 %v357, 112
      %v451 = vpop.permute.xlu0 %450
      %452 = vrot.lane.b32.xlu0 %v358, 112
      %v453 = vpop.permute.xlu0 %452
      %454 = vrot.lane.b32.xlu0 %v359, 112
      %v455 = vpop.permute.xlu0 %454
      %v488 = vsub.f32 %v328, %v393
      %v489 = vsub.f32 %v329, %v395
      %v490 = vsub.f32 %v330, %v397
      %v491 = vsub.f32 %v331, %v399
      %v492 = vsub.f32 %v332, %v401
      %v493 = vsub.f32 %v333, %v403
      %v494 = vsub.f32 %v334, %v405
      %v495 = vsub.f32 %v335, %v407
      %v496 = vsub.f32 %v336, %v409
      %v497 = vsub.f32 %v337, %v411
      %v498 = vsub.f32 %v338, %v413
      %v499 = vsub.f32 %v339, %v415
      %v500 = vsub.f32 %v340, %v417
      %v501 = vsub.f32 %v341, %v419
      %v502 = vsub.f32 %v342, %v421
      %v503 = vsub.f32 %v343, %v423
      %v504 = vsub.f32 %v344, %v425
      %v505 = vsub.f32 %v345, %v427
      %v506 = vsub.f32 %v346, %v429
      %v507 = vsub.f32 %v347, %v431
      %v508 = vsub.f32 %v348, %v433
      %v509 = vsub.f32 %v349, %v435
      %v510 = vsub.f32 %v350, %v437
      %v511 = vsub.f32 %v351, %v439
      %v512 = vsub.f32 %v352, %v441
      %v513 = vsub.f32 %v353, %v443
      %v514 = vsub.f32 %v354, %v445
      %v515 = vsub.f32 %v355, %v447
      %v516 = vsub.f32 %v356, %v449
      %v517 = vsub.f32 %v357, %v451
      %v518 = vsub.f32 %v358, %v453
      %v519 = vsub.f32 %v359, %v455
      %vm520 = vcmask 130048
      %521 = vst.msk [vmem:[%s256] sm:$0xff] %vm520, %v488
      %522 = vst.msk [vmem:[%s256 + $0x10] sm:$0xff] %vm520, %v489
      %523 = vst.msk [vmem:[%s256 + $0x20] sm:$0xff] %vm520, %v490
      %524 = vst.msk [vmem:[%s256 + $0x30] sm:$0xff] %vm520, %v491
      %525 = vst.msk [vmem:[%s256 + $0x40] sm:$0xff] %vm520, %v492
      %526 = vst.msk [vmem:[%s256 + $0x50] sm:$0xff] %vm520, %v493
      %527 = vst.msk [vmem:[%s256 + $0x60] sm:$0xff] %vm520, %v494
      %528 = vst.msk [vmem:[%s256 + $0x70] sm:$0xff] %vm520, %v495
      %529 = vst.msk [vmem:[%s256 + $0x80] sm:$0xff] %vm520, %v496
      %530 = vst.msk [vmem:[%s256 + $0x90] sm:$0xff] %vm520, %v497
      %531 = vst.msk [vmem:[%s256 + $0xa0] sm:$0xff] %vm520, %v498
      %532 = vst.msk [vmem:[%s256 + $0xb0] sm:$0xff] %vm520, %v499
      %533 = vst.msk [vmem:[%s256 + $0xc0] sm:$0xff] %vm520, %v500
      %534 = vst.msk [vmem:[%s256 + $0xd0] sm:$0xff] %vm520, %v501
      %535 = vst.msk [vmem:[%s256 + $0xe0] sm:$0xff] %vm520, %v502
      %536 = vst.msk [vmem:[%s256 + $0xf0] sm:$0xff] %vm520, %v503
      %537 = vst.msk [vmem:[%s256 + $0x100] sm:$0xff] %vm520, %v504
      %538 = vst.msk [vmem:[%s256 + $0x110] sm:$0xff] %vm520, %v505
      %539 = vst.msk [vmem:[%s256 + $0x120] sm:$0xff] %vm520, %v506
      %540 = vst.msk [vmem:[%s256 + $0x130] sm:$0xff] %vm520, %v507
      %541 = vst.msk [vmem:[%s256 + $0x140] sm:$0xff] %vm520, %v508
      %542 = vst.msk [vmem:[%s256 + $0x150] sm:$0xff] %vm520, %v509
      %543 = vst.msk [vmem:[%s256 + $0x160] sm:$0xff] %vm520, %v510
      %544 = vst.msk [vmem:[%s256 + $0x170] sm:$0xff] %vm520, %v511
      %545 = vst.msk [vmem:[%s256 + $0x180] sm:$0xff] %vm520, %v512
      %546 = vst.msk [vmem:[%s256 + $0x190] sm:$0xff] %vm520, %v513
      %547 = vst.msk [vmem:[%s256 + $0x1a0] sm:$0xff] %vm520, %v514
      %548 = vst.msk [vmem:[%s256 + $0x1b0] sm:$0xff] %vm520, %v515
      %549 = vst.msk [vmem:[%s256 + $0x1c0] sm:$0xff] %vm520, %v516
      %550 = vst.msk [vmem:[%s256 + $0x1d0] sm:$0xff] %vm520, %v517
      %551 = vst.msk [vmem:[%s256 + $0x1e0] sm:$0xff] %vm520, %v518
      %552 = vst.msk [vmem:[%s256 + $0x1f0] sm:$0xff] %vm520, %v519
      %585 = vrot.lane.b32.xlu0 %v264, 16
      %v586 = vpop.permute.xlu0 %585
      %587 = vrot.lane.b32.xlu0 %v265, 16
      %v588 = vpop.permute.xlu0 %587
      %589 = vrot.lane.b32.xlu0 %v266, 16
      %v590 = vpop.permute.xlu0 %589
      %591 = vrot.lane.b32.xlu0 %v267, 16
      %v592 = vpop.permute.xlu0 %591
      %593 = vrot.lane.b32.xlu0 %v268, 16
      %v594 = vpop.permute.xlu0 %593
      %595 = vrot.lane.b32.xlu0 %v269, 16
      %v596 = vpop.permute.xlu0 %595
      %597 = vrot.lane.b32.xlu0 %v270, 16
      %v598 = vpop.permute.xlu0 %597
      %599 = vrot.lane.b32.xlu0 %v271, 16
      %v600 = vpop.permute.xlu0 %599
      %601 = vrot.lane.b32.xlu0 %v272, 16
      %v602 = vpop.permute.xlu0 %601
      %603 = vrot.lane.b32.xlu0 %v273, 16
      %v604 = vpop.permute.xlu0 %603
      %605 = vrot.lane.b32.xlu0 %v274, 16
      %v606 = vpop.permute.xlu0 %605
      %607 = vrot.lane.b32.xlu0 %v275, 16
      %v608 = vpop.permute.xlu0 %607
      %609 = vrot.lane.b32.xlu0 %v276, 16
      %v610 = vpop.permute.xlu0 %609
      %611 = vrot.lane.b32.xlu0 %v277, 16
      %v612 = vpop.permute.xlu0 %611
      %613 = vrot.lane.b32.xlu0 %v278, 16
      %v614 = vpop.permute.xlu0 %613
      %615 = vrot.lane.b32.xlu0 %v279, 16
      %v616 = vpop.permute.xlu0 %615
      %617 = vrot.lane.b32.xlu0 %v280, 16
      %v618 = vpop.permute.xlu0 %617
      %619 = vrot.lane.b32.xlu0 %v281, 16
      %v620 = vpop.permute.xlu0 %619
      %621 = vrot.lane.b32.xlu0 %v282, 16
      %v622 = vpop.permute.xlu0 %621
      %623 = vrot.lane.b32.xlu0 %v283, 16
      %v624 = vpop.permute.xlu0 %623
      %625 = vrot.lane.b32.xlu0 %v284, 16
      %v626 = vpop.permute.xlu0 %625
      %627 = vrot.lane.b32.xlu0 %v285, 16
      %v628 = vpop.permute.xlu0 %627
      %629 = vrot.lane.b32.xlu0 %v286, 16
      %v630 = vpop.permute.xlu0 %629
      %631 = vrot.lane.b32.xlu0 %v287, 16
      %v632 = vpop.permute.xlu0 %631
      %633 = vrot.lane.b32.xlu0 %v288, 16
      %v634 = vpop.permute.xlu0 %633
      %635 = vrot.lane.b32.xlu0 %v289, 16
      %v636 = vpop.permute.xlu0 %635
      %637 = vrot.lane.b32.xlu0 %v290, 16
      %v638 = vpop.permute.xlu0 %637
      %639 = vrot.lane.b32.xlu0 %v291, 16
      %v640 = vpop.permute.xlu0 %639
      %641 = vrot.lane.b32.xlu0 %v292, 16
      %v642 = vpop.permute.xlu0 %641
      %643 = vrot.lane.b32.xlu0 %v293, 16
      %v644 = vpop.permute.xlu0 %643
      %645 = vrot.lane.b32.xlu0 %v294, 16
      %v646 = vpop.permute.xlu0 %645
      %647 = vrot.lane.b32.xlu0 %v295, 16
      %v648 = vpop.permute.xlu0 %647
      %v681 = vmul.f32 %v296, %v586
      %v682 = vmul.f32 %v297, %v588
      %v683 = vmul.f32 %v298, %v590
      %v684 = vmul.f32 %v299, %v592
      %v685 = vmul.f32 %v300, %v594
      %v686 = vmul.f32 %v301, %v596
      %v687 = vmul.f32 %v302, %v598
      %v688 = vmul.f32 %v303, %v600
      %v689 = vmul.f32 %v304, %v602
      %v690 = vmul.f32 %v305, %v604
      %v691 = vmul.f32 %v306, %v606
      %v692 = vmul.f32 %v307, %v608
      %v693 = vmul.f32 %v308, %v610
      %v694 = vmul.f32 %v309, %v612
      %v695 = vmul.f32 %v310, %v614
      %v696 = vmul.f32 %v311, %v616
      %v697 = vmul.f32 %v312, %v618
      %v698 = vmul.f32 %v313, %v620
      %v699 = vmul.f32 %v314, %v622
      %v700 = vmul.f32 %v315, %v624
      %v701 = vmul.f32 %v316, %v626
      %v702 = vmul.f32 %v317, %v628
      %v703 = vmul.f32 %v318, %v630
      %v704 = vmul.f32 %v319, %v632
      %v705 = vmul.f32 %v320, %v634
      %v706 = vmul.f32 %v321, %v636
      %v707 = vmul.f32 %v322, %v638
      %v708 = vmul.f32 %v323, %v640
      %v709 = vmul.f32 %v324, %v642
      %v710 = vmul.f32 %v325, %v644
      %v711 = vmul.f32 %v326, %v646
      %v712 = vmul.f32 %v327, %v648
      %713 = vrot.lane.b32.xlu0 %v264, 112
      %v714 = vpop.permute.xlu0 %713
      %715 = vrot.lane.b32.xlu0 %v265, 112
      %v716 = vpop.permute.xlu0 %715
      %717 = vrot.lane.b32.xlu0 %v266, 112
      %v718 = vpop.permute.xlu0 %717
      %719 = vrot.lane.b32.xlu0 %v267, 112
      %v720 = vpop.permute.xlu0 %719
      %721 = vrot.lane.b32.xlu0 %v268, 112
      %v722 = vpop.permute.xlu0 %721
      %723 = vrot.lane.b32.xlu0 %v269, 112
      %v724 = vpop.permute.xlu0 %723
      %725 = vrot.lane.b32.xlu0 %v270, 112
      %v726 = vpop.permute.xlu0 %725
      %727 = vrot.lane.b32.xlu0 %v271, 112
      %v728 = vpop.permute.xlu0 %727
      %729 = vrot.lane.b32.xlu0 %v272, 112
      %v730 = vpop.permute.xlu0 %729
      %731 = vrot.lane.b32.xlu0 %v273, 112
      %v732 = vpop.permute.xlu0 %731
      %733 = vrot.lane.b32.xlu0 %v274, 112
      %v734 = vpop.permute.xlu0 %733
      %735 = vrot.lane.b32.xlu0 %v275, 112
      %v736 = vpop.permute.xlu0 %735
      %737 = vrot.lane.b32.xlu0 %v276, 112
      %v738 = vpop.permute.xlu0 %737
      %739 = vrot.lane.b32.xlu0 %v277, 112
      %v740 = vpop.permute.xlu0 %739
      %741 = vrot.lane.b32.xlu0 %v278, 112
      %v742 = vpop.permute.xlu0 %741
      %743 = vrot.lane.b32.xlu0 %v279, 112
      %v744 = vpop.permute.xlu0 %743
      %745 = vrot.lane.b32.xlu0 %v280, 112
      %v746 = vpop.permute.xlu0 %745
      %747 = vrot.lane.b32.xlu0 %v281, 112
      %v748 = vpop.permute.xlu0 %747
      %749 = vrot.lane.b32.xlu0 %v282, 112
      %v750 = vpop.permute.xlu0 %749
      %751 = vrot.lane.b32.xlu0 %v283, 112
      %v752 = vpop.permute.xlu0 %751
      %753 = vrot.lane.b32.xlu0 %v284, 112
      %v754 = vpop.permute.xlu0 %753
      %755 = vrot.lane.b32.xlu0 %v285, 112
      %v756 = vpop.permute.xlu0 %755
      %757 = vrot.lane.b32.xlu0 %v286, 112
      %v758 = vpop.permute.xlu0 %757
      %759 = vrot.lane.b32.xlu0 %v287, 112
      %v760 = vpop.permute.xlu0 %759
      %761 = vrot.lane.b32.xlu0 %v288, 112
      %v762 = vpop.permute.xlu0 %761
      %763 = vrot.lane.b32.xlu0 %v289, 112
      %v764 = vpop.permute.xlu0 %763
      %765 = vrot.lane.b32.xlu0 %v290, 112
      %v766 = vpop.permute.xlu0 %765
      %767 = vrot.lane.b32.xlu0 %v291, 112
      %v768 = vpop.permute.xlu0 %767
      %769 = vrot.lane.b32.xlu0 %v292, 112
      %v770 = vpop.permute.xlu0 %769
      %771 = vrot.lane.b32.xlu0 %v293, 112
      %v772 = vpop.permute.xlu0 %771
      %773 = vrot.lane.b32.xlu0 %v294, 112
      %v774 = vpop.permute.xlu0 %773
      %775 = vrot.lane.b32.xlu0 %v295, 112
      %v776 = vpop.permute.xlu0 %775
      %v809 = vmul.f32 %v296, %v714
      %v810 = vmul.f32 %v297, %v716
      %v811 = vmul.f32 %v298, %v718
      %v812 = vmul.f32 %v299, %v720
      %v813 = vmul.f32 %v300, %v722
      %v814 = vmul.f32 %v301, %v724
      %v815 = vmul.f32 %v302, %v726
      %v816 = vmul.f32 %v303, %v728
      %v817 = vmul.f32 %v304, %v730
      %v818 = vmul.f32 %v305, %v732
      %v819 = vmul.f32 %v306, %v734
      %v820 = vmul.f32 %v307, %v736
      %v821 = vmul.f32 %v308, %v738
      %v822 = vmul.f32 %v309, %v740
      %v823 = vmul.f32 %v310, %v742
      %v824 = vmul.f32 %v311, %v744
      %v825 = vmul.f32 %v312, %v746
      %v826 = vmul.f32 %v313, %v748
      %v827 = vmul.f32 %v314, %v750
      %v828 = vmul.f32 %v315, %v752
      %v829 = vmul.f32 %v316, %v754
      %v830 = vmul.f32 %v317, %v756
      %v831 = vmul.f32 %v318, %v758
      %v832 = vmul.f32 %v319, %v760
      %v833 = vmul.f32 %v320, %v762
      %v834 = vmul.f32 %v321, %v764
      %v835 = vmul.f32 %v322, %v766
      %v836 = vmul.f32 %v323, %v768
      %v837 = vmul.f32 %v324, %v770
      %v838 = vmul.f32 %v325, %v772
      %v839 = vmul.f32 %v326, %v774
      %v840 = vmul.f32 %v327, %v776
      %873 = vrot.lane.b32.xlu0 %v809, 16
      %v874 = vpop.permute.xlu0 %873
      %875 = vrot.lane.b32.xlu0 %v810, 16
      %v876 = vpop.permute.xlu0 %875
      %877 = vrot.lane.b32.xlu0 %v811, 16
      %v878 = vpop.permute.xlu0 %877
      %879 = vrot.lane.b32.xlu0 %v812, 16
      %v880 = vpop.permute.xlu0 %879
      %881 = vrot.lane.b32.xlu0 %v813, 16
      %v882 = vpop.permute.xlu0 %881
      %883 = vrot.lane.b32.xlu0 %v814, 16
      %v884 = vpop.permute.xlu0 %883
      %885 = vrot.lane.b32.xlu0 %v815, 16
      %v886 = vpop.permute.xlu0 %885
      %887 = vrot.lane.b32.xlu0 %v816, 16
      %v888 = vpop.permute.xlu0 %887
      %889 = vrot.lane.b32.xlu0 %v817, 16
      %v890 = vpop.permute.xlu0 %889
      %891 = vrot.lane.b32.xlu0 %v818, 16
      %v892 = vpop.permute.xlu0 %891
      %893 = vrot.lane.b32.xlu0 %v819, 16
      %v894 = vpop.permute.xlu0 %893
      %895 = vrot.lane.b32.xlu0 %v820, 16
      %v896 = vpop.permute.xlu0 %895
      %897 = vrot.lane.b32.xlu0 %v821, 16
      %v898 = vpop.permute.xlu0 %897
      %899 = vrot.lane.b32.xlu0 %v822, 16
      %v900 = vpop.permute.xlu0 %899
      %901 = vrot.lane.b32.xlu0 %v823, 16
      %v902 = vpop.permute.xlu0 %901
      %903 = vrot.lane.b32.xlu0 %v824, 16
      %v904 = vpop.permute.xlu0 %903
      %905 = vrot.lane.b32.xlu0 %v825, 16
      %v906 = vpop.permute.xlu0 %905
      %907 = vrot.lane.b32.xlu0 %v826, 16
      %v908 = vpop.permute.xlu0 %907
      %909 = vrot.lane.b32.xlu0 %v827, 16
      %v910 = vpop.permute.xlu0 %909
      %911 = vrot.lane.b32.xlu0 %v828, 16
      %v912 = vpop.permute.xlu0 %911
      %913 = vrot.lane.b32.xlu0 %v829, 16
      %v914 = vpop.permute.xlu0 %913
      %915 = vrot.lane.b32.xlu0 %v830, 16
      %v916 = vpop.permute.xlu0 %915
      %917 = vrot.lane.b32.xlu0 %v831, 16
      %v918 = vpop.permute.xlu0 %917
      %919 = vrot.lane.b32.xlu0 %v832, 16
      %v920 = vpop.permute.xlu0 %919
      %921 = vrot.lane.b32.xlu0 %v833, 16
      %v922 = vpop.permute.xlu0 %921
      %923 = vrot.lane.b32.xlu0 %v834, 16
      %v924 = vpop.permute.xlu0 %923
      %925 = vrot.lane.b32.xlu0 %v835, 16
      %v926 = vpop.permute.xlu0 %925
      %927 = vrot.lane.b32.xlu0 %v836, 16
      %v928 = vpop.permute.xlu0 %927
      %929 = vrot.lane.b32.xlu0 %v837, 16
      %v930 = vpop.permute.xlu0 %929
      %931 = vrot.lane.b32.xlu0 %v838, 16
      %v932 = vpop.permute.xlu0 %931
      %933 = vrot.lane.b32.xlu0 %v839, 16
      %v934 = vpop.permute.xlu0 %933
      %935 = vrot.lane.b32.xlu0 %v840, 16
      %v936 = vpop.permute.xlu0 %935
      %v969 = vadd.f32 %v681, %v874
      %v970 = vadd.f32 %v682, %v876
      %v971 = vadd.f32 %v683, %v878
      %v972 = vadd.f32 %v684, %v880
      %v973 = vadd.f32 %v685, %v882
      %v974 = vadd.f32 %v686, %v884
      %v975 = vadd.f32 %v687, %v886
      %v976 = vadd.f32 %v688, %v888
      %v977 = vadd.f32 %v689, %v890
      %v978 = vadd.f32 %v690, %v892
      %v979 = vadd.f32 %v691, %v894
      %v980 = vadd.f32 %v692, %v896
      %v981 = vadd.f32 %v693, %v898
      %v982 = vadd.f32 %v694, %v900
      %v983 = vadd.f32 %v695, %v902
      %v984 = vadd.f32 %v696, %v904
      %v985 = vadd.f32 %v697, %v906
      %v986 = vadd.f32 %v698, %v908
      %v987 = vadd.f32 %v699, %v910
      %v988 = vadd.f32 %v700, %v912
      %v989 = vadd.f32 %v701, %v914
      %v990 = vadd.f32 %v702, %v916
      %v991 = vadd.f32 %v703, %v918
      %v992 = vadd.f32 %v704, %v920
      %v993 = vadd.f32 %v705, %v922
      %v994 = vadd.f32 %v706, %v924
      %v995 = vadd.f32 %v707, %v926
      %v996 = vadd.f32 %v708, %v928
      %v997 = vadd.f32 %v709, %v930
      %v998 = vadd.f32 %v710, %v932
      %v999 = vadd.f32 %v711, %v934
      %v1000 = vadd.f32 %v712, %v936
      %vm1001 = vcmask 261248
      %1002 = vst.msk [vmem:[%s256] sm:$0xff] %vm1001, %v969
      %1003 = vst.msk [vmem:[%s256 + $0x10] sm:$0xff] %vm1001, %v970
      %1004 = vst.msk [vmem:[%s256 + $0x20] sm:$0xff] %vm1001, %v971
      %1005 = vst.msk [vmem:[%s256 + $0x30] sm:$0xff] %vm1001, %v972
      %1006 = vst.msk [vmem:[%s256 + $0x40] sm:$0xff] %vm1001, %v973
      %1007 = vst.msk [vmem:[%s256 + $0x50] sm:$0xff] %vm1001, %v974
      %1008 = vst.msk [vmem:[%s256 + $0x60] sm:$0xff] %vm1001, %v975
      %1009 = vst.msk [vmem:[%s256 + $0x70] sm:$0xff] %vm1001, %v976
      %1010 = vst.msk [vmem:[%s256 + $0x80] sm:$0xff] %vm1001, %v977
      %1011 = vst.msk [vmem:[%s256 + $0x90] sm:$0xff] %vm1001, %v978
      %1012 = vst.msk [vmem:[%s256 + $0xa0] sm:$0xff] %vm1001, %v979
      %1013 = vst.msk [vmem:[%s256 + $0xb0] sm:$0xff] %vm1001, %v980
      %1014 = vst.msk [vmem:[%s256 + $0xc0] sm:$0xff] %vm1001, %v981
      %1015 = vst.msk [vmem:[%s256 + $0xd0] sm:$0xff] %vm1001, %v982
      %1016 = vst.msk [vmem:[%s256 + $0xe0] sm:$0xff] %vm1001, %v983
      %1017 = vst.msk [vmem:[%s256 + $0xf0] sm:$0xff] %vm1001, %v984
      %1018 = vst.msk [vmem:[%s256 + $0x100] sm:$0xff] %vm1001, %v985
      %1019 = vst.msk [vmem:[%s256 + $0x110] sm:$0xff] %vm1001, %v986
      %1020 = vst.msk [vmem:[%s256 + $0x120] sm:$0xff] %vm1001, %v987
      %1021 = vst.msk [vmem:[%s256 + $0x130] sm:$0xff] %vm1001, %v988
      %1022 = vst.msk [vmem:[%s256 + $0x140] sm:$0xff] %vm1001, %v989
      %1023 = vst.msk [vmem:[%s256 + $0x150] sm:$0xff] %vm1001, %v990
      %1024 = vst.msk [vmem:[%s256 + $0x160] sm:$0xff] %vm1001, %v991
      %1025 = vst.msk [vmem:[%s256 + $0x170] sm:$0xff] %vm1001, %v992
      %1026 = vst.msk [vmem:[%s256 + $0x180] sm:$0xff] %vm1001, %v993
      %1027 = vst.msk [vmem:[%s256 + $0x190] sm:$0xff] %vm1001, %v994
      %1028 = vst.msk [vmem:[%s256 + $0x1a0] sm:$0xff] %vm1001, %v995
      %1029 = vst.msk [vmem:[%s256 + $0x1b0] sm:$0xff] %vm1001, %v996
      %1030 = vst.msk [vmem:[%s256 + $0x1c0] sm:$0xff] %vm1001, %v997
      %1031 = vst.msk [vmem:[%s256 + $0x1d0] sm:$0xff] %vm1001, %v998
      %1032 = vst.msk [vmem:[%s256 + $0x1e0] sm:$0xff] %vm1001, %v999
      %1033 = vst.msk [vmem:[%s256 + $0x1f0] sm:$0xff] %vm1001, %v1000
      %v1034 = vld [vmem:[%s237] sm:$0xff]
      %v1035 = vld [vmem:[%s237 + $0x10] sm:$0xff]
      %v1036 = vld [vmem:[%s237 + $0x20] sm:$0xff]
      %v1037 = vld [vmem:[%s237 + $0x30] sm:$0xff]
      %v1038 = vld [vmem:[%s237 + $0x40] sm:$0xff]
      %v1039 = vld [vmem:[%s237 + $0x50] sm:$0xff]
      %v1040 = vld [vmem:[%s237 + $0x60] sm:$0xff]
      %v1041 = vld [vmem:[%s237 + $0x70] sm:$0xff]
      %v1042 = vld [vmem:[%s237 + $0x80] sm:$0xff]
      %v1043 = vld [vmem:[%s237 + $0x90] sm:$0xff]
      %v1044 = vld [vmem:[%s237 + $0xa0] sm:$0xff]
      %v1045 = vld [vmem:[%s237 + $0xb0] sm:$0xff]
      %v1046 = vld [vmem:[%s237 + $0xc0] sm:$0xff]
      %v1047 = vld [vmem:[%s237 + $0xd0] sm:$0xff]
      %v1048 = vld [vmem:[%s237 + $0xe0] sm:$0xff]
      %v1049 = vld [vmem:[%s237 + $0xf0] sm:$0xff]
      %v1050 = vld [vmem:[%s237 + $0x100] sm:$0xff]
      %v1051 = vld [vmem:[%s237 + $0x110] sm:$0xff]
      %v1052 = vld [vmem:[%s237 + $0x120] sm:$0xff]
      %v1053 = vld [vmem:[%s237 + $0x130] sm:$0xff]
      %v1054 = vld [vmem:[%s237 + $0x140] sm:$0xff]
      %v1055 = vld [vmem:[%s237 + $0x150] sm:$0xff]
      %v1056 = vld [vmem:[%s237 + $0x160] sm:$0xff]
      %v1057 = vld [vmem:[%s237 + $0x170] sm:$0xff]
      %v1058 = vld [vmem:[%s237 + $0x180] sm:$0xff]
      %v1059 = vld [vmem:[%s237 + $0x190] sm:$0xff]
      %v1060 = vld [vmem:[%s237 + $0x1a0] sm:$0xff]
      %v1061 = vld [vmem:[%s237 + $0x1b0] sm:$0xff]
      %v1062 = vld [vmem:[%s237 + $0x1c0] sm:$0xff]
      %v1063 = vld [vmem:[%s237 + $0x1d0] sm:$0xff]
      %v1064 = vld [vmem:[%s237 + $0x1e0] sm:$0xff]
      %v1065 = vld [vmem:[%s237 + $0x1f0] sm:$0xff]
      %vm1066 = vcmask 523520
      %1067 = vst.msk [vmem:[%s256] sm:$0xff] %vm1066, %v1034
      %1068 = vst.msk [vmem:[%s256 + $0x10] sm:$0xff] %vm1066, %v1035
      %1069 = vst.msk [vmem:[%s256 + $0x20] sm:$0xff] %vm1066, %v1036
      %1070 = vst.msk [vmem:[%s256 + $0x30] sm:$0xff] %vm1066, %v1037
      %1071 = vst.msk [vmem:[%s256 + $0x40] sm:$0xff] %vm1066, %v1038
      %1072 = vst.msk [vmem:[%s256 + $0x50] sm:$0xff] %vm1066, %v1039
      %1073 = vst.msk [vmem:[%s256 + $0x60] sm:$0xff] %vm1066, %v1040
      %1074 = vst.msk [vmem:[%s256 + $0x70] sm:$0xff] %vm1066, %v1041
      %1075 = vst.msk [vmem:[%s256 + $0x80] sm:$0xff] %vm1066, %v1042
      %1076 = vst.msk [vmem:[%s256 + $0x90] sm:$0xff] %vm1066, %v1043
      %1077 = vst.msk [vmem:[%s256 + $0xa0] sm:$0xff] %vm1066, %v1044
      %1078 = vst.msk [vmem:[%s256 + $0xb0] sm:$0xff] %vm1066, %v1045
      %1079 = vst.msk [vmem:[%s256 + $0xc0] sm:$0xff] %vm1066, %v1046
      %1080 = vst.msk [vmem:[%s256 + $0xd0] sm:$0xff] %vm1066, %v1047
      %1081 = vst.msk [vmem:[%s256 + $0xe0] sm:$0xff] %vm1066, %v1048
      %1082 = vst.msk [vmem:[%s256 + $0xf0] sm:$0xff] %vm1066, %v1049
      %1083 = vst.msk [vmem:[%s256 + $0x100] sm:$0xff] %vm1066, %v1050
      %1084 = vst.msk [vmem:[%s256 + $0x110] sm:$0xff] %vm1066, %v1051
      %1085 = vst.msk [vmem:[%s256 + $0x120] sm:$0xff] %vm1066, %v1052
      %1086 = vst.msk [vmem:[%s256 + $0x130] sm:$0xff] %vm1066, %v1053
      %1087 = vst.msk [vmem:[%s256 + $0x140] sm:$0xff] %vm1066, %v1054
      %1088 = vst.msk [vmem:[%s256 + $0x150] sm:$0xff] %vm1066, %v1055
      %1089 = vst.msk [vmem:[%s256 + $0x160] sm:$0xff] %vm1066, %v1056
      %1090 = vst.msk [vmem:[%s256 + $0x170] sm:$0xff] %vm1066, %v1057
      %1091 = vst.msk [vmem:[%s256 + $0x180] sm:$0xff] %vm1066, %v1058
      %1092 = vst.msk [vmem:[%s256 + $0x190] sm:$0xff] %vm1066, %v1059
      %1093 = vst.msk [vmem:[%s256 + $0x1a0] sm:$0xff] %vm1066, %v1060
      %1094 = vst.msk [vmem:[%s256 + $0x1b0] sm:$0xff] %vm1066, %v1061
      %1095 = vst.msk [vmem:[%s256 + $0x1c0] sm:$0xff] %vm1066, %v1062
      %1096 = vst.msk [vmem:[%s256 + $0x1d0] sm:$0xff] %vm1066, %v1063
      %1097 = vst.msk [vmem:[%s256 + $0x1e0] sm:$0xff] %vm1066, %v1064
      %1098 = vst.msk [vmem:[%s256 + $0x1f0] sm:$0xff] %vm1066, %v1065
      %v1099 = vld [vmem:[%s237] sm:$0xff]
      %v1100 = vld [vmem:[%s237 + $0x10] sm:$0xff]
      %v1101 = vld [vmem:[%s237 + $0x20] sm:$0xff]
      %v1102 = vld [vmem:[%s237 + $0x30] sm:$0xff]
      %v1103 = vld [vmem:[%s237 + $0x40] sm:$0xff]
      %v1104 = vld [vmem:[%s237 + $0x50] sm:$0xff]
      %v1105 = vld [vmem:[%s237 + $0x60] sm:$0xff]
      %v1106 = vld [vmem:[%s237 + $0x70] sm:$0xff]
      %v1107 = vld [vmem:[%s237 + $0x80] sm:$0xff]
      %v1108 = vld [vmem:[%s237 + $0x90] sm:$0xff]
      %v1109 = vld [vmem:[%s237 + $0xa0] sm:$0xff]
      %v1110 = vld [vmem:[%s237 + $0xb0] sm:$0xff]
      %v1111 = vld [vmem:[%s237 + $0xc0] sm:$0xff]
      %v1112 = vld [vmem:[%s237 + $0xd0] sm:$0xff]
      %v1113 = vld [vmem:[%s237 + $0xe0] sm:$0xff]
      %v1114 = vld [vmem:[%s237 + $0xf0] sm:$0xff]
      %v1115 = vld [vmem:[%s237 + $0x100] sm:$0xff]
      %v1116 = vld [vmem:[%s237 + $0x110] sm:$0xff]
      %v1117 = vld [vmem:[%s237 + $0x120] sm:$0xff]
      %v1118 = vld [vmem:[%s237 + $0x130] sm:$0xff]
      %v1119 = vld [vmem:[%s237 + $0x140] sm:$0xff]
      %v1120 = vld [vmem:[%s237 + $0x150] sm:$0xff]
      %v1121 = vld [vmem:[%s237 + $0x160] sm:$0xff]
      %v1122 = vld [vmem:[%s237 + $0x170] sm:$0xff]
      %v1123 = vld [vmem:[%s237 + $0x180] sm:$0xff]
      %v1124 = vld [vmem:[%s237 + $0x190] sm:$0xff]
      %v1125 = vld [vmem:[%s237 + $0x1a0] sm:$0xff]
      %v1126 = vld [vmem:[%s237 + $0x1b0] sm:$0xff]
      %v1127 = vld [vmem:[%s237 + $0x1c0] sm:$0xff]
      %v1128 = vld [vmem:[%s237 + $0x1d0] sm:$0xff]
      %v1129 = vld [vmem:[%s237 + $0x1e0] sm:$0xff]
      %v1130 = vld [vmem:[%s237 + $0x1f0] sm:$0xff]
      %1131 = vrot.lane.b32.xlu0 %v264, 64
      %v1132 = vpop.permute.xlu0 %1131
      %1133 = vrot.lane.b32.xlu0 %v265, 64
      %v1134 = vpop.permute.xlu0 %1133
      %1135 = vrot.lane.b32.xlu0 %v266, 64
      %v1136 = vpop.permute.xlu0 %1135
      %1137 = vrot.lane.b32.xlu0 %v267, 64
      %v1138 = vpop.permute.xlu0 %1137
      %1139 = vrot.lane.b32.xlu0 %v268, 64
      %v1140 = vpop.permute.xlu0 %1139
      %1141 = vrot.lane.b32.xlu0 %v269, 64
      %v1142 = vpop.permute.xlu0 %1141
      %1143 = vrot.lane.b32.xlu0 %v270, 64
      %v1144 = vpop.permute.xlu0 %1143
      %1145 = vrot.lane.b32.xlu0 %v271, 64
      %v1146 = vpop.permute.xlu0 %1145
      %1147 = vrot.lane.b32.xlu0 %v272, 64
      %v1148 = vpop.permute.xlu0 %1147
      %1149 = vrot.lane.b32.xlu0 %v273, 64
      %v1150 = vpop.permute.xlu0 %1149
      %1151 = vrot.lane.b32.xlu0 %v274, 64
      %v1152 = vpop.permute.xlu0 %1151
      %1153 = vrot.lane.b32.xlu0 %v275, 64
      %v1154 = vpop.permute.xlu0 %1153
      %1155 = vrot.lane.b32.xlu0 %v276, 64
      %v1156 = vpop.permute.xlu0 %1155
      %1157 = vrot.lane.b32.xlu0 %v277, 64
      %v1158 = vpop.permute.xlu0 %1157
      %1159 = vrot.lane.b32.xlu0 %v278, 64
      %v1160 = vpop.permute.xlu0 %1159
      %1161 = vrot.lane.b32.xlu0 %v279, 64
      %v1162 = vpop.permute.xlu0 %1161
      %1163 = vrot.lane.b32.xlu0 %v280, 64
      %v1164 = vpop.permute.xlu0 %1163
      %1165 = vrot.lane.b32.xlu0 %v281, 64
      %v1166 = vpop.permute.xlu0 %1165
      %1167 = vrot.lane.b32.xlu0 %v282, 64
      %v1168 = vpop.permute.xlu0 %1167
      %1169 = vrot.lane.b32.xlu0 %v283, 64
      %v1170 = vpop.permute.xlu0 %1169
      %1171 = vrot.lane.b32.xlu0 %v284, 64
      %v1172 = vpop.permute.xlu0 %1171
      %1173 = vrot.lane.b32.xlu0 %v285, 64
      %v1174 = vpop.permute.xlu0 %1173
      %1175 = vrot.lane.b32.xlu0 %v286, 64
      %v1176 = vpop.permute.xlu0 %1175
      %1177 = vrot.lane.b32.xlu0 %v287, 64
      %v1178 = vpop.permute.xlu0 %1177
      %1179 = vrot.lane.b32.xlu0 %v288, 64
      %v1180 = vpop.permute.xlu0 %1179
      %1181 = vrot.lane.b32.xlu0 %v289, 64
      %v1182 = vpop.permute.xlu0 %1181
      %1183 = vrot.lane.b32.xlu0 %v290, 64
      %v1184 = vpop.permute.xlu0 %1183
      %1185 = vrot.lane.b32.xlu0 %v291, 64
      %v1186 = vpop.permute.xlu0 %1185
      %1187 = vrot.lane.b32.xlu0 %v292, 64
      %v1188 = vpop.permute.xlu0 %1187
      %1189 = vrot.lane.b32.xlu0 %v293, 64
      %v1190 = vpop.permute.xlu0 %1189
      %1191 = vrot.lane.b32.xlu0 %v294, 64
      %v1192 = vpop.permute.xlu0 %1191
      %1193 = vrot.lane.b32.xlu0 %v295, 64
      %v1194 = vpop.permute.xlu0 %1193
      %v1227 = vmul.f32 %v1099, %v1132
      %v1228 = vmul.f32 %v1100, %v1134
      %v1229 = vmul.f32 %v1101, %v1136
      %v1230 = vmul.f32 %v1102, %v1138
      %v1231 = vmul.f32 %v1103, %v1140
      %v1232 = vmul.f32 %v1104, %v1142
      %v1233 = vmul.f32 %v1105, %v1144
      %v1234 = vmul.f32 %v1106, %v1146
      %v1235 = vmul.f32 %v1107, %v1148
      %v1236 = vmul.f32 %v1108, %v1150
      %v1237 = vmul.f32 %v1109, %v1152
      %v1238 = vmul.f32 %v1110, %v1154
      %v1239 = vmul.f32 %v1111, %v1156
      %v1240 = vmul.f32 %v1112, %v1158
      %v1241 = vmul.f32 %v1113, %v1160
      %v1242 = vmul.f32 %v1114, %v1162
      %v1243 = vmul.f32 %v1115, %v1164
      %v1244 = vmul.f32 %v1116, %v1166
      %v1245 = vmul.f32 %v1117, %v1168
      %v1246 = vmul.f32 %v1118, %v1170
      %v1247 = vmul.f32 %v1119, %v1172
      %v1248 = vmul.f32 %v1120, %v1174
      %v1249 = vmul.f32 %v1121, %v1176
      %v1250 = vmul.f32 %v1122, %v1178
      %v1251 = vmul.f32 %v1123, %v1180
      %v1252 = vmul.f32 %v1124, %v1182
      %v1253 = vmul.f32 %v1125, %v1184
      %v1254 = vmul.f32 %v1126, %v1186
      %v1255 = vmul.f32 %v1127, %v1188
      %v1256 = vmul.f32 %v1128, %v1190
      %v1257 = vmul.f32 %v1129, %v1192
      %v1258 = vmul.f32 %v1130, %v1194
      %1291 = vrot.lane.b32.xlu0 %v1227, 112
      %v1292 = vpop.permute.xlu0 %1291
      %1293 = vrot.lane.b32.xlu0 %v1228, 112
      %v1294 = vpop.permute.xlu0 %1293
      %1295 = vrot.lane.b32.xlu0 %v1229, 112
      %v1296 = vpop.permute.xlu0 %1295
      %1297 = vrot.lane.b32.xlu0 %v1230, 112
      %v1298 = vpop.permute.xlu0 %1297
      %1299 = vrot.lane.b32.xlu0 %v1231, 112
      %v1300 = vpop.permute.xlu0 %1299
      %1301 = vrot.lane.b32.xlu0 %v1232, 112
      %v1302 = vpop.permute.xlu0 %1301
      %1303 = vrot.lane.b32.xlu0 %v1233, 112
      %v1304 = vpop.permute.xlu0 %1303
      %1305 = vrot.lane.b32.xlu0 %v1234, 112
      %v1306 = vpop.permute.xlu0 %1305
      %1307 = vrot.lane.b32.xlu0 %v1235, 112
      %v1308 = vpop.permute.xlu0 %1307
      %1309 = vrot.lane.b32.xlu0 %v1236, 112
      %v1310 = vpop.permute.xlu0 %1309
      %1311 = vrot.lane.b32.xlu0 %v1237, 112
      %v1312 = vpop.permute.xlu0 %1311
      %1313 = vrot.lane.b32.xlu0 %v1238, 112
      %v1314 = vpop.permute.xlu0 %1313
      %1315 = vrot.lane.b32.xlu0 %v1239, 112
      %v1316 = vpop.permute.xlu0 %1315
      %1317 = vrot.lane.b32.xlu0 %v1240, 112
      %v1318 = vpop.permute.xlu0 %1317
      %1319 = vrot.lane.b32.xlu0 %v1241, 112
      %v1320 = vpop.permute.xlu0 %1319
      %1321 = vrot.lane.b32.xlu0 %v1242, 112
      %v1322 = vpop.permute.xlu0 %1321
      %1323 = vrot.lane.b32.xlu0 %v1243, 112
      %v1324 = vpop.permute.xlu0 %1323
      %1325 = vrot.lane.b32.xlu0 %v1244, 112
      %v1326 = vpop.permute.xlu0 %1325
      %1327 = vrot.lane.b32.xlu0 %v1245, 112
      %v1328 = vpop.permute.xlu0 %1327
      %1329 = vrot.lane.b32.xlu0 %v1246, 112
      %v1330 = vpop.permute.xlu0 %1329
      %1331 = vrot.lane.b32.xlu0 %v1247, 112
      %v1332 = vpop.permute.xlu0 %1331
      %1333 = vrot.lane.b32.xlu0 %v1248, 112
      %v1334 = vpop.permute.xlu0 %1333
      %1335 = vrot.lane.b32.xlu0 %v1249, 112
      %v1336 = vpop.permute.xlu0 %1335
      %1337 = vrot.lane.b32.xlu0 %v1250, 112
      %v1338 = vpop.permute.xlu0 %1337
      %1339 = vrot.lane.b32.xlu0 %v1251, 112
      %v1340 = vpop.permute.xlu0 %1339
      %1341 = vrot.lane.b32.xlu0 %v1252, 112
      %v1342 = vpop.permute.xlu0 %1341
      %1343 = vrot.lane.b32.xlu0 %v1253, 112
      %v1344 = vpop.permute.xlu0 %1343
      %1345 = vrot.lane.b32.xlu0 %v1254, 112
      %v1346 = vpop.permute.xlu0 %1345
      %1347 = vrot.lane.b32.xlu0 %v1255, 112
      %v1348 = vpop.permute.xlu0 %1347
      %1349 = vrot.lane.b32.xlu0 %v1256, 112
      %v1350 = vpop.permute.xlu0 %1349
      %1351 = vrot.lane.b32.xlu0 %v1257, 112
      %v1352 = vpop.permute.xlu0 %1351
      %1353 = vrot.lane.b32.xlu0 %v1258, 112
      %v1354 = vpop.permute.xlu0 %1353
      %v1387 = vsub.f32 %v1227, %v1292
      %v1388 = vsub.f32 %v1228, %v1294
      %v1389 = vsub.f32 %v1229, %v1296
      %v1390 = vsub.f32 %v1230, %v1298
      %v1391 = vsub.f32 %v1231, %v1300
      %v1392 = vsub.f32 %v1232, %v1302
      %v1393 = vsub.f32 %v1233, %v1304
      %v1394 = vsub.f32 %v1234, %v1306
      %v1395 = vsub.f32 %v1235, %v1308
      %v1396 = vsub.f32 %v1236, %v1310
      %v1397 = vsub.f32 %v1237, %v1312
      %v1398 = vsub.f32 %v1238, %v1314
      %v1399 = vsub.f32 %v1239, %v1316
      %v1400 = vsub.f32 %v1240, %v1318
      %v1401 = vsub.f32 %v1241, %v1320
      %v1402 = vsub.f32 %v1242, %v1322
      %v1403 = vsub.f32 %v1243, %v1324
      %v1404 = vsub.f32 %v1244, %v1326
      %v1405 = vsub.f32 %v1245, %v1328
      %v1406 = vsub.f32 %v1246, %v1330
      %v1407 = vsub.f32 %v1247, %v1332
      %v1408 = vsub.f32 %v1248, %v1334
      %v1409 = vsub.f32 %v1249, %v1336
      %v1410 = vsub.f32 %v1250, %v1338
      %v1411 = vsub.f32 %v1251, %v1340
      %v1412 = vsub.f32 %v1252, %v1342
      %v1413 = vsub.f32 %v1253, %v1344
      %v1414 = vsub.f32 %v1254, %v1346
      %v1415 = vsub.f32 %v1255, %v1348
      %v1416 = vsub.f32 %v1256, %v1350
      %v1417 = vsub.f32 %v1257, %v1352
      %v1418 = vsub.f32 %v1258, %v1354
      %vm1419 = vcmask 654848
      %1420 = vst.msk [vmem:[%s256] sm:$0xff] %vm1419, %v1387
      %1421 = vst.msk [vmem:[%s256 + $0x10] sm:$0xff] %vm1419, %v1388
      %1422 = vst.msk [vmem:[%s256 + $0x20] sm:$0xff] %vm1419, %v1389
      %1423 = vst.msk [vmem:[%s256 + $0x30] sm:$0xff] %vm1419, %v1390
      %1424 = vst.msk [vmem:[%s256 + $0x40] sm:$0xff] %vm1419, %v1391
      %1425 = vst.msk [vmem:[%s256 + $0x50] sm:$0xff] %vm1419, %v1392
      %1426 = vst.msk [vmem:[%s256 + $0x60] sm:$0xff] %vm1419, %v1393
      %1427 = vst.msk [vmem:[%s256 + $0x70] sm:$0xff] %vm1419, %v1394
      %1428 = vst.msk [vmem:[%s256 + $0x80] sm:$0xff] %vm1419, %v1395
      %1429 = vst.msk [vmem:[%s256 + $0x90] sm:$0xff] %vm1419, %v1396
      %1430 = vst.msk [vmem:[%s256 + $0xa0] sm:$0xff] %vm1419, %v1397
      %1431 = vst.msk [vmem:[%s256 + $0xb0] sm:$0xff] %vm1419, %v1398
      %1432 = vst.msk [vmem:[%s256 + $0xc0] sm:$0xff] %vm1419, %v1399
      %1433 = vst.msk [vmem:[%s256 + $0xd0] sm:$0xff] %vm1419, %v1400
      %1434 = vst.msk [vmem:[%s256 + $0xe0] sm:$0xff] %vm1419, %v1401
      %1435 = vst.msk [vmem:[%s256 + $0xf0] sm:$0xff] %vm1419, %v1402
      %1436 = vst.msk [vmem:[%s256 + $0x100] sm:$0xff] %vm1419, %v1403
      %1437 = vst.msk [vmem:[%s256 + $0x110] sm:$0xff] %vm1419, %v1404
      %1438 = vst.msk [vmem:[%s256 + $0x120] sm:$0xff] %vm1419, %v1405
      %1439 = vst.msk [vmem:[%s256 + $0x130] sm:$0xff] %vm1419, %v1406
      %1440 = vst.msk [vmem:[%s256 + $0x140] sm:$0xff] %vm1419, %v1407
      %1441 = vst.msk [vmem:[%s256 + $0x150] sm:$0xff] %vm1419, %v1408
      %1442 = vst.msk [vmem:[%s256 + $0x160] sm:$0xff] %vm1419, %v1409
      %1443 = vst.msk [vmem:[%s256 + $0x170] sm:$0xff] %vm1419, %v1410
      %1444 = vst.msk [vmem:[%s256 + $0x180] sm:$0xff] %vm1419, %v1411
      %1445 = vst.msk [vmem:[%s256 + $0x190] sm:$0xff] %vm1419, %v1412
      %1446 = vst.msk [vmem:[%s256 + $0x1a0] sm:$0xff] %vm1419, %v1413
      %1447 = vst.msk [vmem:[%s256 + $0x1b0] sm:$0xff] %vm1419, %v1414
      %1448 = vst.msk [vmem:[%s256 + $0x1c0] sm:$0xff] %vm1419, %v1415
      %1449 = vst.msk [vmem:[%s256 + $0x1d0] sm:$0xff] %vm1419, %v1416
      %1450 = vst.msk [vmem:[%s256 + $0x1e0] sm:$0xff] %vm1419, %v1417
      %1451 = vst.msk [vmem:[%s256 + $0x1f0] sm:$0xff] %vm1419, %v1418
      %1452 = vrot.lane.b32.xlu0 %v264, 80
      %v1453 = vpop.permute.xlu0 %1452
      %1454 = vrot.lane.b32.xlu0 %v265, 80
      %v1455 = vpop.permute.xlu0 %1454
      %1456 = vrot.lane.b32.xlu0 %v266, 80
      %v1457 = vpop.permute.xlu0 %1456
      %1458 = vrot.lane.b32.xlu0 %v267, 80
      %v1459 = vpop.permute.xlu0 %1458
      %1460 = vrot.lane.b32.xlu0 %v268, 80
      %v1461 = vpop.permute.xlu0 %1460
      %1462 = vrot.lane.b32.xlu0 %v269, 80
      %v1463 = vpop.permute.xlu0 %1462
      %1464 = vrot.lane.b32.xlu0 %v270, 80
      %v1465 = vpop.permute.xlu0 %1464
      %1466 = vrot.lane.b32.xlu0 %v271, 80
      %v1467 = vpop.permute.xlu0 %1466
      %1468 = vrot.lane.b32.xlu0 %v272, 80
      %v1469 = vpop.permute.xlu0 %1468
      %1470 = vrot.lane.b32.xlu0 %v273, 80
      %v1471 = vpop.permute.xlu0 %1470
      %1472 = vrot.lane.b32.xlu0 %v274, 80
      %v1473 = vpop.permute.xlu0 %1472
      %1474 = vrot.lane.b32.xlu0 %v275, 80
      %v1475 = vpop.permute.xlu0 %1474
      %1476 = vrot.lane.b32.xlu0 %v276, 80
      %v1477 = vpop.permute.xlu0 %1476
      %1478 = vrot.lane.b32.xlu0 %v277, 80
      %v1479 = vpop.permute.xlu0 %1478
      %1480 = vrot.lane.b32.xlu0 %v278, 80
      %v1481 = vpop.permute.xlu0 %1480
      %1482 = vrot.lane.b32.xlu0 %v279, 80
      %v1483 = vpop.permute.xlu0 %1482
      %1484 = vrot.lane.b32.xlu0 %v280, 80
      %v1485 = vpop.permute.xlu0 %1484
      %1486 = vrot.lane.b32.xlu0 %v281, 80
      %v1487 = vpop.permute.xlu0 %1486
      %1488 = vrot.lane.b32.xlu0 %v282, 80
      %v1489 = vpop.permute.xlu0 %1488
      %1490 = vrot.lane.b32.xlu0 %v283, 80
      %v1491 = vpop.permute.xlu0 %1490
      %1492 = vrot.lane.b32.xlu0 %v284, 80
      %v1493 = vpop.permute.xlu0 %1492
      %1494 = vrot.lane.b32.xlu0 %v285, 80
      %v1495 = vpop.permute.xlu0 %1494
      %1496 = vrot.lane.b32.xlu0 %v286, 80
      %v1497 = vpop.permute.xlu0 %1496
      %1498 = vrot.lane.b32.xlu0 %v287, 80
      %v1499 = vpop.permute.xlu0 %1498
      %1500 = vrot.lane.b32.xlu0 %v288, 80
      %v1501 = vpop.permute.xlu0 %1500
      %1502 = vrot.lane.b32.xlu0 %v289, 80
      %v1503 = vpop.permute.xlu0 %1502
      %1504 = vrot.lane.b32.xlu0 %v290, 80
      %v1505 = vpop.permute.xlu0 %1504
      %1506 = vrot.lane.b32.xlu0 %v291, 80
      %v1507 = vpop.permute.xlu0 %1506
      %1508 = vrot.lane.b32.xlu0 %v292, 80
      %v1509 = vpop.permute.xlu0 %1508
      %1510 = vrot.lane.b32.xlu0 %v293, 80
      %v1511 = vpop.permute.xlu0 %1510
      %1512 = vrot.lane.b32.xlu0 %v294, 80
      %v1513 = vpop.permute.xlu0 %1512
      %1514 = vrot.lane.b32.xlu0 %v295, 80
      %v1515 = vpop.permute.xlu0 %1514
      %v1548 = vmul.f32 %v1099, %v1453
      %v1549 = vmul.f32 %v1100, %v1455
      %v1550 = vmul.f32 %v1101, %v1457
      %v1551 = vmul.f32 %v1102, %v1459
      %v1552 = vmul.f32 %v1103, %v1461
      %v1553 = vmul.f32 %v1104, %v1463
      %v1554 = vmul.f32 %v1105, %v1465
      %v1555 = vmul.f32 %v1106, %v1467
      %v1556 = vmul.f32 %v1107, %v1469
      %v1557 = vmul.f32 %v1108, %v1471
      %v1558 = vmul.f32 %v1109, %v1473
      %v1559 = vmul.f32 %v1110, %v1475
      %v1560 = vmul.f32 %v1111, %v1477
      %v1561 = vmul.f32 %v1112, %v1479
      %v1562 = vmul.f32 %v1113, %v1481
      %v1563 = vmul.f32 %v1114, %v1483
      %v1564 = vmul.f32 %v1115, %v1485
      %v1565 = vmul.f32 %v1116, %v1487
      %v1566 = vmul.f32 %v1117, %v1489
      %v1567 = vmul.f32 %v1118, %v1491
      %v1568 = vmul.f32 %v1119, %v1493
      %v1569 = vmul.f32 %v1120, %v1495
      %v1570 = vmul.f32 %v1121, %v1497
      %v1571 = vmul.f32 %v1122, %v1499
      %v1572 = vmul.f32 %v1123, %v1501
      %v1573 = vmul.f32 %v1124, %v1503
      %v1574 = vmul.f32 %v1125, %v1505
      %v1575 = vmul.f32 %v1126, %v1507
      %v1576 = vmul.f32 %v1127, %v1509
      %v1577 = vmul.f32 %v1128, %v1511
      %v1578 = vmul.f32 %v1129, %v1513
      %v1579 = vmul.f32 %v1130, %v1515
      %1580 = vrot.lane.b32.xlu0 %v264, 48
      %v1581 = vpop.permute.xlu0 %1580
      %1582 = vrot.lane.b32.xlu0 %v265, 48
      %v1583 = vpop.permute.xlu0 %1582
      %1584 = vrot.lane.b32.xlu0 %v266, 48
      %v1585 = vpop.permute.xlu0 %1584
      %1586 = vrot.lane.b32.xlu0 %v267, 48
      %v1587 = vpop.permute.xlu0 %1586
      %1588 = vrot.lane.b32.xlu0 %v268, 48
      %v1589 = vpop.permute.xlu0 %1588
      %1590 = vrot.lane.b32.xlu0 %v269, 48
      %v1591 = vpop.permute.xlu0 %1590
      %1592 = vrot.lane.b32.xlu0 %v270, 48
      %v1593 = vpop.permute.xlu0 %1592
      %1594 = vrot.lane.b32.xlu0 %v271, 48
      %v1595 = vpop.permute.xlu0 %1594
      %1596 = vrot.lane.b32.xlu0 %v272, 48
      %v1597 = vpop.permute.xlu0 %1596
      %1598 = vrot.lane.b32.xlu0 %v273, 48
      %v1599 = vpop.permute.xlu0 %1598
      %1600 = vrot.lane.b32.xlu0 %v274, 48
      %v1601 = vpop.permute.xlu0 %1600
      %1602 = vrot.lane.b32.xlu0 %v275, 48
      %v1603 = vpop.permute.xlu0 %1602
      %1604 = vrot.lane.b32.xlu0 %v276, 48
      %v1605 = vpop.permute.xlu0 %1604
      %1606 = vrot.lane.b32.xlu0 %v277, 48
      %v1607 = vpop.permute.xlu0 %1606
      %1608 = vrot.lane.b32.xlu0 %v278, 48
      %v1609 = vpop.permute.xlu0 %1608
      %1610 = vrot.lane.b32.xlu0 %v279, 48
      %v1611 = vpop.permute.xlu0 %1610
      %1612 = vrot.lane.b32.xlu0 %v280, 48
      %v1613 = vpop.permute.xlu0 %1612
      %1614 = vrot.lane.b32.xlu0 %v281, 48
      %v1615 = vpop.permute.xlu0 %1614
      %1616 = vrot.lane.b32.xlu0 %v282, 48
      %v1617 = vpop.permute.xlu0 %1616
      %1618 = vrot.lane.b32.xlu0 %v283, 48
      %v1619 = vpop.permute.xlu0 %1618
      %1620 = vrot.lane.b32.xlu0 %v284, 48
      %v1621 = vpop.permute.xlu0 %1620
      %1622 = vrot.lane.b32.xlu0 %v285, 48
      %v1623 = vpop.permute.xlu0 %1622
      %1624 = vrot.lane.b32.xlu0 %v286, 48
      %v1625 = vpop.permute.xlu0 %1624
      %1626 = vrot.lane.b32.xlu0 %v287, 48
      %v1627 = vpop.permute.xlu0 %1626
      %1628 = vrot.lane.b32.xlu0 %v288, 48
      %v1629 = vpop.permute.xlu0 %1628
      %1630 = vrot.lane.b32.xlu0 %v289, 48
      %v1631 = vpop.permute.xlu0 %1630
      %1632 = vrot.lane.b32.xlu0 %v290, 48
      %v1633 = vpop.permute.xlu0 %1632
      %1634 = vrot.lane.b32.xlu0 %v291, 48
      %v1635 = vpop.permute.xlu0 %1634
      %1636 = vrot.lane.b32.xlu0 %v292, 48
      %v1637 = vpop.permute.xlu0 %1636
      %1638 = vrot.lane.b32.xlu0 %v293, 48
      %v1639 = vpop.permute.xlu0 %1638
      %1640 = vrot.lane.b32.xlu0 %v294, 48
      %v1641 = vpop.permute.xlu0 %1640
      %1642 = vrot.lane.b32.xlu0 %v295, 48
      %v1643 = vpop.permute.xlu0 %1642
      %v1676 = vmul.f32 %v1099, %v1581
      %v1677 = vmul.f32 %v1100, %v1583
      %v1678 = vmul.f32 %v1101, %v1585
      %v1679 = vmul.f32 %v1102, %v1587
      %v1680 = vmul.f32 %v1103, %v1589
      %v1681 = vmul.f32 %v1104, %v1591
      %v1682 = vmul.f32 %v1105, %v1593
      %v1683 = vmul.f32 %v1106, %v1595
      %v1684 = vmul.f32 %v1107, %v1597
      %v1685 = vmul.f32 %v1108, %v1599
      %v1686 = vmul.f32 %v1109, %v1601
      %v1687 = vmul.f32 %v1110, %v1603
      %v1688 = vmul.f32 %v1111, %v1605
      %v1689 = vmul.f32 %v1112, %v1607
      %v1690 = vmul.f32 %v1113, %v1609
      %v1691 = vmul.f32 %v1114, %v1611
      %v1692 = vmul.f32 %v1115, %v1613
      %v1693 = vmul.f32 %v1116, %v1615
      %v1694 = vmul.f32 %v1117, %v1617
      %v1695 = vmul.f32 %v1118, %v1619
      %v1696 = vmul.f32 %v1119, %v1621
      %v1697 = vmul.f32 %v1120, %v1623
      %v1698 = vmul.f32 %v1121, %v1625
      %v1699 = vmul.f32 %v1122, %v1627
      %v1700 = vmul.f32 %v1123, %v1629
      %v1701 = vmul.f32 %v1124, %v1631
      %v1702 = vmul.f32 %v1125, %v1633
      %v1703 = vmul.f32 %v1126, %v1635
      %v1704 = vmul.f32 %v1127, %v1637
      %v1705 = vmul.f32 %v1128, %v1639
      %v1706 = vmul.f32 %v1129, %v1641
      %v1707 = vmul.f32 %v1130, %v1643
      %1740 = vrot.lane.b32.xlu0 %v1676, 16
      %v1741 = vpop.permute.xlu0 %1740
      %1742 = vrot.lane.b32.xlu0 %v1677, 16
      %v1743 = vpop.permute.xlu0 %1742
      %1744 = vrot.lane.b32.xlu0 %v1678, 16
      %v1745 = vpop.permute.xlu0 %1744
      %1746 = vrot.lane.b32.xlu0 %v1679, 16
      %v1747 = vpop.permute.xlu0 %1746
      %1748 = vrot.lane.b32.xlu0 %v1680, 16
      %v1749 = vpop.permute.xlu0 %1748
      %1750 = vrot.lane.b32.xlu0 %v1681, 16
      %v1751 = vpop.permute.xlu0 %1750
      %1752 = vrot.lane.b32.xlu0 %v1682, 16
      %v1753 = vpop.permute.xlu0 %1752
      %1754 = vrot.lane.b32.xlu0 %v1683, 16
      %v1755 = vpop.permute.xlu0 %1754
      %1756 = vrot.lane.b32.xlu0 %v1684, 16
      %v1757 = vpop.permute.xlu0 %1756
      %1758 = vrot.lane.b32.xlu0 %v1685, 16
      %v1759 = vpop.permute.xlu0 %1758
      %1760 = vrot.lane.b32.xlu0 %v1686, 16
      %v1761 = vpop.permute.xlu0 %1760
      %1762 = vrot.lane.b32.xlu0 %v1687, 16
      %v1763 = vpop.permute.xlu0 %1762
      %1764 = vrot.lane.b32.xlu0 %v1688, 16
      %v1765 = vpop.permute.xlu0 %1764
      %1766 = vrot.lane.b32.xlu0 %v1689, 16
      %v1767 = vpop.permute.xlu0 %1766
      %1768 = vrot.lane.b32.xlu0 %v1690, 16
      %v1769 = vpop.permute.xlu0 %1768
      %1770 = vrot.lane.b32.xlu0 %v1691, 16
      %v1771 = vpop.permute.xlu0 %1770
      %1772 = vrot.lane.b32.xlu0 %v1692, 16
      %v1773 = vpop.permute.xlu0 %1772
      %1774 = vrot.lane.b32.xlu0 %v1693, 16
      %v1775 = vpop.permute.xlu0 %1774
      %1776 = vrot.lane.b32.xlu0 %v1694, 16
      %v1777 = vpop.permute.xlu0 %1776
      %1778 = vrot.lane.b32.xlu0 %v1695, 16
      %v1779 = vpop.permute.xlu0 %1778
      %1780 = vrot.lane.b32.xlu0 %v1696, 16
      %v1781 = vpop.permute.xlu0 %1780
      %1782 = vrot.lane.b32.xlu0 %v1697, 16
      %v1783 = vpop.permute.xlu0 %1782
      %1784 = vrot.lane.b32.xlu0 %v1698, 16
      %v1785 = vpop.permute.xlu0 %1784
      %1786 = vrot.lane.b32.xlu0 %v1699, 16
      %v1787 = vpop.permute.xlu0 %1786
      %1788 = vrot.lane.b32.xlu0 %v1700, 16
      %v1789 = vpop.permute.xlu0 %1788
      %1790 = vrot.lane.b32.xlu0 %v1701, 16
      %v1791 = vpop.permute.xlu0 %1790
      %1792 = vrot.lane.b32.xlu0 %v1702, 16
      %v1793 = vpop.permute.xlu0 %1792
      %1794 = vrot.lane.b32.xlu0 %v1703, 16
      %v1795 = vpop.permute.xlu0 %1794
      %1796 = vrot.lane.b32.xlu0 %v1704, 16
      %v1797 = vpop.permute.xlu0 %1796
      %1798 = vrot.lane.b32.xlu0 %v1705, 16
      %v1799 = vpop.permute.xlu0 %1798
      %1800 = vrot.lane.b32.xlu0 %v1706, 16
      %v1801 = vpop.permute.xlu0 %1800
      %1802 = vrot.lane.b32.xlu0 %v1707, 16
      %v1803 = vpop.permute.xlu0 %1802
      %v1836 = vadd.f32 %v1548, %v1741
      %v1837 = vadd.f32 %v1549, %v1743
      %v1838 = vadd.f32 %v1550, %v1745
      %v1839 = vadd.f32 %v1551, %v1747
      %v1840 = vadd.f32 %v1552, %v1749
      %v1841 = vadd.f32 %v1553, %v1751
      %v1842 = vadd.f32 %v1554, %v1753
      %v1843 = vadd.f32 %v1555, %v1755
      %v1844 = vadd.f32 %v1556, %v1757
      %v1845 = vadd.f32 %v1557, %v1759
      %v1846 = vadd.f32 %v1558, %v1761
      %v1847 = vadd.f32 %v1559, %v1763
      %v1848 = vadd.f32 %v1560, %v1765
      %v1849 = vadd.f32 %v1561, %v1767
      %v1850 = vadd.f32 %v1562, %v1769
      %v1851 = vadd.f32 %v1563, %v1771
      %v1852 = vadd.f32 %v1564, %v1773
      %v1853 = vadd.f32 %v1565, %v1775
      %v1854 = vadd.f32 %v1566, %v1777
      %v1855 = vadd.f32 %v1567, %v1779
      %v1856 = vadd.f32 %v1568, %v1781
      %v1857 = vadd.f32 %v1569, %v1783
      %v1858 = vadd.f32 %v1570, %v1785
      %v1859 = vadd.f32 %v1571, %v1787
      %v1860 = vadd.f32 %v1572, %v1789
      %v1861 = vadd.f32 %v1573, %v1791
      %v1862 = vadd.f32 %v1574, %v1793
      %v1863 = vadd.f32 %v1575, %v1795
      %v1864 = vadd.f32 %v1576, %v1797
      %v1865 = vadd.f32 %v1577, %v1799
      %v1866 = vadd.f32 %v1578, %v1801
      %v1867 = vadd.f32 %v1579, %v1803
      %vm1868 = vcmask 786048
      %1869 = vst.msk [vmem:[%s256] sm:$0xff] %vm1868, %v1836
      %1870 = vst.msk [vmem:[%s256 + $0x10] sm:$0xff] %vm1868, %v1837
      %1871 = vst.msk [vmem:[%s256 + $0x20] sm:$0xff] %vm1868, %v1838
      %1872 = vst.msk [vmem:[%s256 + $0x30] sm:$0xff] %vm1868, %v1839
      %1873 = vst.msk [vmem:[%s256 + $0x40] sm:$0xff] %vm1868, %v1840
      %1874 = vst.msk [vmem:[%s256 + $0x50] sm:$0xff] %vm1868, %v1841
      %1875 = vst.msk [vmem:[%s256 + $0x60] sm:$0xff] %vm1868, %v1842
      %1876 = vst.msk [vmem:[%s256 + $0x70] sm:$0xff] %vm1868, %v1843
      %1877 = vst.msk [vmem:[%s256 + $0x80] sm:$0xff] %vm1868, %v1844
      %1878 = vst.msk [vmem:[%s256 + $0x90] sm:$0xff] %vm1868, %v1845
      %1879 = vst.msk [vmem:[%s256 + $0xa0] sm:$0xff] %vm1868, %v1846
      %1880 = vst.msk [vmem:[%s256 + $0xb0] sm:$0xff] %vm1868, %v1847
      %1881 = vst.msk [vmem:[%s256 + $0xc0] sm:$0xff] %vm1868, %v1848
      %1882 = vst.msk [vmem:[%s256 + $0xd0] sm:$0xff] %vm1868, %v1849
      %1883 = vst.msk [vmem:[%s256 + $0xe0] sm:$0xff] %vm1868, %v1850
      %1884 = vst.msk [vmem:[%s256 + $0xf0] sm:$0xff] %vm1868, %v1851
      %1885 = vst.msk [vmem:[%s256 + $0x100] sm:$0xff] %vm1868, %v1852
      %1886 = vst.msk [vmem:[%s256 + $0x110] sm:$0xff] %vm1868, %v1853
      %1887 = vst.msk [vmem:[%s256 + $0x120] sm:$0xff] %vm1868, %v1854
      %1888 = vst.msk [vmem:[%s256 + $0x130] sm:$0xff] %vm1868, %v1855
      %1889 = vst.msk [vmem:[%s256 + $0x140] sm:$0xff] %vm1868, %v1856
      %1890 = vst.msk [vmem:[%s256 + $0x150] sm:$0xff] %vm1868, %v1857
      %1891 = vst.msk [vmem:[%s256 + $0x160] sm:$0xff] %vm1868, %v1858
      %1892 = vst.msk [vmem:[%s256 + $0x170] sm:$0xff] %vm1868, %v1859
      %1893 = vst.msk [vmem:[%s256 + $0x180] sm:$0xff] %vm1868, %v1860
      %1894 = vst.msk [vmem:[%s256 + $0x190] sm:$0xff] %vm1868, %v1861
      %1895 = vst.msk [vmem:[%s256 + $0x1a0] sm:$0xff] %vm1868, %v1862
      %1896 = vst.msk [vmem:[%s256 + $0x1b0] sm:$0xff] %vm1868, %v1863
      %1897 = vst.msk [vmem:[%s256 + $0x1c0] sm:$0xff] %vm1868, %v1864
      %1898 = vst.msk [vmem:[%s256 + $0x1d0] sm:$0xff] %vm1868, %v1865
      %1899 = vst.msk [vmem:[%s256 + $0x1e0] sm:$0xff] %vm1868, %v1866
      %1900 = vst.msk [vmem:[%s256 + $0x1f0] sm:$0xff] %vm1868, %v1867
      %v1901 = vld [vmem:[%s237] sm:$0xff]
      %v1902 = vld [vmem:[%s237 + $0x10] sm:$0xff]
      %v1903 = vld [vmem:[%s237 + $0x20] sm:$0xff]
      %v1904 = vld [vmem:[%s237 + $0x30] sm:$0xff]
      %v1905 = vld [vmem:[%s237 + $0x40] sm:$0xff]
      %v1906 = vld [vmem:[%s237 + $0x50] sm:$0xff]
      %v1907 = vld [vmem:[%s237 + $0x60] sm:$0xff]
      %v1908 = vld [vmem:[%s237 + $0x70] sm:$0xff]
      %v1909 = vld [vmem:[%s237 + $0x80] sm:$0xff]
      %v1910 = vld [vmem:[%s237 + $0x90] sm:$0xff]
      %v1911 = vld [vmem:[%s237 + $0xa0] sm:$0xff]
      %v1912 = vld [vmem:[%s237 + $0xb0] sm:$0xff]
      %v1913 = vld [vmem:[%s237 + $0xc0] sm:$0xff]
      %v1914 = vld [vmem:[%s237 + $0xd0] sm:$0xff]
      %v1915 = vld [vmem:[%s237 + $0xe0] sm:$0xff]
      %v1916 = vld [vmem:[%s237 + $0xf0] sm:$0xff]
      %v1917 = vld [vmem:[%s237 + $0x100] sm:$0xff]
      %v1918 = vld [vmem:[%s237 + $0x110] sm:$0xff]
      %v1919 = vld [vmem:[%s237 + $0x120] sm:$0xff]
      %v1920 = vld [vmem:[%s237 + $0x130] sm:$0xff]
      %v1921 = vld [vmem:[%s237 + $0x140] sm:$0xff]
      %v1922 = vld [vmem:[%s237 + $0x150] sm:$0xff]
      %v1923 = vld [vmem:[%s237 + $0x160] sm:$0xff]
      %v1924 = vld [vmem:[%s237 + $0x170] sm:$0xff]
      %v1925 = vld [vmem:[%s237 + $0x180] sm:$0xff]
      %v1926 = vld [vmem:[%s237 + $0x190] sm:$0xff]
      %v1927 = vld [vmem:[%s237 + $0x1a0] sm:$0xff]
      %v1928 = vld [vmem:[%s237 + $0x1b0] sm:$0xff]
      %v1929 = vld [vmem:[%s237 + $0x1c0] sm:$0xff]
      %v1930 = vld [vmem:[%s237 + $0x1d0] sm:$0xff]
      %v1931 = vld [vmem:[%s237 + $0x1e0] sm:$0xff]
      %v1932 = vld [vmem:[%s237 + $0x1f0] sm:$0xff]
      %vm1933 = vcmask 1048320
      %1934 = vst.msk [vmem:[%s256] sm:$0xff] %vm1933, %v1901
      %1935 = vst.msk [vmem:[%s256 + $0x10] sm:$0xff] %vm1933, %v1902
      %1936 = vst.msk [vmem:[%s256 + $0x20] sm:$0xff] %vm1933, %v1903
      %1937 = vst.msk [vmem:[%s256 + $0x30] sm:$0xff] %vm1933, %v1904
      %1938 = vst.msk [vmem:[%s256 + $0x40] sm:$0xff] %vm1933, %v1905
      %1939 = vst.msk [vmem:[%s256 + $0x50] sm:$0xff] %vm1933, %v1906
      %1940 = vst.msk [vmem:[%s256 + $0x60] sm:$0xff] %vm1933, %v1907
      %1941 = vst.msk [vmem:[%s256 + $0x70] sm:$0xff] %vm1933, %v1908
      %1942 = vst.msk [vmem:[%s256 + $0x80] sm:$0xff] %vm1933, %v1909
      %1943 = vst.msk [vmem:[%s256 + $0x90] sm:$0xff] %vm1933, %v1910
      %1944 = vst.msk [vmem:[%s256 + $0xa0] sm:$0xff] %vm1933, %v1911
      %1945 = vst.msk [vmem:[%s256 + $0xb0] sm:$0xff] %vm1933, %v1912
      %1946 = vst.msk [vmem:[%s256 + $0xc0] sm:$0xff] %vm1933, %v1913
      %1947 = vst.msk [vmem:[%s256 + $0xd0] sm:$0xff] %vm1933, %v1914
      %1948 = vst.msk [vmem:[%s256 + $0xe0] sm:$0xff] %vm1933, %v1915
      %1949 = vst.msk [vmem:[%s256 + $0xf0] sm:$0xff] %vm1933, %v1916
      %1950 = vst.msk [vmem:[%s256 + $0x100] sm:$0xff] %vm1933, %v1917
      %1951 = vst.msk [vmem:[%s256 + $0x110] sm:$0xff] %vm1933, %v1918
      %1952 = vst.msk [vmem:[%s256 + $0x120] sm:$0xff] %vm1933, %v1919
      %1953 = vst.msk [vmem:[%s256 + $0x130] sm:$0xff] %vm1933, %v1920
      %1954 = vst.msk [vmem:[%s256 + $0x140] sm:$0xff] %vm1933, %v1921
      %1955 = vst.msk [vmem:[%s256 + $0x150] sm:$0xff] %vm1933, %v1922
      %1956 = vst.msk [vmem:[%s256 + $0x160] sm:$0xff] %vm1933, %v1923
      %1957 = vst.msk [vmem:[%s256 + $0x170] sm:$0xff] %vm1933, %v1924
      %1958 = vst.msk [vmem:[%s256 + $0x180] sm:$0xff] %vm1933, %v1925
      %1959 = vst.msk [vmem:[%s256 + $0x190] sm:$0xff] %vm1933, %v1926
      %1960 = vst.msk [vmem:[%s256 + $0x1a0] sm:$0xff] %vm1933, %v1927
      %1961 = vst.msk [vmem:[%s256 + $0x1b0] sm:$0xff] %vm1933, %v1928
      %1962 = vst.msk [vmem:[%s256 + $0x1c0] sm:$0xff] %vm1933, %v1929
      %1963 = vst.msk [vmem:[%s256 + $0x1d0] sm:$0xff] %vm1933, %v1930
      %1964 = vst.msk [vmem:[%s256 + $0x1e0] sm:$0xff] %vm1933, %v1931
      %1965 = vst.msk [vmem:[%s256 + $0x1f0] sm:$0xff] %vm1933, %v1932
      %v1966 = vld [vmem:[%s237 + $0x8] sm:$0xff]
      %v1967 = vld [vmem:[%s237 + $0x18] sm:$0xff]
      %v1968 = vld [vmem:[%s237 + $0x28] sm:$0xff]
      %v1969 = vld [vmem:[%s237 + $0x38] sm:$0xff]
      %v1970 = vld [vmem:[%s237 + $0x48] sm:$0xff]
      %v1971 = vld [vmem:[%s237 + $0x58] sm:$0xff]
      %v1972 = vld [vmem:[%s237 + $0x68] sm:$0xff]
      %v1973 = vld [vmem:[%s237 + $0x78] sm:$0xff]
      %v1974 = vld [vmem:[%s237 + $0x88] sm:$0xff]
      %v1975 = vld [vmem:[%s237 + $0x98] sm:$0xff]
      %v1976 = vld [vmem:[%s237 + $0xa8] sm:$0xff]
      %v1977 = vld [vmem:[%s237 + $0xb8] sm:$0xff]
      %v1978 = vld [vmem:[%s237 + $0xc8] sm:$0xff]
      %v1979 = vld [vmem:[%s237 + $0xd8] sm:$0xff]
      %v1980 = vld [vmem:[%s237 + $0xe8] sm:$0xff]
      %v1981 = vld [vmem:[%s237 + $0xf8] sm:$0xff]
      %v1982 = vld [vmem:[%s237 + $0x108] sm:$0xff]
      %v1983 = vld [vmem:[%s237 + $0x118] sm:$0xff]
      %v1984 = vld [vmem:[%s237 + $0x128] sm:$0xff]
      %v1985 = vld [vmem:[%s237 + $0x138] sm:$0xff]
      %v1986 = vld [vmem:[%s237 + $0x148] sm:$0xff]
      %v1987 = vld [vmem:[%s237 + $0x158] sm:$0xff]
      %v1988 = vld [vmem:[%s237 + $0x168] sm:$0xff]
      %v1989 = vld [vmem:[%s237 + $0x178] sm:$0xff]
      %v1990 = vld [vmem:[%s237 + $0x188] sm:$0xff]
      %v1991 = vld [vmem:[%s237 + $0x198] sm:$0xff]
      %v1992 = vld [vmem:[%s237 + $0x1a8] sm:$0xff]
      %v1993 = vld [vmem:[%s237 + $0x1b8] sm:$0xff]
      %v1994 = vld [vmem:[%s237 + $0x1c8] sm:$0xff]
      %v1995 = vld [vmem:[%s237 + $0x1d8] sm:$0xff]
      %v1996 = vld [vmem:[%s237 + $0x1e8] sm:$0xff]
      %v1997 = vld [vmem:[%s237 + $0x1f8] sm:$0xff]
      %v1998 = vmul.f32 %v1966, %v264
      %v1999 = vmul.f32 %v1967, %v265
      %v2000 = vmul.f32 %v1968, %v266
      %v2001 = vmul.f32 %v1969, %v267
      %v2002 = vmul.f32 %v1970, %v268
      %v2003 = vmul.f32 %v1971, %v269
      %v2004 = vmul.f32 %v1972, %v270
      %v2005 = vmul.f32 %v1973, %v271
      %v2006 = vmul.f32 %v1974, %v272
      %v2007 = vmul.f32 %v1975, %v273
      %v2008 = vmul.f32 %v1976, %v274
      %v2009 = vmul.f32 %v1977, %v275
      %v2010 = vmul.f32 %v1978, %v276
      %v2011 = vmul.f32 %v1979, %v277
      %v2012 = vmul.f32 %v1980, %v278
      %v2013 = vmul.f32 %v1981, %v279
      %v2014 = vmul.f32 %v1982, %v280
      %v2015 = vmul.f32 %v1983, %v281
      %v2016 = vmul.f32 %v1984, %v282
      %v2017 = vmul.f32 %v1985, %v283
      %v2018 = vmul.f32 %v1986, %v284
      %v2019 = vmul.f32 %v1987, %v285
      %v2020 = vmul.f32 %v1988, %v286
      %v2021 = vmul.f32 %v1989, %v287
      %v2022 = vmul.f32 %v1990, %v288
      %v2023 = vmul.f32 %v1991, %v289
      %v2024 = vmul.f32 %v1992, %v290
      %v2025 = vmul.f32 %v1993, %v291
      %v2026 = vmul.f32 %v1994, %v292
      %v2027 = vmul.f32 %v1995, %v293
      %v2028 = vmul.f32 %v1996, %v294
      %v2029 = vmul.f32 %v1997, %v295
      %2062 = vrot.lane.b32.xlu0 %v1998, 112
      %v2063 = vpop.permute.xlu0 %2062
      %2064 = vrot.lane.b32.xlu0 %v1999, 112
      %v2065 = vpop.permute.xlu0 %2064
      %2066 = vrot.lane.b32.xlu0 %v2000, 112
      %v2067 = vpop.permute.xlu0 %2066
      %2068 = vrot.lane.b32.xlu0 %v2001, 112
      %v2069 = vpop.permute.xlu0 %2068
      %2070 = vrot.lane.b32.xlu0 %v2002, 112
      %v2071 = vpop.permute.xlu0 %2070
      %2072 = vrot.lane.b32.xlu0 %v2003, 112
      %v2073 = vpop.permute.xlu0 %2072
      %2074 = vrot.lane.b32.xlu0 %v2004, 112
      %v2075 = vpop.permute.xlu0 %2074
      %2076 = vrot.lane.b32.xlu0 %v2005, 112
      %v2077 = vpop.permute.xlu0 %2076
      %2078 = vrot.lane.b32.xlu0 %v2006, 112
      %v2079 = vpop.permute.xlu0 %2078
      %2080 = vrot.lane.b32.xlu0 %v2007, 112
      %v2081 = vpop.permute.xlu0 %2080
      %2082 = vrot.lane.b32.xlu0 %v2008, 112
      %v2083 = vpop.permute.xlu0 %2082
      %2084 = vrot.lane.b32.xlu0 %v2009, 112
      %v2085 = vpop.permute.xlu0 %2084
      %2086 = vrot.lane.b32.xlu0 %v2010, 112
      %v2087 = vpop.permute.xlu0 %2086
      %2088 = vrot.lane.b32.xlu0 %v2011, 112
      %v2089 = vpop.permute.xlu0 %2088
      %2090 = vrot.lane.b32.xlu0 %v2012, 112
      %v2091 = vpop.permute.xlu0 %2090
      %2092 = vrot.lane.b32.xlu0 %v2013, 112
      %v2093 = vpop.permute.xlu0 %2092
      %2094 = vrot.lane.b32.xlu0 %v2014, 112
      %v2095 = vpop.permute.xlu0 %2094
      %2096 = vrot.lane.b32.xlu0 %v2015, 112
      %v2097 = vpop.permute.xlu0 %2096
      %2098 = vrot.lane.b32.xlu0 %v2016, 112
      %v2099 = vpop.permute.xlu0 %2098
      %2100 = vrot.lane.b32.xlu0 %v2017, 112
      %v2101 = vpop.permute.xlu0 %2100
      %2102 = vrot.lane.b32.xlu0 %v2018, 112
      %v2103 = vpop.permute.xlu0 %2102
      %2104 = vrot.lane.b32.xlu0 %v2019, 112
      %v2105 = vpop.permute.xlu0 %2104
      %2106 = vrot.lane.b32.xlu0 %v2020, 112
      %v2107 = vpop.permute.xlu0 %2106
      %2108 = vrot.lane.b32.xlu0 %v2021, 112
      %v2109 = vpop.permute.xlu0 %2108
      %2110 = vrot.lane.b32.xlu0 %v2022, 112
      %v2111 = vpop.permute.xlu0 %2110
      %2112 = vrot.lane.b32.xlu0 %v2023, 112
      %v2113 = vpop.permute.xlu0 %2112
      %2114 = vrot.lane.b32.xlu0 %v2024, 112
      %v2115 = vpop.permute.xlu0 %2114
      %2116 = vrot.lane.b32.xlu0 %v2025, 112
      %v2117 = vpop.permute.xlu0 %2116
      %2118 = vrot.lane.b32.xlu0 %v2026, 112
      %v2119 = vpop.permute.xlu0 %2118
      %2120 = vrot.lane.b32.xlu0 %v2027, 112
      %v2121 = vpop.permute.xlu0 %2120
      %2122 = vrot.lane.b32.xlu0 %v2028, 112
      %v2123 = vpop.permute.xlu0 %2122
      %2124 = vrot.lane.b32.xlu0 %v2029, 112
      %v2125 = vpop.permute.xlu0 %2124
      %v2158 = vsub.f32 %v1998, %v2063
      %v2159 = vsub.f32 %v1999, %v2065
      %v2160 = vsub.f32 %v2000, %v2067
      %v2161 = vsub.f32 %v2001, %v2069
      %v2162 = vsub.f32 %v2002, %v2071
      %v2163 = vsub.f32 %v2003, %v2073
      %v2164 = vsub.f32 %v2004, %v2075
      %v2165 = vsub.f32 %v2005, %v2077
      %v2166 = vsub.f32 %v2006, %v2079
      %v2167 = vsub.f32 %v2007, %v2081
      %v2168 = vsub.f32 %v2008, %v2083
      %v2169 = vsub.f32 %v2009, %v2085
      %v2170 = vsub.f32 %v2010, %v2087
      %v2171 = vsub.f32 %v2011, %v2089
      %v2172 = vsub.f32 %v2012, %v2091
      %v2173 = vsub.f32 %v2013, %v2093
      %v2174 = vsub.f32 %v2014, %v2095
      %v2175 = vsub.f32 %v2015, %v2097
      %v2176 = vsub.f32 %v2016, %v2099
      %v2177 = vsub.f32 %v2017, %v2101
      %v2178 = vsub.f32 %v2018, %v2103
      %v2179 = vsub.f32 %v2019, %v2105
      %v2180 = vsub.f32 %v2020, %v2107
      %v2181 = vsub.f32 %v2021, %v2109
      %v2182 = vsub.f32 %v2022, %v2111
      %v2183 = vsub.f32 %v2023, %v2113
      %v2184 = vsub.f32 %v2024, %v2115
      %v2185 = vsub.f32 %v2025, %v2117
      %v2186 = vsub.f32 %v2026, %v2119
      %v2187 = vsub.f32 %v2027, %v2121
      %v2188 = vsub.f32 %v2028, %v2123
      %v2189 = vsub.f32 %v2029, %v2125
      %2190 = vst.msk [vmem:[%s256 + $0x8] sm:$0xff] %vm520, %v2158
      %2191 = vst.msk [vmem:[%s256 + $0x18] sm:$0xff] %vm520, %v2159
      %2192 = vst.msk [vmem:[%s256 + $0x28] sm:$0xff] %vm520, %v2160
      %2193 = vst.msk [vmem:[%s256 + $0x38] sm:$0xff] %vm520, %v2161
      %2194 = vst.msk [vmem:[%s256 + $0x48] sm:$0xff] %vm520, %v2162
      %2195 = vst.msk [vmem:[%s256 + $0x58] sm:$0xff] %vm520, %v2163
      %2196 = vst.msk [vmem:[%s256 + $0x68] sm:$0xff] %vm520, %v2164
      %2197 = vst.msk [vmem:[%s256 + $0x78] sm:$0xff] %vm520, %v2165
      %2198 = vst.msk [vmem:[%s256 + $0x88] sm:$0xff] %vm520, %v2166
      %2199 = vst.msk [vmem:[%s256 + $0x98] sm:$0xff] %vm520, %v2167
      %2200 = vst.msk [vmem:[%s256 + $0xa8] sm:$0xff] %vm520, %v2168
      %2201 = vst.msk [vmem:[%s256 + $0xb8] sm:$0xff] %vm520, %v2169
      %2202 = vst.msk [vmem:[%s256 + $0xc8] sm:$0xff] %vm520, %v2170
      %2203 = vst.msk [vmem:[%s256 + $0xd8] sm:$0xff] %vm520, %v2171
      %2204 = vst.msk [vmem:[%s256 + $0xe8] sm:$0xff] %vm520, %v2172
      %2205 = vst.msk [vmem:[%s256 + $0xf8] sm:$0xff] %vm520, %v2173
      %2206 = vst.msk [vmem:[%s256 + $0x108] sm:$0xff] %vm520, %v2174
      %2207 = vst.msk [vmem:[%s256 + $0x118] sm:$0xff] %vm520, %v2175
      %2208 = vst.msk [vmem:[%s256 + $0x128] sm:$0xff] %vm520, %v2176
      %2209 = vst.msk [vmem:[%s256 + $0x138] sm:$0xff] %vm520, %v2177
      %2210 = vst.msk [vmem:[%s256 + $0x148] sm:$0xff] %vm520, %v2178
      %2211 = vst.msk [vmem:[%s256 + $0x158] sm:$0xff] %vm520, %v2179
      %2212 = vst.msk [vmem:[%s256 + $0x168] sm:$0xff] %vm520, %v2180
      %2213 = vst.msk [vmem:[%s256 + $0x178] sm:$0xff] %vm520, %v2181
      %2214 = vst.msk [vmem:[%s256 + $0x188] sm:$0xff] %vm520, %v2182
      %2215 = vst.msk [vmem:[%s256 + $0x198] sm:$0xff] %vm520, %v2183
      %2216 = vst.msk [vmem:[%s256 + $0x1a8] sm:$0xff] %vm520, %v2184
      %2217 = vst.msk [vmem:[%s256 + $0x1b8] sm:$0xff] %vm520, %v2185
      %2218 = vst.msk [vmem:[%s256 + $0x1c8] sm:$0xff] %vm520, %v2186
      %2219 = vst.msk [vmem:[%s256 + $0x1d8] sm:$0xff] %vm520, %v2187
      %2220 = vst.msk [vmem:[%s256 + $0x1e8] sm:$0xff] %vm520, %v2188
      %2221 = vst.msk [vmem:[%s256 + $0x1f8] sm:$0xff] %vm520, %v2189
      %v2222 = vmul.f32 %v1966, %v586
      %v2223 = vmul.f32 %v1967, %v588
      %v2224 = vmul.f32 %v1968, %v590
      %v2225 = vmul.f32 %v1969, %v592
      %v2226 = vmul.f32 %v1970, %v594
      %v2227 = vmul.f32 %v1971, %v596
      %v2228 = vmul.f32 %v1972, %v598
      %v2229 = vmul.f32 %v1973, %v600
      %v2230 = vmul.f32 %v1974, %v602
      %v2231 = vmul.f32 %v1975, %v604
      %v2232 = vmul.f32 %v1976, %v606
      %v2233 = vmul.f32 %v1977, %v608
      %v2234 = vmul.f32 %v1978, %v610
      %v2235 = vmul.f32 %v1979, %v612
      %v2236 = vmul.f32 %v1980, %v614
      %v2237 = vmul.f32 %v1981, %v616
      %v2238 = vmul.f32 %v1982, %v618
      %v2239 = vmul.f32 %v1983, %v620
      %v2240 = vmul.f32 %v1984, %v622
      %v2241 = vmul.f32 %v1985, %v624
      %v2242 = vmul.f32 %v1986, %v626
      %v2243 = vmul.f32 %v1987, %v628
      %v2244 = vmul.f32 %v1988, %v630
      %v2245 = vmul.f32 %v1989, %v632
      %v2246 = vmul.f32 %v1990, %v634
      %v2247 = vmul.f32 %v1991, %v636
      %v2248 = vmul.f32 %v1992, %v638
      %v2249 = vmul.f32 %v1993, %v640
      %v2250 = vmul.f32 %v1994, %v642
      %v2251 = vmul.f32 %v1995, %v644
      %v2252 = vmul.f32 %v1996, %v646
      %v2253 = vmul.f32 %v1997, %v648
      %v2254 = vmul.f32 %v1966, %v714
      %v2255 = vmul.f32 %v1967, %v716
      %v2256 = vmul.f32 %v1968, %v718
      %v2257 = vmul.f32 %v1969, %v720
      %v2258 = vmul.f32 %v1970, %v722
      %v2259 = vmul.f32 %v1971, %v724
      %v2260 = vmul.f32 %v1972, %v726
      %v2261 = vmul.f32 %v1973, %v728
      %v2262 = vmul.f32 %v1974, %v730
      %v2263 = vmul.f32 %v1975, %v732
      %v2264 = vmul.f32 %v1976, %v734
      %v2265 = vmul.f32 %v1977, %v736
      %v2266 = vmul.f32 %v1978, %v738
      %v2267 = vmul.f32 %v1979, %v740
      %v2268 = vmul.f32 %v1980, %v742
      %v2269 = vmul.f32 %v1981, %v744
      %v2270 = vmul.f32 %v1982, %v746
      %v2271 = vmul.f32 %v1983, %v748
      %v2272 = vmul.f32 %v1984, %v750
      %v2273 = vmul.f32 %v1985, %v752
      %v2274 = vmul.f32 %v1986, %v754
      %v2275 = vmul.f32 %v1987, %v756
      %v2276 = vmul.f32 %v1988, %v758
      %v2277 = vmul.f32 %v1989, %v760
      %v2278 = vmul.f32 %v1990, %v762
      %v2279 = vmul.f32 %v1991, %v764
      %v2280 = vmul.f32 %v1992, %v766
      %v2281 = vmul.f32 %v1993, %v768
      %v2282 = vmul.f32 %v1994, %v770
      %v2283 = vmul.f32 %v1995, %v772
      %v2284 = vmul.f32 %v1996, %v774
      %v2285 = vmul.f32 %v1997, %v776
      %2318 = vrot.lane.b32.xlu0 %v2254, 16
      %v2319 = vpop.permute.xlu0 %2318
      %2320 = vrot.lane.b32.xlu0 %v2255, 16
      %v2321 = vpop.permute.xlu0 %2320
      %2322 = vrot.lane.b32.xlu0 %v2256, 16
      %v2323 = vpop.permute.xlu0 %2322
      %2324 = vrot.lane.b32.xlu0 %v2257, 16
      %v2325 = vpop.permute.xlu0 %2324
      %2326 = vrot.lane.b32.xlu0 %v2258, 16
      %v2327 = vpop.permute.xlu0 %2326
      %2328 = vrot.lane.b32.xlu0 %v2259, 16
      %v2329 = vpop.permute.xlu0 %2328
      %2330 = vrot.lane.b32.xlu0 %v2260, 16
      %v2331 = vpop.permute.xlu0 %2330
      %2332 = vrot.lane.b32.xlu0 %v2261, 16
      %v2333 = vpop.permute.xlu0 %2332
      %2334 = vrot.lane.b32.xlu0 %v2262, 16
      %v2335 = vpop.permute.xlu0 %2334
      %2336 = vrot.lane.b32.xlu0 %v2263, 16
      %v2337 = vpop.permute.xlu0 %2336
      %2338 = vrot.lane.b32.xlu0 %v2264, 16
      %v2339 = vpop.permute.xlu0 %2338
      %2340 = vrot.lane.b32.xlu0 %v2265, 16
      %v2341 = vpop.permute.xlu0 %2340
      %2342 = vrot.lane.b32.xlu0 %v2266, 16
      %v2343 = vpop.permute.xlu0 %2342
      %2344 = vrot.lane.b32.xlu0 %v2267, 16
      %v2345 = vpop.permute.xlu0 %2344
      %2346 = vrot.lane.b32.xlu0 %v2268, 16
      %v2347 = vpop.permute.xlu0 %2346
      %2348 = vrot.lane.b32.xlu0 %v2269, 16
      %v2349 = vpop.permute.xlu0 %2348
      %2350 = vrot.lane.b32.xlu0 %v2270, 16
      %v2351 = vpop.permute.xlu0 %2350
      %2352 = vrot.lane.b32.xlu0 %v2271, 16
      %v2353 = vpop.permute.xlu0 %2352
      %2354 = vrot.lane.b32.xlu0 %v2272, 16
      %v2355 = vpop.permute.xlu0 %2354
      %2356 = vrot.lane.b32.xlu0 %v2273, 16
      %v2357 = vpop.permute.xlu0 %2356
      %2358 = vrot.lane.b32.xlu0 %v2274, 16
      %v2359 = vpop.permute.xlu0 %2358
      %2360 = vrot.lane.b32.xlu0 %v2275, 16
      %v2361 = vpop.permute.xlu0 %2360
      %2362 = vrot.lane.b32.xlu0 %v2276, 16
      %v2363 = vpop.permute.xlu0 %2362
      %2364 = vrot.lane.b32.xlu0 %v2277, 16
      %v2365 = vpop.permute.xlu0 %2364
      %2366 = vrot.lane.b32.xlu0 %v2278, 16
      %v2367 = vpop.permute.xlu0 %2366
      %2368 = vrot.lane.b32.xlu0 %v2279, 16
      %v2369 = vpop.permute.xlu0 %2368
      %2370 = vrot.lane.b32.xlu0 %v2280, 16
      %v2371 = vpop.permute.xlu0 %2370
      %2372 = vrot.lane.b32.xlu0 %v2281, 16
      %v2373 = vpop.permute.xlu0 %2372
      %2374 = vrot.lane.b32.xlu0 %v2282, 16
      %v2375 = vpop.permute.xlu0 %2374
      %2376 = vrot.lane.b32.xlu0 %v2283, 16
      %v2377 = vpop.permute.xlu0 %2376
      %2378 = vrot.lane.b32.xlu0 %v2284, 16
      %v2379 = vpop.permute.xlu0 %2378
      %2380 = vrot.lane.b32.xlu0 %v2285, 16
      %v2381 = vpop.permute.xlu0 %2380
      %v2414 = vadd.f32 %v2222, %v2319
      %v2415 = vadd.f32 %v2223, %v2321
      %v2416 = vadd.f32 %v2224, %v2323
      %v2417 = vadd.f32 %v2225, %v2325
      %v2418 = vadd.f32 %v2226, %v2327
      %v2419 = vadd.f32 %v2227, %v2329
      %v2420 = vadd.f32 %v2228, %v2331
      %v2421 = vadd.f32 %v2229, %v2333
      %v2422 = vadd.f32 %v2230, %v2335
      %v2423 = vadd.f32 %v2231, %v2337
      %v2424 = vadd.f32 %v2232, %v2339
      %v2425 = vadd.f32 %v2233, %v2341
      %v2426 = vadd.f32 %v2234, %v2343
      %v2427 = vadd.f32 %v2235, %v2345
      %v2428 = vadd.f32 %v2236, %v2347
      %v2429 = vadd.f32 %v2237, %v2349
      %v2430 = vadd.f32 %v2238, %v2351
      %v2431 = vadd.f32 %v2239, %v2353
      %v2432 = vadd.f32 %v2240, %v2355
      %v2433 = vadd.f32 %v2241, %v2357
      %v2434 = vadd.f32 %v2242, %v2359
      %v2435 = vadd.f32 %v2243, %v2361
      %v2436 = vadd.f32 %v2244, %v2363
      %v2437 = vadd.f32 %v2245, %v2365
      %v2438 = vadd.f32 %v2246, %v2367
      %v2439 = vadd.f32 %v2247, %v2369
      %v2440 = vadd.f32 %v2248, %v2371
      %v2441 = vadd.f32 %v2249, %v2373
      %v2442 = vadd.f32 %v2250, %v2375
      %v2443 = vadd.f32 %v2251, %v2377
      %v2444 = vadd.f32 %v2252, %v2379
      %v2445 = vadd.f32 %v2253, %v2381
      %2446 = vst.msk [vmem:[%s256 + $0x8] sm:$0xff] %vm1001, %v2414
      %2447 = vst.msk [vmem:[%s256 + $0x18] sm:$0xff] %vm1001, %v2415
      %2448 = vst.msk [vmem:[%s256 + $0x28] sm:$0xff] %vm1001, %v2416
      %2449 = vst.msk [vmem:[%s256 + $0x38] sm:$0xff] %vm1001, %v2417
      %2450 = vst.msk [vmem:[%s256 + $0x48] sm:$0xff] %vm1001, %v2418
      %2451 = vst.msk [vmem:[%s256 + $0x58] sm:$0xff] %vm1001, %v2419
      %2452 = vst.msk [vmem:[%s256 + $0x68] sm:$0xff] %vm1001, %v2420
      %2453 = vst.msk [vmem:[%s256 + $0x78] sm:$0xff] %vm1001, %v2421
      %2454 = vst.msk [vmem:[%s256 + $0x88] sm:$0xff] %vm1001, %v2422
      %2455 = vst.msk [vmem:[%s256 + $0x98] sm:$0xff] %vm1001, %v2423
      %2456 = vst.msk [vmem:[%s256 + $0xa8] sm:$0xff] %vm1001, %v2424
      %2457 = vst.msk [vmem:[%s256 + $0xb8] sm:$0xff] %vm1001, %v2425
      %2458 = vst.msk [vmem:[%s256 + $0xc8] sm:$0xff] %vm1001, %v2426
      %2459 = vst.msk [vmem:[%s256 + $0xd8] sm:$0xff] %vm1001, %v2427
      %2460 = vst.msk [vmem:[%s256 + $0xe8] sm:$0xff] %vm1001, %v2428
      %2461 = vst.msk [vmem:[%s256 + $0xf8] sm:$0xff] %vm1001, %v2429
      %2462 = vst.msk [vmem:[%s256 + $0x108] sm:$0xff] %vm1001, %v2430
      %2463 = vst.msk [vmem:[%s256 + $0x118] sm:$0xff] %vm1001, %v2431
      %2464 = vst.msk [vmem:[%s256 + $0x128] sm:$0xff] %vm1001, %v2432
      %2465 = vst.msk [vmem:[%s256 + $0x138] sm:$0xff] %vm1001, %v2433
      %2466 = vst.msk [vmem:[%s256 + $0x148] sm:$0xff] %vm1001, %v2434
      %2467 = vst.msk [vmem:[%s256 + $0x158] sm:$0xff] %vm1001, %v2435
      %2468 = vst.msk [vmem:[%s256 + $0x168] sm:$0xff] %vm1001, %v2436
      %2469 = vst.msk [vmem:[%s256 + $0x178] sm:$0xff] %vm1001, %v2437
      %2470 = vst.msk [vmem:[%s256 + $0x188] sm:$0xff] %vm1001, %v2438
      %2471 = vst.msk [vmem:[%s256 + $0x198] sm:$0xff] %vm1001, %v2439
      %2472 = vst.msk [vmem:[%s256 + $0x1a8] sm:$0xff] %vm1001, %v2440
      %2473 = vst.msk [vmem:[%s256 + $0x1b8] sm:$0xff] %vm1001, %v2441
      %2474 = vst.msk [vmem:[%s256 + $0x1c8] sm:$0xff] %vm1001, %v2442
      %2475 = vst.msk [vmem:[%s256 + $0x1d8] sm:$0xff] %vm1001, %v2443
      %2476 = vst.msk [vmem:[%s256 + $0x1e8] sm:$0xff] %vm1001, %v2444
      %2477 = vst.msk [vmem:[%s256 + $0x1f8] sm:$0xff] %vm1001, %v2445
      %v2478 = vld [vmem:[%s237 + $0x8] sm:$0xff]
      %v2479 = vld [vmem:[%s237 + $0x18] sm:$0xff]
      %v2480 = vld [vmem:[%s237 + $0x28] sm:$0xff]
      %v2481 = vld [vmem:[%s237 + $0x38] sm:$0xff]
      %v2482 = vld [vmem:[%s237 + $0x48] sm:$0xff]
      %v2483 = vld [vmem:[%s237 + $0x58] sm:$0xff]
      %v2484 = vld [vmem:[%s237 + $0x68] sm:$0xff]
      %v2485 = vld [vmem:[%s237 + $0x78] sm:$0xff]
      %v2486 = vld [vmem:[%s237 + $0x88] sm:$0xff]
      %v2487 = vld [vmem:[%s237 + $0x98] sm:$0xff]
      %v2488 = vld [vmem:[%s237 + $0xa8] sm:$0xff]
      %v2489 = vld [vmem:[%s237 + $0xb8] sm:$0xff]
      %v2490 = vld [vmem:[%s237 + $0xc8] sm:$0xff]
      %v2491 = vld [vmem:[%s237 + $0xd8] sm:$0xff]
      %v2492 = vld [vmem:[%s237 + $0xe8] sm:$0xff]
      %v2493 = vld [vmem:[%s237 + $0xf8] sm:$0xff]
      %v2494 = vld [vmem:[%s237 + $0x108] sm:$0xff]
      %v2495 = vld [vmem:[%s237 + $0x118] sm:$0xff]
      %v2496 = vld [vmem:[%s237 + $0x128] sm:$0xff]
      %v2497 = vld [vmem:[%s237 + $0x138] sm:$0xff]
      %v2498 = vld [vmem:[%s237 + $0x148] sm:$0xff]
      %v2499 = vld [vmem:[%s237 + $0x158] sm:$0xff]
      %v2500 = vld [vmem:[%s237 + $0x168] sm:$0xff]
      %v2501 = vld [vmem:[%s237 + $0x178] sm:$0xff]
      %v2502 = vld [vmem:[%s237 + $0x188] sm:$0xff]
      %v2503 = vld [vmem:[%s237 + $0x198] sm:$0xff]
      %v2504 = vld [vmem:[%s237 + $0x1a8] sm:$0xff]
      %v2505 = vld [vmem:[%s237 + $0x1b8] sm:$0xff]
      %v2506 = vld [vmem:[%s237 + $0x1c8] sm:$0xff]
      %v2507 = vld [vmem:[%s237 + $0x1d8] sm:$0xff]
      %v2508 = vld [vmem:[%s237 + $0x1e8] sm:$0xff]
      %v2509 = vld [vmem:[%s237 + $0x1f8] sm:$0xff]
      %2510 = vst.msk [vmem:[%s256 + $0x8] sm:$0xff] %vm1066, %v2478
      %2511 = vst.msk [vmem:[%s256 + $0x18] sm:$0xff] %vm1066, %v2479
      %2512 = vst.msk [vmem:[%s256 + $0x28] sm:$0xff] %vm1066, %v2480
      %2513 = vst.msk [vmem:[%s256 + $0x38] sm:$0xff] %vm1066, %v2481
      %2514 = vst.msk [vmem:[%s256 + $0x48] sm:$0xff] %vm1066, %v2482
      %2515 = vst.msk [vmem:[%s256 + $0x58] sm:$0xff] %vm1066, %v2483
      %2516 = vst.msk [vmem:[%s256 + $0x68] sm:$0xff] %vm1066, %v2484
      %2517 = vst.msk [vmem:[%s256 + $0x78] sm:$0xff] %vm1066, %v2485
      %2518 = vst.msk [vmem:[%s256 + $0x88] sm:$0xff] %vm1066, %v2486
      %2519 = vst.msk [vmem:[%s256 + $0x98] sm:$0xff] %vm1066, %v2487
      %2520 = vst.msk [vmem:[%s256 + $0xa8] sm:$0xff] %vm1066, %v2488
      %2521 = vst.msk [vmem:[%s256 + $0xb8] sm:$0xff] %vm1066, %v2489
      %2522 = vst.msk [vmem:[%s256 + $0xc8] sm:$0xff] %vm1066, %v2490
      %2523 = vst.msk [vmem:[%s256 + $0xd8] sm:$0xff] %vm1066, %v2491
      %2524 = vst.msk [vmem:[%s256 + $0xe8] sm:$0xff] %vm1066, %v2492
      %2525 = vst.msk [vmem:[%s256 + $0xf8] sm:$0xff] %vm1066, %v2493
      %2526 = vst.msk [vmem:[%s256 + $0x108] sm:$0xff] %vm1066, %v2494
      %2527 = vst.msk [vmem:[%s256 + $0x118] sm:$0xff] %vm1066, %v2495
      %2528 = vst.msk [vmem:[%s256 + $0x128] sm:$0xff] %vm1066, %v2496
      %2529 = vst.msk [vmem:[%s256 + $0x138] sm:$0xff] %vm1066, %v2497
      %2530 = vst.msk [vmem:[%s256 + $0x148] sm:$0xff] %vm1066, %v2498
      %2531 = vst.msk [vmem:[%s256 + $0x158] sm:$0xff] %vm1066, %v2499
      %2532 = vst.msk [vmem:[%s256 + $0x168] sm:$0xff] %vm1066, %v2500
      %2533 = vst.msk [vmem:[%s256 + $0x178] sm:$0xff] %vm1066, %v2501
      %2534 = vst.msk [vmem:[%s256 + $0x188] sm:$0xff] %vm1066, %v2502
      %2535 = vst.msk [vmem:[%s256 + $0x198] sm:$0xff] %vm1066, %v2503
      %2536 = vst.msk [vmem:[%s256 + $0x1a8] sm:$0xff] %vm1066, %v2504
      %2537 = vst.msk [vmem:[%s256 + $0x1b8] sm:$0xff] %vm1066, %v2505
      %2538 = vst.msk [vmem:[%s256 + $0x1c8] sm:$0xff] %vm1066, %v2506
      %2539 = vst.msk [vmem:[%s256 + $0x1d8] sm:$0xff] %vm1066, %v2507
      %2540 = vst.msk [vmem:[%s256 + $0x1e8] sm:$0xff] %vm1066, %v2508
      %2541 = vst.msk [vmem:[%s256 + $0x1f8] sm:$0xff] %vm1066, %v2509
      %v2542 = vld [vmem:[%s237 + $0x8] sm:$0xff]
      %v2543 = vld [vmem:[%s237 + $0x18] sm:$0xff]
      %v2544 = vld [vmem:[%s237 + $0x28] sm:$0xff]
      %v2545 = vld [vmem:[%s237 + $0x38] sm:$0xff]
      %v2546 = vld [vmem:[%s237 + $0x48] sm:$0xff]
      %v2547 = vld [vmem:[%s237 + $0x58] sm:$0xff]
      %v2548 = vld [vmem:[%s237 + $0x68] sm:$0xff]
      %v2549 = vld [vmem:[%s237 + $0x78] sm:$0xff]
      %v2550 = vld [vmem:[%s237 + $0x88] sm:$0xff]
      %v2551 = vld [vmem:[%s237 + $0x98] sm:$0xff]
      %v2552 = vld [vmem:[%s237 + $0xa8] sm:$0xff]
      %v2553 = vld [vmem:[%s237 + $0xb8] sm:$0xff]
      %v2554 = vld [vmem:[%s237 + $0xc8] sm:$0xff]
      %v2555 = vld [vmem:[%s237 + $0xd8] sm:$0xff]
      %v2556 = vld [vmem:[%s237 + $0xe8] sm:$0xff]
      %v2557 = vld [vmem:[%s237 + $0xf8] sm:$0xff]
      %v2558 = vld [vmem:[%s237 + $0x108] sm:$0xff]
      %v2559 = vld [vmem:[%s237 + $0x118] sm:$0xff]
      %v2560 = vld [vmem:[%s237 + $0x128] sm:$0xff]
      %v2561 = vld [vmem:[%s237 + $0x138] sm:$0xff]
      %v2562 = vld [vmem:[%s237 + $0x148] sm:$0xff]
      %v2563 = vld [vmem:[%s237 + $0x158] sm:$0xff]
      %v2564 = vld [vmem:[%s237 + $0x168] sm:$0xff]
      %v2565 = vld [vmem:[%s237 + $0x178] sm:$0xff]
      %v2566 = vld [vmem:[%s237 + $0x188] sm:$0xff]
      %v2567 = vld [vmem:[%s237 + $0x198] sm:$0xff]
      %v2568 = vld [vmem:[%s237 + $0x1a8] sm:$0xff]
      %v2569 = vld [vmem:[%s237 + $0x1b8] sm:$0xff]
      %v2570 = vld [vmem:[%s237 + $0x1c8] sm:$0xff]
      %v2571 = vld [vmem:[%s237 + $0x1d8] sm:$0xff]
      %v2572 = vld [vmem:[%s237 + $0x1e8] sm:$0xff]
      %v2573 = vld [vmem:[%s237 + $0x1f8] sm:$0xff]
      %v2574 = vmul.f32 %v2542, %v1132
      %v2575 = vmul.f32 %v2543, %v1134
      %v2576 = vmul.f32 %v2544, %v1136
      %v2577 = vmul.f32 %v2545, %v1138
      %v2578 = vmul.f32 %v2546, %v1140
      %v2579 = vmul.f32 %v2547, %v1142
      %v2580 = vmul.f32 %v2548, %v1144
      %v2581 = vmul.f32 %v2549, %v1146
      %v2582 = vmul.f32 %v2550, %v1148
      %v2583 = vmul.f32 %v2551, %v1150
      %v2584 = vmul.f32 %v2552, %v1152
      %v2585 = vmul.f32 %v2553, %v1154
      %v2586 = vmul.f32 %v2554, %v1156
      %v2587 = vmul.f32 %v2555, %v1158
      %v2588 = vmul.f32 %v2556, %v1160
      %v2589 = vmul.f32 %v2557, %v1162
      %v2590 = vmul.f32 %v2558, %v1164
      %v2591 = vmul.f32 %v2559, %v1166
      %v2592 = vmul.f32 %v2560, %v1168
      %v2593 = vmul.f32 %v2561, %v1170
      %v2594 = vmul.f32 %v2562, %v1172
      %v2595 = vmul.f32 %v2563, %v1174
      %v2596 = vmul.f32 %v2564, %v1176
      %v2597 = vmul.f32 %v2565, %v1178
      %v2598 = vmul.f32 %v2566, %v1180
      %v2599 = vmul.f32 %v2567, %v1182
      %v2600 = vmul.f32 %v2568, %v1184
      %v2601 = vmul.f32 %v2569, %v1186
      %v2602 = vmul.f32 %v2570, %v1188
      %v2603 = vmul.f32 %v2571, %v1190
      %v2604 = vmul.f32 %v2572, %v1192
      %v2605 = vmul.f32 %v2573, %v1194
      %2638 = vrot.lane.b32.xlu0 %v2574, 112
      %v2639 = vpop.permute.xlu0 %2638
      %2640 = vrot.lane.b32.xlu0 %v2575, 112
      %v2641 = vpop.permute.xlu0 %2640
      %2642 = vrot.lane.b32.xlu0 %v2576, 112
      %v2643 = vpop.permute.xlu0 %2642
      %2644 = vrot.lane.b32.xlu0 %v2577, 112
      %v2645 = vpop.permute.xlu0 %2644
      %2646 = vrot.lane.b32.xlu0 %v2578, 112
      %v2647 = vpop.permute.xlu0 %2646
      %2648 = vrot.lane.b32.xlu0 %v2579, 112
      %v2649 = vpop.permute.xlu0 %2648
      %2650 = vrot.lane.b32.xlu0 %v2580, 112
      %v2651 = vpop.permute.xlu0 %2650
      %2652 = vrot.lane.b32.xlu0 %v2581, 112
      %v2653 = vpop.permute.xlu0 %2652
      %2654 = vrot.lane.b32.xlu0 %v2582, 112
      %v2655 = vpop.permute.xlu0 %2654
      %2656 = vrot.lane.b32.xlu0 %v2583, 112
      %v2657 = vpop.permute.xlu0 %2656
      %2658 = vrot.lane.b32.xlu0 %v2584, 112
      %v2659 = vpop.permute.xlu0 %2658
      %2660 = vrot.lane.b32.xlu0 %v2585, 112
      %v2661 = vpop.permute.xlu0 %2660
      %2662 = vrot.lane.b32.xlu0 %v2586, 112
      %v2663 = vpop.permute.xlu0 %2662
      %2664 = vrot.lane.b32.xlu0 %v2587, 112
      %v2665 = vpop.permute.xlu0 %2664
      %2666 = vrot.lane.b32.xlu0 %v2588, 112
      %v2667 = vpop.permute.xlu0 %2666
      %2668 = vrot.lane.b32.xlu0 %v2589, 112
      %v2669 = vpop.permute.xlu0 %2668
      %2670 = vrot.lane.b32.xlu0 %v2590, 112
      %v2671 = vpop.permute.xlu0 %2670
      %2672 = vrot.lane.b32.xlu0 %v2591, 112
      %v2673 = vpop.permute.xlu0 %2672
      %2674 = vrot.lane.b32.xlu0 %v2592, 112
      %v2675 = vpop.permute.xlu0 %2674
      %2676 = vrot.lane.b32.xlu0 %v2593, 112
      %v2677 = vpop.permute.xlu0 %2676
      %2678 = vrot.lane.b32.xlu0 %v2594, 112
      %v2679 = vpop.permute.xlu0 %2678
      %2680 = vrot.lane.b32.xlu0 %v2595, 112
      %v2681 = vpop.permute.xlu0 %2680
      %2682 = vrot.lane.b32.xlu0 %v2596, 112
      %v2683 = vpop.permute.xlu0 %2682
      %2684 = vrot.lane.b32.xlu0 %v2597, 112
      %v2685 = vpop.permute.xlu0 %2684
      %2686 = vrot.lane.b32.xlu0 %v2598, 112
      %v2687 = vpop.permute.xlu0 %2686
      %2688 = vrot.lane.b32.xlu0 %v2599, 112
      %v2689 = vpop.permute.xlu0 %2688
      %2690 = vrot.lane.b32.xlu0 %v2600, 112
      %v2691 = vpop.permute.xlu0 %2690
      %2692 = vrot.lane.b32.xlu0 %v2601, 112
      %v2693 = vpop.permute.xlu0 %2692
      %2694 = vrot.lane.b32.xlu0 %v2602, 112
      %v2695 = vpop.permute.xlu0 %2694
      %2696 = vrot.lane.b32.xlu0 %v2603, 112
      %v2697 = vpop.permute.xlu0 %2696
      %2698 = vrot.lane.b32.xlu0 %v2604, 112
      %v2699 = vpop.permute.xlu0 %2698
      %2700 = vrot.lane.b32.xlu0 %v2605, 112
      %v2701 = vpop.permute.xlu0 %2700
      %v2734 = vsub.f32 %v2574, %v2639
      %v2735 = vsub.f32 %v2575, %v2641
      %v2736 = vsub.f32 %v2576, %v2643
      %v2737 = vsub.f32 %v2577, %v2645
      %v2738 = vsub.f32 %v2578, %v2647
      %v2739 = vsub.f32 %v2579, %v2649
      %v2740 = vsub.f32 %v2580, %v2651
      %v2741 = vsub.f32 %v2581, %v2653
      %v2742 = vsub.f32 %v2582, %v2655
      %v2743 = vsub.f32 %v2583, %v2657
      %v2744 = vsub.f32 %v2584, %v2659
      %v2745 = vsub.f32 %v2585, %v2661
      %v2746 = vsub.f32 %v2586, %v2663
      %v2747 = vsub.f32 %v2587, %v2665
      %v2748 = vsub.f32 %v2588, %v2667
      %v2749 = vsub.f32 %v2589, %v2669
      %v2750 = vsub.f32 %v2590, %v2671
      %v2751 = vsub.f32 %v2591, %v2673
      %v2752 = vsub.f32 %v2592, %v2675
      %v2753 = vsub.f32 %v2593, %v2677
      %v2754 = vsub.f32 %v2594, %v2679
      %v2755 = vsub.f32 %v2595, %v2681
      %v2756 = vsub.f32 %v2596, %v2683
      %v2757 = vsub.f32 %v2597, %v2685
      %v2758 = vsub.f32 %v2598, %v2687
      %v2759 = vsub.f32 %v2599, %v2689
      %v2760 = vsub.f32 %v2600, %v2691
      %v2761 = vsub.f32 %v2601, %v2693
      %v2762 = vsub.f32 %v2602, %v2695
      %v2763 = vsub.f32 %v2603, %v2697
      %v2764 = vsub.f32 %v2604, %v2699
      %v2765 = vsub.f32 %v2605, %v2701
      %2766 = vst.msk [vmem:[%s256 + $0x8] sm:$0xff] %vm1419, %v2734
      %2767 = vst.msk [vmem:[%s256 + $0x18] sm:$0xff] %vm1419, %v2735
      %2768 = vst.msk [vmem:[%s256 + $0x28] sm:$0xff] %vm1419, %v2736
      %2769 = vst.msk [vmem:[%s256 + $0x38] sm:$0xff] %vm1419, %v2737
      %2770 = vst.msk [vmem:[%s256 + $0x48] sm:$0xff] %vm1419, %v2738
      %2771 = vst.msk [vmem:[%s256 + $0x58] sm:$0xff] %vm1419, %v2739
      %2772 = vst.msk [vmem:[%s256 + $0x68] sm:$0xff] %vm1419, %v2740
      %2773 = vst.msk [vmem:[%s256 + $0x78] sm:$0xff] %vm1419, %v2741
      %2774 = vst.msk [vmem:[%s256 + $0x88] sm:$0xff] %vm1419, %v2742
      %2775 = vst.msk [vmem:[%s256 + $0x98] sm:$0xff] %vm1419, %v2743
      %2776 = vst.msk [vmem:[%s256 + $0xa8] sm:$0xff] %vm1419, %v2744
      %2777 = vst.msk [vmem:[%s256 + $0xb8] sm:$0xff] %vm1419, %v2745
      %2778 = vst.msk [vmem:[%s256 + $0xc8] sm:$0xff] %vm1419, %v2746
      %2779 = vst.msk [vmem:[%s256 + $0xd8] sm:$0xff] %vm1419, %v2747
      %2780 = vst.msk [vmem:[%s256 + $0xe8] sm:$0xff] %vm1419, %v2748
      %2781 = vst.msk [vmem:[%s256 + $0xf8] sm:$0xff] %vm1419, %v2749
      %2782 = vst.msk [vmem:[%s256 + $0x108] sm:$0xff] %vm1419, %v2750
      %2783 = vst.msk [vmem:[%s256 + $0x118] sm:$0xff] %vm1419, %v2751
      %2784 = vst.msk [vmem:[%s256 + $0x128] sm:$0xff] %vm1419, %v2752
      %2785 = vst.msk [vmem:[%s256 + $0x138] sm:$0xff] %vm1419, %v2753
      %2786 = vst.msk [vmem:[%s256 + $0x148] sm:$0xff] %vm1419, %v2754
      %2787 = vst.msk [vmem:[%s256 + $0x158] sm:$0xff] %vm1419, %v2755
      %2788 = vst.msk [vmem:[%s256 + $0x168] sm:$0xff] %vm1419, %v2756
      %2789 = vst.msk [vmem:[%s256 + $0x178] sm:$0xff] %vm1419, %v2757
      %2790 = vst.msk [vmem:[%s256 + $0x188] sm:$0xff] %vm1419, %v2758
      %2791 = vst.msk [vmem:[%s256 + $0x198] sm:$0xff] %vm1419, %v2759
      %2792 = vst.msk [vmem:[%s256 + $0x1a8] sm:$0xff] %vm1419, %v2760
      %2793 = vst.msk [vmem:[%s256 + $0x1b8] sm:$0xff] %vm1419, %v2761
      %2794 = vst.msk [vmem:[%s256 + $0x1c8] sm:$0xff] %vm1419, %v2762
      %2795 = vst.msk [vmem:[%s256 + $0x1d8] sm:$0xff] %vm1419, %v2763
      %2796 = vst.msk [vmem:[%s256 + $0x1e8] sm:$0xff] %vm1419, %v2764
      %2797 = vst.msk [vmem:[%s256 + $0x1f8] sm:$0xff] %vm1419, %v2765
      %v2798 = vmul.f32 %v2542, %v1453
      %v2799 = vmul.f32 %v2543, %v1455
      %v2800 = vmul.f32 %v2544, %v1457
      %v2801 = vmul.f32 %v2545, %v1459
      %v2802 = vmul.f32 %v2546, %v1461
      %v2803 = vmul.f32 %v2547, %v1463
      %v2804 = vmul.f32 %v2548, %v1465
      %v2805 = vmul.f32 %v2549, %v1467
      %v2806 = vmul.f32 %v2550, %v1469
      %v2807 = vmul.f32 %v2551, %v1471
      %v2808 = vmul.f32 %v2552, %v1473
      %v2809 = vmul.f32 %v2553, %v1475
      %v2810 = vmul.f32 %v2554, %v1477
      %v2811 = vmul.f32 %v2555, %v1479
      %v2812 = vmul.f32 %v2556, %v1481
      %v2813 = vmul.f32 %v2557, %v1483
      %v2814 = vmul.f32 %v2558, %v1485
      %v2815 = vmul.f32 %v2559, %v1487
      %v2816 = vmul.f32 %v2560, %v1489
      %v2817 = vmul.f32 %v2561, %v1491
      %v2818 = vmul.f32 %v2562, %v1493
      %v2819 = vmul.f32 %v2563, %v1495
      %v2820 = vmul.f32 %v2564, %v1497
      %v2821 = vmul.f32 %v2565, %v1499
      %v2822 = vmul.f32 %v2566, %v1501
      %v2823 = vmul.f32 %v2567, %v1503
      %v2824 = vmul.f32 %v2568, %v1505
      %v2825 = vmul.f32 %v2569, %v1507
      %v2826 = vmul.f32 %v2570, %v1509
      %v2827 = vmul.f32 %v2571, %v1511
      %v2828 = vmul.f32 %v2572, %v1513
      %v2829 = vmul.f32 %v2573, %v1515
      %v2830 = vmul.f32 %v2542, %v1581
      %v2831 = vmul.f32 %v2543, %v1583
      %v2832 = vmul.f32 %v2544, %v1585
      %v2833 = vmul.f32 %v2545, %v1587
      %v2834 = vmul.f32 %v2546, %v1589
      %v2835 = vmul.f32 %v2547, %v1591
      %v2836 = vmul.f32 %v2548, %v1593
      %v2837 = vmul.f32 %v2549, %v1595
      %v2838 = vmul.f32 %v2550, %v1597
      %v2839 = vmul.f32 %v2551, %v1599
      %v2840 = vmul.f32 %v2552, %v1601
      %v2841 = vmul.f32 %v2553, %v1603
      %v2842 = vmul.f32 %v2554, %v1605
      %v2843 = vmul.f32 %v2555, %v1607
      %v2844 = vmul.f32 %v2556, %v1609
      %v2845 = vmul.f32 %v2557, %v1611
      %v2846 = vmul.f32 %v2558, %v1613
      %v2847 = vmul.f32 %v2559, %v1615
      %v2848 = vmul.f32 %v2560, %v1617
      %v2849 = vmul.f32 %v2561, %v1619
      %v2850 = vmul.f32 %v2562, %v1621
      %v2851 = vmul.f32 %v2563, %v1623
      %v2852 = vmul.f32 %v2564, %v1625
      %v2853 = vmul.f32 %v2565, %v1627
      %v2854 = vmul.f32 %v2566, %v1629
      %v2855 = vmul.f32 %v2567, %v1631
      %v2856 = vmul.f32 %v2568, %v1633
      %v2857 = vmul.f32 %v2569, %v1635
      %v2858 = vmul.f32 %v2570, %v1637
      %v2859 = vmul.f32 %v2571, %v1639
      %v2860 = vmul.f32 %v2572, %v1641
      %v2861 = vmul.f32 %v2573, %v1643
      %2894 = vrot.lane.b32.xlu0 %v2830, 16
      %v2895 = vpop.permute.xlu0 %2894
      %2896 = vrot.lane.b32.xlu0 %v2831, 16
      %v2897 = vpop.permute.xlu0 %2896
      %2898 = vrot.lane.b32.xlu0 %v2832, 16
      %v2899 = vpop.permute.xlu0 %2898
      %2900 = vrot.lane.b32.xlu0 %v2833, 16
      %v2901 = vpop.permute.xlu0 %2900
      %2902 = vrot.lane.b32.xlu0 %v2834, 16
      %v2903 = vpop.permute.xlu0 %2902
      %2904 = vrot.lane.b32.xlu0 %v2835, 16
      %v2905 = vpop.permute.xlu0 %2904
      %2906 = vrot.lane.b32.xlu0 %v2836, 16
      %v2907 = vpop.permute.xlu0 %2906
      %2908 = vrot.lane.b32.xlu0 %v2837, 16
      %v2909 = vpop.permute.xlu0 %2908
      %2910 = vrot.lane.b32.xlu0 %v2838, 16
      %v2911 = vpop.permute.xlu0 %2910
      %2912 = vrot.lane.b32.xlu0 %v2839, 16
      %v2913 = vpop.permute.xlu0 %2912
      %2914 = vrot.lane.b32.xlu0 %v2840, 16
      %v2915 = vpop.permute.xlu0 %2914
      %2916 = vrot.lane.b32.xlu0 %v2841, 16
      %v2917 = vpop.permute.xlu0 %2916
      %2918 = vrot.lane.b32.xlu0 %v2842, 16
      %v2919 = vpop.permute.xlu0 %2918
      %2920 = vrot.lane.b32.xlu0 %v2843, 16
      %v2921 = vpop.permute.xlu0 %2920
      %2922 = vrot.lane.b32.xlu0 %v2844, 16
      %v2923 = vpop.permute.xlu0 %2922
      %2924 = vrot.lane.b32.xlu0 %v2845, 16
      %v2925 = vpop.permute.xlu0 %2924
      %2926 = vrot.lane.b32.xlu0 %v2846, 16
      %v2927 = vpop.permute.xlu0 %2926
      %2928 = vrot.lane.b32.xlu0 %v2847, 16
      %v2929 = vpop.permute.xlu0 %2928
      %2930 = vrot.lane.b32.xlu0 %v2848, 16
      %v2931 = vpop.permute.xlu0 %2930
      %2932 = vrot.lane.b32.xlu0 %v2849, 16
      %v2933 = vpop.permute.xlu0 %2932
      %2934 = vrot.lane.b32.xlu0 %v2850, 16
      %v2935 = vpop.permute.xlu0 %2934
      %2936 = vrot.lane.b32.xlu0 %v2851, 16
      %v2937 = vpop.permute.xlu0 %2936
      %2938 = vrot.lane.b32.xlu0 %v2852, 16
      %v2939 = vpop.permute.xlu0 %2938
      %2940 = vrot.lane.b32.xlu0 %v2853, 16
      %v2941 = vpop.permute.xlu0 %2940
      %2942 = vrot.lane.b32.xlu0 %v2854, 16
      %v2943 = vpop.permute.xlu0 %2942
      %2944 = vrot.lane.b32.xlu0 %v2855, 16
      %v2945 = vpop.permute.xlu0 %2944
      %2946 = vrot.lane.b32.xlu0 %v2856, 16
      %v2947 = vpop.permute.xlu0 %2946
      %2948 = vrot.lane.b32.xlu0 %v2857, 16
      %v2949 = vpop.permute.xlu0 %2948
      %2950 = vrot.lane.b32.xlu0 %v2858, 16
      %v2951 = vpop.permute.xlu0 %2950
      %2952 = vrot.lane.b32.xlu0 %v2859, 16
      %v2953 = vpop.permute.xlu0 %2952
      %2954 = vrot.lane.b32.xlu0 %v2860, 16
      %v2955 = vpop.permute.xlu0 %2954
      %2956 = vrot.lane.b32.xlu0 %v2861, 16
      %v2957 = vpop.permute.xlu0 %2956
      %v2990 = vadd.f32 %v2798, %v2895
      %v2991 = vadd.f32 %v2799, %v2897
      %v2992 = vadd.f32 %v2800, %v2899
      %v2993 = vadd.f32 %v2801, %v2901
      %v2994 = vadd.f32 %v2802, %v2903
      %v2995 = vadd.f32 %v2803, %v2905
      %v2996 = vadd.f32 %v2804, %v2907
      %v2997 = vadd.f32 %v2805, %v2909
      %v2998 = vadd.f32 %v2806, %v2911
      %v2999 = vadd.f32 %v2807, %v2913
      %v3000 = vadd.f32 %v2808, %v2915
      %v3001 = vadd.f32 %v2809, %v2917
      %v3002 = vadd.f32 %v2810, %v2919
      %v3003 = vadd.f32 %v2811, %v2921
      %v3004 = vadd.f32 %v2812, %v2923
      %v3005 = vadd.f32 %v2813, %v2925
      %v3006 = vadd.f32 %v2814, %v2927
      %v3007 = vadd.f32 %v2815, %v2929
      %v3008 = vadd.f32 %v2816, %v2931
      %v3009 = vadd.f32 %v2817, %v2933
      %v3010 = vadd.f32 %v2818, %v2935
      %v3011 = vadd.f32 %v2819, %v2937
      %v3012 = vadd.f32 %v2820, %v2939
      %v3013 = vadd.f32 %v2821, %v2941
      %v3014 = vadd.f32 %v2822, %v2943
      %v3015 = vadd.f32 %v2823, %v2945
      %v3016 = vadd.f32 %v2824, %v2947
      %v3017 = vadd.f32 %v2825, %v2949
      %v3018 = vadd.f32 %v2826, %v2951
      %v3019 = vadd.f32 %v2827, %v2953
      %v3020 = vadd.f32 %v2828, %v2955
      %v3021 = vadd.f32 %v2829, %v2957
      %3022 = vst.msk [vmem:[%s256 + $0x8] sm:$0xff] %vm1868, %v2990
      %3023 = vst.msk [vmem:[%s256 + $0x18] sm:$0xff] %vm1868, %v2991
      %3024 = vst.msk [vmem:[%s256 + $0x28] sm:$0xff] %vm1868, %v2992
      %3025 = vst.msk [vmem:[%s256 + $0x38] sm:$0xff] %vm1868, %v2993
      %3026 = vst.msk [vmem:[%s256 + $0x48] sm:$0xff] %vm1868, %v2994
      %3027 = vst.msk [vmem:[%s256 + $0x58] sm:$0xff] %vm1868, %v2995
      %3028 = vst.msk [vmem:[%s256 + $0x68] sm:$0xff] %vm1868, %v2996
      %3029 = vst.msk [vmem:[%s256 + $0x78] sm:$0xff] %vm1868, %v2997
      %3030 = vst.msk [vmem:[%s256 + $0x88] sm:$0xff] %vm1868, %v2998
      %3031 = vst.msk [vmem:[%s256 + $0x98] sm:$0xff] %vm1868, %v2999
      %3032 = vst.msk [vmem:[%s256 + $0xa8] sm:$0xff] %vm1868, %v3000
      %3033 = vst.msk [vmem:[%s256 + $0xb8] sm:$0xff] %vm1868, %v3001
      %3034 = vst.msk [vmem:[%s256 + $0xc8] sm:$0xff] %vm1868, %v3002
      %3035 = vst.msk [vmem:[%s256 + $0xd8] sm:$0xff] %vm1868, %v3003
      %3036 = vst.msk [vmem:[%s256 + $0xe8] sm:$0xff] %vm1868, %v3004
      %3037 = vst.msk [vmem:[%s256 + $0xf8] sm:$0xff] %vm1868, %v3005
      %3038 = vst.msk [vmem:[%s256 + $0x108] sm:$0xff] %vm1868, %v3006
      %3039 = vst.msk [vmem:[%s256 + $0x118] sm:$0xff] %vm1868, %v3007
      %3040 = vst.msk [vmem:[%s256 + $0x128] sm:$0xff] %vm1868, %v3008
      %3041 = vst.msk [vmem:[%s256 + $0x138] sm:$0xff] %vm1868, %v3009
      %3042 = vst.msk [vmem:[%s256 + $0x148] sm:$0xff] %vm1868, %v3010
      %3043 = vst.msk [vmem:[%s256 + $0x158] sm:$0xff] %vm1868, %v3011
      %3044 = vst.msk [vmem:[%s256 + $0x168] sm:$0xff] %vm1868, %v3012
      %3045 = vst.msk [vmem:[%s256 + $0x178] sm:$0xff] %vm1868, %v3013
      %3046 = vst.msk [vmem:[%s256 + $0x188] sm:$0xff] %vm1868, %v3014
      %3047 = vst.msk [vmem:[%s256 + $0x198] sm:$0xff] %vm1868, %v3015
      %3048 = vst.msk [vmem:[%s256 + $0x1a8] sm:$0xff] %vm1868, %v3016
      %3049 = vst.msk [vmem:[%s256 + $0x1b8] sm:$0xff] %vm1868, %v3017
      %3050 = vst.msk [vmem:[%s256 + $0x1c8] sm:$0xff] %vm1868, %v3018
      %3051 = vst.msk [vmem:[%s256 + $0x1d8] sm:$0xff] %vm1868, %v3019
      %3052 = vst.msk [vmem:[%s256 + $0x1e8] sm:$0xff] %vm1868, %v3020
      %3053 = vst.msk [vmem:[%s256 + $0x1f8] sm:$0xff] %vm1868, %v3021
      %v3054 = vld [vmem:[%s237 + $0x8] sm:$0xff]
      %v3055 = vld [vmem:[%s237 + $0x18] sm:$0xff]
      %v3056 = vld [vmem:[%s237 + $0x28] sm:$0xff]
      %v3057 = vld [vmem:[%s237 + $0x38] sm:$0xff]
      %v3058 = vld [vmem:[%s237 + $0x48] sm:$0xff]
      %v3059 = vld [vmem:[%s237 + $0x58] sm:$0xff]
      %v3060 = vld [vmem:[%s237 + $0x68] sm:$0xff]
      %v3061 = vld [vmem:[%s237 + $0x78] sm:$0xff]
      %v3062 = vld [vmem:[%s237 + $0x88] sm:$0xff]
      %v3063 = vld [vmem:[%s237 + $0x98] sm:$0xff]
      %v3064 = vld [vmem:[%s237 + $0xa8] sm:$0xff]
      %v3065 = vld [vmem:[%s237 + $0xb8] sm:$0xff]
      %v3066 = vld [vmem:[%s237 + $0xc8] sm:$0xff]
      %v3067 = vld [vmem:[%s237 + $0xd8] sm:$0xff]
      %v3068 = vld [vmem:[%s237 + $0xe8] sm:$0xff]
      %v3069 = vld [vmem:[%s237 + $0xf8] sm:$0xff]
      %v3070 = vld [vmem:[%s237 + $0x108] sm:$0xff]
      %v3071 = vld [vmem:[%s237 + $0x118] sm:$0xff]
      %v3072 = vld [vmem:[%s237 + $0x128] sm:$0xff]
      %v3073 = vld [vmem:[%s237 + $0x138] sm:$0xff]
      %v3074 = vld [vmem:[%s237 + $0x148] sm:$0xff]
      %v3075 = vld [vmem:[%s237 + $0x158] sm:$0xff]
      %v3076 = vld [vmem:[%s237 + $0x168] sm:$0xff]
      %v3077 = vld [vmem:[%s237 + $0x178] sm:$0xff]
      %v3078 = vld [vmem:[%s237 + $0x188] sm:$0xff]
      %v3079 = vld [vmem:[%s237 + $0x198] sm:$0xff]
      %v3080 = vld [vmem:[%s237 + $0x1a8] sm:$0xff]
      %v3081 = vld [vmem:[%s237 + $0x1b8] sm:$0xff]
      %v3082 = vld [vmem:[%s237 + $0x1c8] sm:$0xff]
      %v3083 = vld [vmem:[%s237 + $0x1d8] sm:$0xff]
      %v3084 = vld [vmem:[%s237 + $0x1e8] sm:$0xff]
      %v3085 = vld [vmem:[%s237 + $0x1f8] sm:$0xff]
      %3086 = vst.msk [vmem:[%s256 + $0x8] sm:$0xff] %vm1933, %v3054
      %3087 = vst.msk [vmem:[%s256 + $0x18] sm:$0xff] %vm1933, %v3055
      %3088 = vst.msk [vmem:[%s256 + $0x28] sm:$0xff] %vm1933, %v3056
      %3089 = vst.msk [vmem:[%s256 + $0x38] sm:$0xff] %vm1933, %v3057
      %3090 = vst.msk [vmem:[%s256 + $0x48] sm:$0xff] %vm1933, %v3058
      %3091 = vst.msk [vmem:[%s256 + $0x58] sm:$0xff] %vm1933, %v3059
      %3092 = vst.msk [vmem:[%s256 + $0x68] sm:$0xff] %vm1933, %v3060
      %3093 = vst.msk [vmem:[%s256 + $0x78] sm:$0xff] %vm1933, %v3061
      %3094 = vst.msk [vmem:[%s256 + $0x88] sm:$0xff] %vm1933, %v3062
      %3095 = vst.msk [vmem:[%s256 + $0x98] sm:$0xff] %vm1933, %v3063
      %3096 = vst.msk [vmem:[%s256 + $0xa8] sm:$0xff] %vm1933, %v3064
      %3097 = vst.msk [vmem:[%s256 + $0xb8] sm:$0xff] %vm1933, %v3065
      %3098 = vst.msk [vmem:[%s256 + $0xc8] sm:$0xff] %vm1933, %v3066
      %3099 = vst.msk [vmem:[%s256 + $0xd8] sm:$0xff] %vm1933, %v3067
      %3100 = vst.msk [vmem:[%s256 + $0xe8] sm:$0xff] %vm1933, %v3068
      %3101 = vst.msk [vmem:[%s256 + $0xf8] sm:$0xff] %vm1933, %v3069
      %3102 = vst.msk [vmem:[%s256 + $0x108] sm:$0xff] %vm1933, %v3070
      %3103 = vst.msk [vmem:[%s256 + $0x118] sm:$0xff] %vm1933, %v3071
      %3104 = vst.msk [vmem:[%s256 + $0x128] sm:$0xff] %vm1933, %v3072
      %3105 = vst.msk [vmem:[%s256 + $0x138] sm:$0xff] %vm1933, %v3073
      %3106 = vst.msk [vmem:[%s256 + $0x148] sm:$0xff] %vm1933, %v3074
      %3107 = vst.msk [vmem:[%s256 + $0x158] sm:$0xff] %vm1933, %v3075
      %3108 = vst.msk [vmem:[%s256 + $0x168] sm:$0xff] %vm1933, %v3076
      %3109 = vst.msk [vmem:[%s256 + $0x178] sm:$0xff] %vm1933, %v3077
      %3110 = vst.msk [vmem:[%s256 + $0x188] sm:$0xff] %vm1933, %v3078
      %3111 = vst.msk [vmem:[%s256 + $0x198] sm:$0xff] %vm1933, %v3079
      %3112 = vst.msk [vmem:[%s256 + $0x1a8] sm:$0xff] %vm1933, %v3080
      %3113 = vst.msk [vmem:[%s256 + $0x1b8] sm:$0xff] %vm1933, %v3081
      %3114 = vst.msk [vmem:[%s256 + $0x1c8] sm:$0xff] %vm1933, %v3082
      %3115 = vst.msk [vmem:[%s256 + $0x1d8] sm:$0xff] %vm1933, %v3083
      %3116 = vst.msk [vmem:[%s256 + $0x1e8] sm:$0xff] %vm1933, %v3084
      %3117 = vst.msk [vmem:[%s256 + $0x1f8] sm:$0xff] %vm1933, %v3085
      %v3118 = vld [vmem:[%s243] sm:$0xff]
      %v3119 = vld [vmem:[%s243 + $0x8] sm:$0xff]
      %v3120 = vld [vmem:[%s243 + $0x10] sm:$0xff]
      %v3121 = vld [vmem:[%s243 + $0x18] sm:$0xff]
      %v3122 = vld [vmem:[%s243 + $0x20] sm:$0xff]
      %v3123 = vld [vmem:[%s243 + $0x28] sm:$0xff]
      %v3124 = vld [vmem:[%s243 + $0x30] sm:$0xff]
      %v3125 = vld [vmem:[%s243 + $0x38] sm:$0xff]
      %v3126 = vld [vmem:[%s243 + $0x40] sm:$0xff]
      %v3127 = vld [vmem:[%s243 + $0x48] sm:$0xff]
      %v3128 = vld [vmem:[%s243 + $0x50] sm:$0xff]
      %v3129 = vld [vmem:[%s243 + $0x58] sm:$0xff]
      %v3130 = vld [vmem:[%s243 + $0x60] sm:$0xff]
      %v3131 = vld [vmem:[%s243 + $0x68] sm:$0xff]
      %v3132 = vld [vmem:[%s243 + $0x70] sm:$0xff]
      %v3133 = vld [vmem:[%s243 + $0x78] sm:$0xff]
      %v3134 = vld [vmem:[%s243 + $0x80] sm:$0xff]
      %v3135 = vld [vmem:[%s243 + $0x88] sm:$0xff]
      %v3136 = vld [vmem:[%s243 + $0x90] sm:$0xff]
      %v3137 = vld [vmem:[%s243 + $0x98] sm:$0xff]
      %v3138 = vld [vmem:[%s243 + $0xa0] sm:$0xff]
      %v3139 = vld [vmem:[%s243 + $0xa8] sm:$0xff]
      %v3140 = vld [vmem:[%s243 + $0xb0] sm:$0xff]
      %v3141 = vld [vmem:[%s243 + $0xb8] sm:$0xff]
      %v3142 = vld [vmem:[%s243 + $0xc0] sm:$0xff]
      %v3143 = vld [vmem:[%s243 + $0xc8] sm:$0xff]
      %v3144 = vld [vmem:[%s243 + $0xd0] sm:$0xff]
      %v3145 = vld [vmem:[%s243 + $0xd8] sm:$0xff]
      %v3146 = vld [vmem:[%s243 + $0xe0] sm:$0xff]
      %v3147 = vld [vmem:[%s243 + $0xe8] sm:$0xff]
      %v3148 = vld [vmem:[%s243 + $0xf0] sm:$0xff]
      %v3149 = vld [vmem:[%s243 + $0xf8] sm:$0xff]
      %v3150 = vmul.f32 %v3118, %v264
      %v3151 = vmul.f32 %v3119, %v265
      %v3152 = vmul.f32 %v3120, %v266
      %v3153 = vmul.f32 %v3121, %v267
      %v3154 = vmul.f32 %v3122, %v268
      %v3155 = vmul.f32 %v3123, %v269
      %v3156 = vmul.f32 %v3124, %v270
      %v3157 = vmul.f32 %v3125, %v271
      %v3158 = vmul.f32 %v3126, %v272
      %v3159 = vmul.f32 %v3127, %v273
      %v3160 = vmul.f32 %v3128, %v274
      %v3161 = vmul.f32 %v3129, %v275
      %v3162 = vmul.f32 %v3130, %v276
      %v3163 = vmul.f32 %v3131, %v277
      %v3164 = vmul.f32 %v3132, %v278
      %v3165 = vmul.f32 %v3133, %v279
      %v3166 = vmul.f32 %v3134, %v280
      %v3167 = vmul.f32 %v3135, %v281
      %v3168 = vmul.f32 %v3136, %v282
      %v3169 = vmul.f32 %v3137, %v283
      %v3170 = vmul.f32 %v3138, %v284
      %v3171 = vmul.f32 %v3139, %v285
      %v3172 = vmul.f32 %v3140, %v286
      %v3173 = vmul.f32 %v3141, %v287
      %v3174 = vmul.f32 %v3142, %v288
      %v3175 = vmul.f32 %v3143, %v289
      %v3176 = vmul.f32 %v3144, %v290
      %v3177 = vmul.f32 %v3145, %v291
      %v3178 = vmul.f32 %v3146, %v292
      %v3179 = vmul.f32 %v3147, %v293
      %v3180 = vmul.f32 %v3148, %v294
      %v3181 = vmul.f32 %v3149, %v295
      %3214 = vrot.lane.b32.xlu0 %v3150, 112
      %v3215 = vpop.permute.xlu0 %3214
      %3216 = vrot.lane.b32.xlu0 %v3151, 112
      %v3217 = vpop.permute.xlu0 %3216
      %3218 = vrot.lane.b32.xlu0 %v3152, 112
      %v3219 = vpop.permute.xlu0 %3218
      %3220 = vrot.lane.b32.xlu0 %v3153, 112
      %v3221 = vpop.permute.xlu0 %3220
      %3222 = vrot.lane.b32.xlu0 %v3154, 112
      %v3223 = vpop.permute.xlu0 %3222
      %3224 = vrot.lane.b32.xlu0 %v3155, 112
      %v3225 = vpop.permute.xlu0 %3224
      %3226 = vrot.lane.b32.xlu0 %v3156, 112
      %v3227 = vpop.permute.xlu0 %3226
      %3228 = vrot.lane.b32.xlu0 %v3157, 112
      %v3229 = vpop.permute.xlu0 %3228
      %3230 = vrot.lane.b32.xlu0 %v3158, 112
      %v3231 = vpop.permute.xlu0 %3230
      %3232 = vrot.lane.b32.xlu0 %v3159, 112
      %v3233 = vpop.permute.xlu0 %3232
      %3234 = vrot.lane.b32.xlu0 %v3160, 112
      %v3235 = vpop.permute.xlu0 %3234
      %3236 = vrot.lane.b32.xlu0 %v3161, 112
      %v3237 = vpop.permute.xlu0 %3236
      %3238 = vrot.lane.b32.xlu0 %v3162, 112
      %v3239 = vpop.permute.xlu0 %3238
      %3240 = vrot.lane.b32.xlu0 %v3163, 112
      %v3241 = vpop.permute.xlu0 %3240
      %3242 = vrot.lane.b32.xlu0 %v3164, 112
      %v3243 = vpop.permute.xlu0 %3242
      %3244 = vrot.lane.b32.xlu0 %v3165, 112
      %v3245 = vpop.permute.xlu0 %3244
      %3246 = vrot.lane.b32.xlu0 %v3166, 112
      %v3247 = vpop.permute.xlu0 %3246
      %3248 = vrot.lane.b32.xlu0 %v3167, 112
      %v3249 = vpop.permute.xlu0 %3248
      %3250 = vrot.lane.b32.xlu0 %v3168, 112
      %v3251 = vpop.permute.xlu0 %3250
      %3252 = vrot.lane.b32.xlu0 %v3169, 112
      %v3253 = vpop.permute.xlu0 %3252
      %3254 = vrot.lane.b32.xlu0 %v3170, 112
      %v3255 = vpop.permute.xlu0 %3254
      %3256 = vrot.lane.b32.xlu0 %v3171, 112
      %v3257 = vpop.permute.xlu0 %3256
      %3258 = vrot.lane.b32.xlu0 %v3172, 112
      %v3259 = vpop.permute.xlu0 %3258
      %3260 = vrot.lane.b32.xlu0 %v3173, 112
      %v3261 = vpop.permute.xlu0 %3260
      %3262 = vrot.lane.b32.xlu0 %v3174, 112
      %v3263 = vpop.permute.xlu0 %3262
      %3264 = vrot.lane.b32.xlu0 %v3175, 112
      %v3265 = vpop.permute.xlu0 %3264
      %3266 = vrot.lane.b32.xlu0 %v3176, 112
      %v3267 = vpop.permute.xlu0 %3266
      %3268 = vrot.lane.b32.xlu0 %v3177, 112
      %v3269 = vpop.permute.xlu0 %3268
      %3270 = vrot.lane.b32.xlu0 %v3178, 112
      %v3271 = vpop.permute.xlu0 %3270
      %3272 = vrot.lane.b32.xlu0 %v3179, 112
      %v3273 = vpop.permute.xlu0 %3272
      %3274 = vrot.lane.b32.xlu0 %v3180, 112
      %v3275 = vpop.permute.xlu0 %3274
      %3276 = vrot.lane.b32.xlu0 %v3181, 112
      %v3277 = vpop.permute.xlu0 %3276
      %v3310 = vsub.f32 %v3150, %v3215
      %v3311 = vsub.f32 %v3151, %v3217
      %v3312 = vsub.f32 %v3152, %v3219
      %v3313 = vsub.f32 %v3153, %v3221
      %v3314 = vsub.f32 %v3154, %v3223
      %v3315 = vsub.f32 %v3155, %v3225
      %v3316 = vsub.f32 %v3156, %v3227
      %v3317 = vsub.f32 %v3157, %v3229
      %v3318 = vsub.f32 %v3158, %v3231
      %v3319 = vsub.f32 %v3159, %v3233
      %v3320 = vsub.f32 %v3160, %v3235
      %v3321 = vsub.f32 %v3161, %v3237
      %v3322 = vsub.f32 %v3162, %v3239
      %v3323 = vsub.f32 %v3163, %v3241
      %v3324 = vsub.f32 %v3164, %v3243
      %v3325 = vsub.f32 %v3165, %v3245
      %v3326 = vsub.f32 %v3166, %v3247
      %v3327 = vsub.f32 %v3167, %v3249
      %v3328 = vsub.f32 %v3168, %v3251
      %v3329 = vsub.f32 %v3169, %v3253
      %v3330 = vsub.f32 %v3170, %v3255
      %v3331 = vsub.f32 %v3171, %v3257
      %v3332 = vsub.f32 %v3172, %v3259
      %v3333 = vsub.f32 %v3173, %v3261
      %v3334 = vsub.f32 %v3174, %v3263
      %v3335 = vsub.f32 %v3175, %v3265
      %v3336 = vsub.f32 %v3176, %v3267
      %v3337 = vsub.f32 %v3177, %v3269
      %v3338 = vsub.f32 %v3178, %v3271
      %v3339 = vsub.f32 %v3179, %v3273
      %v3340 = vsub.f32 %v3180, %v3275
      %v3341 = vsub.f32 %v3181, %v3277
      %3342 = vst.msk [vmem:[%s262] sm:$0xff] %vm520, %v3310
      %3343 = vst.msk [vmem:[%s262 + $0x8] sm:$0xff] %vm520, %v3311
      %3344 = vst.msk [vmem:[%s262 + $0x10] sm:$0xff] %vm520, %v3312
      %3345 = vst.msk [vmem:[%s262 + $0x18] sm:$0xff] %vm520, %v3313
      %3346 = vst.msk [vmem:[%s262 + $0x20] sm:$0xff] %vm520, %v3314
      %3347 = vst.msk [vmem:[%s262 + $0x28] sm:$0xff] %vm520, %v3315
      %3348 = vst.msk [vmem:[%s262 + $0x30] sm:$0xff] %vm520, %v3316
      %3349 = vst.msk [vmem:[%s262 + $0x38] sm:$0xff] %vm520, %v3317
      %3350 = vst.msk [vmem:[%s262 + $0x40] sm:$0xff] %vm520, %v3318
      %3351 = vst.msk [vmem:[%s262 + $0x48] sm:$0xff] %vm520, %v3319
      %3352 = vst.msk [vmem:[%s262 + $0x50] sm:$0xff] %vm520, %v3320
      %3353 = vst.msk [vmem:[%s262 + $0x58] sm:$0xff] %vm520, %v3321
      %3354 = vst.msk [vmem:[%s262 + $0x60] sm:$0xff] %vm520, %v3322
      %3355 = vst.msk [vmem:[%s262 + $0x68] sm:$0xff] %vm520, %v3323
      %3356 = vst.msk [vmem:[%s262 + $0x70] sm:$0xff] %vm520, %v3324
      %3357 = vst.msk [vmem:[%s262 + $0x78] sm:$0xff] %vm520, %v3325
      %3358 = vst.msk [vmem:[%s262 + $0x80] sm:$0xff] %vm520, %v3326
      %3359 = vst.msk [vmem:[%s262 + $0x88] sm:$0xff] %vm520, %v3327
      %3360 = vst.msk [vmem:[%s262 + $0x90] sm:$0xff] %vm520, %v3328
      %3361 = vst.msk [vmem:[%s262 + $0x98] sm:$0xff] %vm520, %v3329
      %3362 = vst.msk [vmem:[%s262 + $0xa0] sm:$0xff] %vm520, %v3330
      %3363 = vst.msk [vmem:[%s262 + $0xa8] sm:$0xff] %vm520, %v3331
      %3364 = vst.msk [vmem:[%s262 + $0xb0] sm:$0xff] %vm520, %v3332
      %3365 = vst.msk [vmem:[%s262 + $0xb8] sm:$0xff] %vm520, %v3333
      %3366 = vst.msk [vmem:[%s262 + $0xc0] sm:$0xff] %vm520, %v3334
      %3367 = vst.msk [vmem:[%s262 + $0xc8] sm:$0xff] %vm520, %v3335
      %3368 = vst.msk [vmem:[%s262 + $0xd0] sm:$0xff] %vm520, %v3336
      %3369 = vst.msk [vmem:[%s262 + $0xd8] sm:$0xff] %vm520, %v3337
      %3370 = vst.msk [vmem:[%s262 + $0xe0] sm:$0xff] %vm520, %v3338
      %3371 = vst.msk [vmem:[%s262 + $0xe8] sm:$0xff] %vm520, %v3339
      %3372 = vst.msk [vmem:[%s262 + $0xf0] sm:$0xff] %vm520, %v3340
      %3373 = vst.msk [vmem:[%s262 + $0xf8] sm:$0xff] %vm520, %v3341
      %v3374 = vmul.f32 %v3118, %v586
      %v3375 = vmul.f32 %v3119, %v588
      %v3376 = vmul.f32 %v3120, %v590
      %v3377 = vmul.f32 %v3121, %v592
      %v3378 = vmul.f32 %v3122, %v594
      %v3379 = vmul.f32 %v3123, %v596
      %v3380 = vmul.f32 %v3124, %v598
      %v3381 = vmul.f32 %v3125, %v600
      %v3382 = vmul.f32 %v3126, %v602
      %v3383 = vmul.f32 %v3127, %v604
      %v3384 = vmul.f32 %v3128, %v606
      %v3385 = vmul.f32 %v3129, %v608
      %v3386 = vmul.f32 %v3130, %v610
      %v3387 = vmul.f32 %v3131, %v612
      %v3388 = vmul.f32 %v3132, %v614
      %v3389 = vmul.f32 %v3133, %v616
      %v3390 = vmul.f32 %v3134, %v618
      %v3391 = vmul.f32 %v3135, %v620
      %v3392 = vmul.f32 %v3136, %v622
      %v3393 = vmul.f32 %v3137, %v624
      %v3394 = vmul.f32 %v3138, %v626
      %v3395 = vmul.f32 %v3139, %v628
      %v3396 = vmul.f32 %v3140, %v630
      %v3397 = vmul.f32 %v3141, %v632
      %v3398 = vmul.f32 %v3142, %v634
      %v3399 = vmul.f32 %v3143, %v636
      %v3400 = vmul.f32 %v3144, %v638
      %v3401 = vmul.f32 %v3145, %v640
      %v3402 = vmul.f32 %v3146, %v642
      %v3403 = vmul.f32 %v3147, %v644
      %v3404 = vmul.f32 %v3148, %v646
      %v3405 = vmul.f32 %v3149, %v648
      %v3406 = vmul.f32 %v3118, %v714
      %v3407 = vmul.f32 %v3119, %v716
      %v3408 = vmul.f32 %v3120, %v718
      %v3409 = vmul.f32 %v3121, %v720
      %v3410 = vmul.f32 %v3122, %v722
      %v3411 = vmul.f32 %v3123, %v724
      %v3412 = vmul.f32 %v3124, %v726
      %v3413 = vmul.f32 %v3125, %v728
      %v3414 = vmul.f32 %v3126, %v730
      %v3415 = vmul.f32 %v3127, %v732
      %v3416 = vmul.f32 %v3128, %v734
      %v3417 = vmul.f32 %v3129, %v736
      %v3418 = vmul.f32 %v3130, %v738
      %v3419 = vmul.f32 %v3131, %v740
      %v3420 = vmul.f32 %v3132, %v742
      %v3421 = vmul.f32 %v3133, %v744
      %v3422 = vmul.f32 %v3134, %v746
      %v3423 = vmul.f32 %v3135, %v748
      %v3424 = vmul.f32 %v3136, %v750
      %v3425 = vmul.f32 %v3137, %v752
      %v3426 = vmul.f32 %v3138, %v754
      %v3427 = vmul.f32 %v3139, %v756
      %v3428 = vmul.f32 %v3140, %v758
      %v3429 = vmul.f32 %v3141, %v760
      %v3430 = vmul.f32 %v3142, %v762
      %v3431 = vmul.f32 %v3143, %v764
      %v3432 = vmul.f32 %v3144, %v766
      %v3433 = vmul.f32 %v3145, %v768
      %v3434 = vmul.f32 %v3146, %v770
      %v3435 = vmul.f32 %v3147, %v772
      %v3436 = vmul.f32 %v3148, %v774
      %v3437 = vmul.f32 %v3149, %v776
      %3470 = vrot.lane.b32.xlu0 %v3406, 16
      %v3471 = vpop.permute.xlu0 %3470
      %3472 = vrot.lane.b32.xlu0 %v3407, 16
      %v3473 = vpop.permute.xlu0 %3472
      %3474 = vrot.lane.b32.xlu0 %v3408, 16
      %v3475 = vpop.permute.xlu0 %3474
      %3476 = vrot.lane.b32.xlu0 %v3409, 16
      %v3477 = vpop.permute.xlu0 %3476
      %3478 = vrot.lane.b32.xlu0 %v3410, 16
      %v3479 = vpop.permute.xlu0 %3478
      %3480 = vrot.lane.b32.xlu0 %v3411, 16
      %v3481 = vpop.permute.xlu0 %3480
      %3482 = vrot.lane.b32.xlu0 %v3412, 16
      %v3483 = vpop.permute.xlu0 %3482
      %3484 = vrot.lane.b32.xlu0 %v3413, 16
      %v3485 = vpop.permute.xlu0 %3484
      %3486 = vrot.lane.b32.xlu0 %v3414, 16
      %v3487 = vpop.permute.xlu0 %3486
      %3488 = vrot.lane.b32.xlu0 %v3415, 16
      %v3489 = vpop.permute.xlu0 %3488
      %3490 = vrot.lane.b32.xlu0 %v3416, 16
      %v3491 = vpop.permute.xlu0 %3490
      %3492 = vrot.lane.b32.xlu0 %v3417, 16
      %v3493 = vpop.permute.xlu0 %3492
      %3494 = vrot.lane.b32.xlu0 %v3418, 16
      %v3495 = vpop.permute.xlu0 %3494
      %3496 = vrot.lane.b32.xlu0 %v3419, 16
      %v3497 = vpop.permute.xlu0 %3496
      %3498 = vrot.lane.b32.xlu0 %v3420, 16
      %v3499 = vpop.permute.xlu0 %3498
      %3500 = vrot.lane.b32.xlu0 %v3421, 16
      %v3501 = vpop.permute.xlu0 %3500
      %3502 = vrot.lane.b32.xlu0 %v3422, 16
      %v3503 = vpop.permute.xlu0 %3502
      %3504 = vrot.lane.b32.xlu0 %v3423, 16
      %v3505 = vpop.permute.xlu0 %3504
      %3506 = vrot.lane.b32.xlu0 %v3424, 16
      %v3507 = vpop.permute.xlu0 %3506
      %3508 = vrot.lane.b32.xlu0 %v3425, 16
      %v3509 = vpop.permute.xlu0 %3508
      %3510 = vrot.lane.b32.xlu0 %v3426, 16
      %v3511 = vpop.permute.xlu0 %3510
      %3512 = vrot.lane.b32.xlu0 %v3427, 16
      %v3513 = vpop.permute.xlu0 %3512
      %3514 = vrot.lane.b32.xlu0 %v3428, 16
      %v3515 = vpop.permute.xlu0 %3514
      %3516 = vrot.lane.b32.xlu0 %v3429, 16
      %v3517 = vpop.permute.xlu0 %3516
      %3518 = vrot.lane.b32.xlu0 %v3430, 16
      %v3519 = vpop.permute.xlu0 %3518
      %3520 = vrot.lane.b32.xlu0 %v3431, 16
      %v3521 = vpop.permute.xlu0 %3520
      %3522 = vrot.lane.b32.xlu0 %v3432, 16
      %v3523 = vpop.permute.xlu0 %3522
      %3524 = vrot.lane.b32.xlu0 %v3433, 16
      %v3525 = vpop.permute.xlu0 %3524
      %3526 = vrot.lane.b32.xlu0 %v3434, 16
      %v3527 = vpop.permute.xlu0 %3526
      %3528 = vrot.lane.b32.xlu0 %v3435, 16
      %v3529 = vpop.permute.xlu0 %3528
      %3530 = vrot.lane.b32.xlu0 %v3436, 16
      %v3531 = vpop.permute.xlu0 %3530
      %3532 = vrot.lane.b32.xlu0 %v3437, 16
      %v3533 = vpop.permute.xlu0 %3532
      %v3566 = vadd.f32 %v3374, %v3471
      %v3567 = vadd.f32 %v3375, %v3473
      %v3568 = vadd.f32 %v3376, %v3475
      %v3569 = vadd.f32 %v3377, %v3477
      %v3570 = vadd.f32 %v3378, %v3479
      %v3571 = vadd.f32 %v3379, %v3481
      %v3572 = vadd.f32 %v3380, %v3483
      %v3573 = vadd.f32 %v3381, %v3485
      %v3574 = vadd.f32 %v3382, %v3487
      %v3575 = vadd.f32 %v3383, %v3489
      %v3576 = vadd.f32 %v3384, %v3491
      %v3577 = vadd.f32 %v3385, %v3493
      %v3578 = vadd.f32 %v3386, %v3495
      %v3579 = vadd.f32 %v3387, %v3497
      %v3580 = vadd.f32 %v3388, %v3499
      %v3581 = vadd.f32 %v3389, %v3501
      %v3582 = vadd.f32 %v3390, %v3503
      %v3583 = vadd.f32 %v3391, %v3505
      %v3584 = vadd.f32 %v3392, %v3507
      %v3585 = vadd.f32 %v3393, %v3509
      %v3586 = vadd.f32 %v3394, %v3511
      %v3587 = vadd.f32 %v3395, %v3513
      %v3588 = vadd.f32 %v3396, %v3515
      %v3589 = vadd.f32 %v3397, %v3517
      %v3590 = vadd.f32 %v3398, %v3519
      %v3591 = vadd.f32 %v3399, %v3521
      %v3592 = vadd.f32 %v3400, %v3523
      %v3593 = vadd.f32 %v3401, %v3525
      %v3594 = vadd.f32 %v3402, %v3527
      %v3595 = vadd.f32 %v3403, %v3529
      %v3596 = vadd.f32 %v3404, %v3531
      %v3597 = vadd.f32 %v3405, %v3533
      %3598 = vst.msk [vmem:[%s262] sm:$0xff] %vm1001, %v3566
      %3599 = vst.msk [vmem:[%s262 + $0x8] sm:$0xff] %vm1001, %v3567
      %3600 = vst.msk [vmem:[%s262 + $0x10] sm:$0xff] %vm1001, %v3568
      %3601 = vst.msk [vmem:[%s262 + $0x18] sm:$0xff] %vm1001, %v3569
      %3602 = vst.msk [vmem:[%s262 + $0x20] sm:$0xff] %vm1001, %v3570
      %3603 = vst.msk [vmem:[%s262 + $0x28] sm:$0xff] %vm1001, %v3571
      %3604 = vst.msk [vmem:[%s262 + $0x30] sm:$0xff] %vm1001, %v3572
      %3605 = vst.msk [vmem:[%s262 + $0x38] sm:$0xff] %vm1001, %v3573
      %3606 = vst.msk [vmem:[%s262 + $0x40] sm:$0xff] %vm1001, %v3574
      %3607 = vst.msk [vmem:[%s262 + $0x48] sm:$0xff] %vm1001, %v3575
      %3608 = vst.msk [vmem:[%s262 + $0x50] sm:$0xff] %vm1001, %v3576
      %3609 = vst.msk [vmem:[%s262 + $0x58] sm:$0xff] %vm1001, %v3577
      %3610 = vst.msk [vmem:[%s262 + $0x60] sm:$0xff] %vm1001, %v3578
      %3611 = vst.msk [vmem:[%s262 + $0x68] sm:$0xff] %vm1001, %v3579
      %3612 = vst.msk [vmem:[%s262 + $0x70] sm:$0xff] %vm1001, %v3580
      %3613 = vst.msk [vmem:[%s262 + $0x78] sm:$0xff] %vm1001, %v3581
      %3614 = vst.msk [vmem:[%s262 + $0x80] sm:$0xff] %vm1001, %v3582
      %3615 = vst.msk [vmem:[%s262 + $0x88] sm:$0xff] %vm1001, %v3583
      %3616 = vst.msk [vmem:[%s262 + $0x90] sm:$0xff] %vm1001, %v3584
      %3617 = vst.msk [vmem:[%s262 + $0x98] sm:$0xff] %vm1001, %v3585
      %3618 = vst.msk [vmem:[%s262 + $0xa0] sm:$0xff] %vm1001, %v3586
      %3619 = vst.msk [vmem:[%s262 + $0xa8] sm:$0xff] %vm1001, %v3587
      %3620 = vst.msk [vmem:[%s262 + $0xb0] sm:$0xff] %vm1001, %v3588
      %3621 = vst.msk [vmem:[%s262 + $0xb8] sm:$0xff] %vm1001, %v3589
      %3622 = vst.msk [vmem:[%s262 + $0xc0] sm:$0xff] %vm1001, %v3590
      %3623 = vst.msk [vmem:[%s262 + $0xc8] sm:$0xff] %vm1001, %v3591
      %3624 = vst.msk [vmem:[%s262 + $0xd0] sm:$0xff] %vm1001, %v3592
      %3625 = vst.msk [vmem:[%s262 + $0xd8] sm:$0xff] %vm1001, %v3593
      %3626 = vst.msk [vmem:[%s262 + $0xe0] sm:$0xff] %vm1001, %v3594
      %3627 = vst.msk [vmem:[%s262 + $0xe8] sm:$0xff] %vm1001, %v3595
      %3628 = vst.msk [vmem:[%s262 + $0xf0] sm:$0xff] %vm1001, %v3596
      %3629 = vst.msk [vmem:[%s262 + $0xf8] sm:$0xff] %vm1001, %v3597
      %v3630 = vld [vmem:[%s243] sm:$0xff]
      %v3631 = vld [vmem:[%s243 + $0x8] sm:$0xff]
      %v3632 = vld [vmem:[%s243 + $0x10] sm:$0xff]
      %v3633 = vld [vmem:[%s243 + $0x18] sm:$0xff]
      %v3634 = vld [vmem:[%s243 + $0x20] sm:$0xff]
      %v3635 = vld [vmem:[%s243 + $0x28] sm:$0xff]
      %v3636 = vld [vmem:[%s243 + $0x30] sm:$0xff]
      %v3637 = vld [vmem:[%s243 + $0x38] sm:$0xff]
      %v3638 = vld [vmem:[%s243 + $0x40] sm:$0xff]
      %v3639 = vld [vmem:[%s243 + $0x48] sm:$0xff]
      %v3640 = vld [vmem:[%s243 + $0x50] sm:$0xff]
      %v3641 = vld [vmem:[%s243 + $0x58] sm:$0xff]
      %v3642 = vld [vmem:[%s243 + $0x60] sm:$0xff]
      %v3643 = vld [vmem:[%s243 + $0x68] sm:$0xff]
      %v3644 = vld [vmem:[%s243 + $0x70] sm:$0xff]
      %v3645 = vld [vmem:[%s243 + $0x78] sm:$0xff]
      %v3646 = vld [vmem:[%s243 + $0x80] sm:$0xff]
      %v3647 = vld [vmem:[%s243 + $0x88] sm:$0xff]
      %v3648 = vld [vmem:[%s243 + $0x90] sm:$0xff]
      %v3649 = vld [vmem:[%s243 + $0x98] sm:$0xff]
      %v3650 = vld [vmem:[%s243 + $0xa0] sm:$0xff]
      %v3651 = vld [vmem:[%s243 + $0xa8] sm:$0xff]
      %v3652 = vld [vmem:[%s243 + $0xb0] sm:$0xff]
      %v3653 = vld [vmem:[%s243 + $0xb8] sm:$0xff]
      %v3654 = vld [vmem:[%s243 + $0xc0] sm:$0xff]
      %v3655 = vld [vmem:[%s243 + $0xc8] sm:$0xff]
      %v3656 = vld [vmem:[%s243 + $0xd0] sm:$0xff]
      %v3657 = vld [vmem:[%s243 + $0xd8] sm:$0xff]
      %v3658 = vld [vmem:[%s243 + $0xe0] sm:$0xff]
      %v3659 = vld [vmem:[%s243 + $0xe8] sm:$0xff]
      %v3660 = vld [vmem:[%s243 + $0xf0] sm:$0xff]
      %v3661 = vld [vmem:[%s243 + $0xf8] sm:$0xff]
      %3662 = vst.msk [vmem:[%s262] sm:$0xff] %vm1066, %v3630
      %3663 = vst.msk [vmem:[%s262 + $0x8] sm:$0xff] %vm1066, %v3631
      %3664 = vst.msk [vmem:[%s262 + $0x10] sm:$0xff] %vm1066, %v3632
      %3665 = vst.msk [vmem:[%s262 + $0x18] sm:$0xff] %vm1066, %v3633
      %3666 = vst.msk [vmem:[%s262 + $0x20] sm:$0xff] %vm1066, %v3634
      %3667 = vst.msk [vmem:[%s262 + $0x28] sm:$0xff] %vm1066, %v3635
      %3668 = vst.msk [vmem:[%s262 + $0x30] sm:$0xff] %vm1066, %v3636
      %3669 = vst.msk [vmem:[%s262 + $0x38] sm:$0xff] %vm1066, %v3637
      %3670 = vst.msk [vmem:[%s262 + $0x40] sm:$0xff] %vm1066, %v3638
      %3671 = vst.msk [vmem:[%s262 + $0x48] sm:$0xff] %vm1066, %v3639
      %3672 = vst.msk [vmem:[%s262 + $0x50] sm:$0xff] %vm1066, %v3640
      %3673 = vst.msk [vmem:[%s262 + $0x58] sm:$0xff] %vm1066, %v3641
      %3674 = vst.msk [vmem:[%s262 + $0x60] sm:$0xff] %vm1066, %v3642
      %3675 = vst.msk [vmem:[%s262 + $0x68] sm:$0xff] %vm1066, %v3643
      %3676 = vst.msk [vmem:[%s262 + $0x70] sm:$0xff] %vm1066, %v3644
      %3677 = vst.msk [vmem:[%s262 + $0x78] sm:$0xff] %vm1066, %v3645
      %3678 = vst.msk [vmem:[%s262 + $0x80] sm:$0xff] %vm1066, %v3646
      %3679 = vst.msk [vmem:[%s262 + $0x88] sm:$0xff] %vm1066, %v3647
      %3680 = vst.msk [vmem:[%s262 + $0x90] sm:$0xff] %vm1066, %v3648
      %3681 = vst.msk [vmem:[%s262 + $0x98] sm:$0xff] %vm1066, %v3649
      %3682 = vst.msk [vmem:[%s262 + $0xa0] sm:$0xff] %vm1066, %v3650
      %3683 = vst.msk [vmem:[%s262 + $0xa8] sm:$0xff] %vm1066, %v3651
      %3684 = vst.msk [vmem:[%s262 + $0xb0] sm:$0xff] %vm1066, %v3652
      %3685 = vst.msk [vmem:[%s262 + $0xb8] sm:$0xff] %vm1066, %v3653
      %3686 = vst.msk [vmem:[%s262 + $0xc0] sm:$0xff] %vm1066, %v3654
      %3687 = vst.msk [vmem:[%s262 + $0xc8] sm:$0xff] %vm1066, %v3655
      %3688 = vst.msk [vmem:[%s262 + $0xd0] sm:$0xff] %vm1066, %v3656
      %3689 = vst.msk [vmem:[%s262 + $0xd8] sm:$0xff] %vm1066, %v3657
      %3690 = vst.msk [vmem:[%s262 + $0xe0] sm:$0xff] %vm1066, %v3658
      %3691 = vst.msk [vmem:[%s262 + $0xe8] sm:$0xff] %vm1066, %v3659
      %3692 = vst.msk [vmem:[%s262 + $0xf0] sm:$0xff] %vm1066, %v3660
      %3693 = vst.msk [vmem:[%s262 + $0xf8] sm:$0xff] %vm1066, %v3661
      %v3694 = vld [vmem:[%s243] sm:$0xff]
      %v3695 = vld [vmem:[%s243 + $0x8] sm:$0xff]
      %v3696 = vld [vmem:[%s243 + $0x10] sm:$0xff]
      %v3697 = vld [vmem:[%s243 + $0x18] sm:$0xff]
      %v3698 = vld [vmem:[%s243 + $0x20] sm:$0xff]
      %v3699 = vld [vmem:[%s243 + $0x28] sm:$0xff]
      %v3700 = vld [vmem:[%s243 + $0x30] sm:$0xff]
      %v3701 = vld [vmem:[%s243 + $0x38] sm:$0xff]
      %v3702 = vld [vmem:[%s243 + $0x40] sm:$0xff]
      %v3703 = vld [vmem:[%s243 + $0x48] sm:$0xff]
      %v3704 = vld [vmem:[%s243 + $0x50] sm:$0xff]
      %v3705 = vld [vmem:[%s243 + $0x58] sm:$0xff]
      %v3706 = vld [vmem:[%s243 + $0x60] sm:$0xff]
      %v3707 = vld [vmem:[%s243 + $0x68] sm:$0xff]
      %v3708 = vld [vmem:[%s243 + $0x70] sm:$0xff]
      %v3709 = vld [vmem:[%s243 + $0x78] sm:$0xff]
      %v3710 = vld [vmem:[%s243 + $0x80] sm:$0xff]
      %v3711 = vld [vmem:[%s243 + $0x88] sm:$0xff]
      %v3712 = vld [vmem:[%s243 + $0x90] sm:$0xff]
      %v3713 = vld [vmem:[%s243 + $0x98] sm:$0xff]
      %v3714 = vld [vmem:[%s243 + $0xa0] sm:$0xff]
      %v3715 = vld [vmem:[%s243 + $0xa8] sm:$0xff]
      %v3716 = vld [vmem:[%s243 + $0xb0] sm:$0xff]
      %v3717 = vld [vmem:[%s243 + $0xb8] sm:$0xff]
      %v3718 = vld [vmem:[%s243 + $0xc0] sm:$0xff]
      %v3719 = vld [vmem:[%s243 + $0xc8] sm:$0xff]
      %v3720 = vld [vmem:[%s243 + $0xd0] sm:$0xff]
      %v3721 = vld [vmem:[%s243 + $0xd8] sm:$0xff]
      %v3722 = vld [vmem:[%s243 + $0xe0] sm:$0xff]
      %v3723 = vld [vmem:[%s243 + $0xe8] sm:$0xff]
      %v3724 = vld [vmem:[%s243 + $0xf0] sm:$0xff]
      %v3725 = vld [vmem:[%s243 + $0xf8] sm:$0xff]
      %v3726 = vmul.f32 %v3694, %v1132
      %v3727 = vmul.f32 %v3695, %v1134
      %v3728 = vmul.f32 %v3696, %v1136
      %v3729 = vmul.f32 %v3697, %v1138
      %v3730 = vmul.f32 %v3698, %v1140
      %v3731 = vmul.f32 %v3699, %v1142
      %v3732 = vmul.f32 %v3700, %v1144
      %v3733 = vmul.f32 %v3701, %v1146
      %v3734 = vmul.f32 %v3702, %v1148
      %v3735 = vmul.f32 %v3703, %v1150
      %v3736 = vmul.f32 %v3704, %v1152
      %v3737 = vmul.f32 %v3705, %v1154
      %v3738 = vmul.f32 %v3706, %v1156
      %v3739 = vmul.f32 %v3707, %v1158
      %v3740 = vmul.f32 %v3708, %v1160
      %v3741 = vmul.f32 %v3709, %v1162
      %v3742 = vmul.f32 %v3710, %v1164
      %v3743 = vmul.f32 %v3711, %v1166
      %v3744 = vmul.f32 %v3712, %v1168
      %v3745 = vmul.f32 %v3713, %v1170
      %v3746 = vmul.f32 %v3714, %v1172
      %v3747 = vmul.f32 %v3715, %v1174
      %v3748 = vmul.f32 %v3716, %v1176
      %v3749 = vmul.f32 %v3717, %v1178
      %v3750 = vmul.f32 %v3718, %v1180
      %v3751 = vmul.f32 %v3719, %v1182
      %v3752 = vmul.f32 %v3720, %v1184
      %v3753 = vmul.f32 %v3721, %v1186
      %v3754 = vmul.f32 %v3722, %v1188
      %v3755 = vmul.f32 %v3723, %v1190
      %v3756 = vmul.f32 %v3724, %v1192
      %v3757 = vmul.f32 %v3725, %v1194
      %3790 = vrot.lane.b32.xlu0 %v3726, 112
      %v3791 = vpop.permute.xlu0 %3790
      %3792 = vrot.lane.b32.xlu0 %v3727, 112
      %v3793 = vpop.permute.xlu0 %3792
      %3794 = vrot.lane.b32.xlu0 %v3728, 112
      %v3795 = vpop.permute.xlu0 %3794
      %3796 = vrot.lane.b32.xlu0 %v3729, 112
      %v3797 = vpop.permute.xlu0 %3796
      %3798 = vrot.lane.b32.xlu0 %v3730, 112
      %v3799 = vpop.permute.xlu0 %3798
      %3800 = vrot.lane.b32.xlu0 %v3731, 112
      %v3801 = vpop.permute.xlu0 %3800
      %3802 = vrot.lane.b32.xlu0 %v3732, 112
      %v3803 = vpop.permute.xlu0 %3802
      %3804 = vrot.lane.b32.xlu0 %v3733, 112
      %v3805 = vpop.permute.xlu0 %3804
      %3806 = vrot.lane.b32.xlu0 %v3734, 112
      %v3807 = vpop.permute.xlu0 %3806
      %3808 = vrot.lane.b32.xlu0 %v3735, 112
      %v3809 = vpop.permute.xlu0 %3808
      %3810 = vrot.lane.b32.xlu0 %v3736, 112
      %v3811 = vpop.permute.xlu0 %3810
      %3812 = vrot.lane.b32.xlu0 %v3737, 112
      %v3813 = vpop.permute.xlu0 %3812
      %3814 = vrot.lane.b32.xlu0 %v3738, 112
      %v3815 = vpop.permute.xlu0 %3814
      %3816 = vrot.lane.b32.xlu0 %v3739, 112
      %v3817 = vpop.permute.xlu0 %3816
      %3818 = vrot.lane.b32.xlu0 %v3740, 112
      %v3819 = vpop.permute.xlu0 %3818
      %3820 = vrot.lane.b32.xlu0 %v3741, 112
      %v3821 = vpop.permute.xlu0 %3820
      %3822 = vrot.lane.b32.xlu0 %v3742, 112
      %v3823 = vpop.permute.xlu0 %3822
      %3824 = vrot.lane.b32.xlu0 %v3743, 112
      %v3825 = vpop.permute.xlu0 %3824
      %3826 = vrot.lane.b32.xlu0 %v3744, 112
      %v3827 = vpop.permute.xlu0 %3826
      %3828 = vrot.lane.b32.xlu0 %v3745, 112
      %v3829 = vpop.permute.xlu0 %3828
      %3830 = vrot.lane.b32.xlu0 %v3746, 112
      %v3831 = vpop.permute.xlu0 %3830
      %3832 = vrot.lane.b32.xlu0 %v3747, 112
      %v3833 = vpop.permute.xlu0 %3832
      %3834 = vrot.lane.b32.xlu0 %v3748, 112
      %v3835 = vpop.permute.xlu0 %3834
      %3836 = vrot.lane.b32.xlu0 %v3749, 112
      %v3837 = vpop.permute.xlu0 %3836
      %3838 = vrot.lane.b32.xlu0 %v3750, 112
      %v3839 = vpop.permute.xlu0 %3838
      %3840 = vrot.lane.b32.xlu0 %v3751, 112
      %v3841 = vpop.permute.xlu0 %3840
      %3842 = vrot.lane.b32.xlu0 %v3752, 112
      %v3843 = vpop.permute.xlu0 %3842
      %3844 = vrot.lane.b32.xlu0 %v3753, 112
      %v3845 = vpop.permute.xlu0 %3844
      %3846 = vrot.lane.b32.xlu0 %v3754, 112
      %v3847 = vpop.permute.xlu0 %3846
      %3848 = vrot.lane.b32.xlu0 %v3755, 112
      %v3849 = vpop.permute.xlu0 %3848
      %3850 = vrot.lane.b32.xlu0 %v3756, 112
      %v3851 = vpop.permute.xlu0 %3850
      %3852 = vrot.lane.b32.xlu0 %v3757, 112
      %v3853 = vpop.permute.xlu0 %3852
      %v3886 = vsub.f32 %v3726, %v3791
      %v3887 = vsub.f32 %v3727, %v3793
      %v3888 = vsub.f32 %v3728, %v3795
      %v3889 = vsub.f32 %v3729, %v3797
      %v3890 = vsub.f32 %v3730, %v3799
      %v3891 = vsub.f32 %v3731, %v3801
      %v3892 = vsub.f32 %v3732, %v3803
      %v3893 = vsub.f32 %v3733, %v3805
      %v3894 = vsub.f32 %v3734, %v3807
      %v3895 = vsub.f32 %v3735, %v3809
      %v3896 = vsub.f32 %v3736, %v3811
      %v3897 = vsub.f32 %v3737, %v3813
      %v3898 = vsub.f32 %v3738, %v3815
      %v3899 = vsub.f32 %v3739, %v3817
      %v3900 = vsub.f32 %v3740, %v3819
      %v3901 = vsub.f32 %v3741, %v3821
      %v3902 = vsub.f32 %v3742, %v3823
      %v3903 = vsub.f32 %v3743, %v3825
      %v3904 = vsub.f32 %v3744, %v3827
      %v3905 = vsub.f32 %v3745, %v3829
      %v3906 = vsub.f32 %v3746, %v3831
      %v3907 = vsub.f32 %v3747, %v3833
      %v3908 = vsub.f32 %v3748, %v3835
      %v3909 = vsub.f32 %v3749, %v3837
      %v3910 = vsub.f32 %v3750, %v3839
      %v3911 = vsub.f32 %v3751, %v3841
      %v3912 = vsub.f32 %v3752, %v3843
      %v3913 = vsub.f32 %v3753, %v3845
      %v3914 = vsub.f32 %v3754, %v3847
      %v3915 = vsub.f32 %v3755, %v3849
      %v3916 = vsub.f32 %v3756, %v3851
      %v3917 = vsub.f32 %v3757, %v3853
      %3918 = vst.msk [vmem:[%s262] sm:$0xff] %vm1419, %v3886
      %3919 = vst.msk [vmem:[%s262 + $0x8] sm:$0xff] %vm1419, %v3887
      %3920 = vst.msk [vmem:[%s262 + $0x10] sm:$0xff] %vm1419, %v3888
      %3921 = vst.msk [vmem:[%s262 + $0x18] sm:$0xff] %vm1419, %v3889
      %3922 = vst.msk [vmem:[%s262 + $0x20] sm:$0xff] %vm1419, %v3890
      %3923 = vst.msk [vmem:[%s262 + $0x28] sm:$0xff] %vm1419, %v3891
      %3924 = vst.msk [vmem:[%s262 + $0x30] sm:$0xff] %vm1419, %v3892
      %3925 = vst.msk [vmem:[%s262 + $0x38] sm:$0xff] %vm1419, %v3893
      %3926 = vst.msk [vmem:[%s262 + $0x40] sm:$0xff] %vm1419, %v3894
      %3927 = vst.msk [vmem:[%s262 + $0x48] sm:$0xff] %vm1419, %v3895
      %3928 = vst.msk [vmem:[%s262 + $0x50] sm:$0xff] %vm1419, %v3896
      %3929 = vst.msk [vmem:[%s262 + $0x58] sm:$0xff] %vm1419, %v3897
      %3930 = vst.msk [vmem:[%s262 + $0x60] sm:$0xff] %vm1419, %v3898
      %3931 = vst.msk [vmem:[%s262 + $0x68] sm:$0xff] %vm1419, %v3899
      %3932 = vst.msk [vmem:[%s262 + $0x70] sm:$0xff] %vm1419, %v3900
      %3933 = vst.msk [vmem:[%s262 + $0x78] sm:$0xff] %vm1419, %v3901
      %3934 = vst.msk [vmem:[%s262 + $0x80] sm:$0xff] %vm1419, %v3902
      %3935 = vst.msk [vmem:[%s262 + $0x88] sm:$0xff] %vm1419, %v3903
      %3936 = vst.msk [vmem:[%s262 + $0x90] sm:$0xff] %vm1419, %v3904
      %3937 = vst.msk [vmem:[%s262 + $0x98] sm:$0xff] %vm1419, %v3905
      %3938 = vst.msk [vmem:[%s262 + $0xa0] sm:$0xff] %vm1419, %v3906
      %3939 = vst.msk [vmem:[%s262 + $0xa8] sm:$0xff] %vm1419, %v3907
      %3940 = vst.msk [vmem:[%s262 + $0xb0] sm:$0xff] %vm1419, %v3908
      %3941 = vst.msk [vmem:[%s262 + $0xb8] sm:$0xff] %vm1419, %v3909
      %3942 = vst.msk [vmem:[%s262 + $0xc0] sm:$0xff] %vm1419, %v3910
      %3943 = vst.msk [vmem:[%s262 + $0xc8] sm:$0xff] %vm1419, %v3911
      %3944 = vst.msk [vmem:[%s262 + $0xd0] sm:$0xff] %vm1419, %v3912
      %3945 = vst.msk [vmem:[%s262 + $0xd8] sm:$0xff] %vm1419, %v3913
      %3946 = vst.msk [vmem:[%s262 + $0xe0] sm:$0xff] %vm1419, %v3914
      %3947 = vst.msk [vmem:[%s262 + $0xe8] sm:$0xff] %vm1419, %v3915
      %3948 = vst.msk [vmem:[%s262 + $0xf0] sm:$0xff] %vm1419, %v3916
      %3949 = vst.msk [vmem:[%s262 + $0xf8] sm:$0xff] %vm1419, %v3917
      %v3950 = vmul.f32 %v3694, %v1453
      %v3951 = vmul.f32 %v3695, %v1455
      %v3952 = vmul.f32 %v3696, %v1457
      %v3953 = vmul.f32 %v3697, %v1459
      %v3954 = vmul.f32 %v3698, %v1461
      %v3955 = vmul.f32 %v3699, %v1463
      %v3956 = vmul.f32 %v3700, %v1465
      %v3957 = vmul.f32 %v3701, %v1467
      %v3958 = vmul.f32 %v3702, %v1469
      %v3959 = vmul.f32 %v3703, %v1471
      %v3960 = vmul.f32 %v3704, %v1473
      %v3961 = vmul.f32 %v3705, %v1475
      %v3962 = vmul.f32 %v3706, %v1477
      %v3963 = vmul.f32 %v3707, %v1479
      %v3964 = vmul.f32 %v3708, %v1481
      %v3965 = vmul.f32 %v3709, %v1483
      %v3966 = vmul.f32 %v3710, %v1485
      %v3967 = vmul.f32 %v3711, %v1487
      %v3968 = vmul.f32 %v3712, %v1489
      %v3969 = vmul.f32 %v3713, %v1491
      %v3970 = vmul.f32 %v3714, %v1493
      %v3971 = vmul.f32 %v3715, %v1495
      %v3972 = vmul.f32 %v3716, %v1497
      %v3973 = vmul.f32 %v3717, %v1499
      %v3974 = vmul.f32 %v3718, %v1501
      %v3975 = vmul.f32 %v3719, %v1503
      %v3976 = vmul.f32 %v3720, %v1505
      %v3977 = vmul.f32 %v3721, %v1507
      %v3978 = vmul.f32 %v3722, %v1509
      %v3979 = vmul.f32 %v3723, %v1511
      %v3980 = vmul.f32 %v3724, %v1513
      %v3981 = vmul.f32 %v3725, %v1515
      %v3982 = vmul.f32 %v3694, %v1581
      %v3983 = vmul.f32 %v3695, %v1583
      %v3984 = vmul.f32 %v3696, %v1585
      %v3985 = vmul.f32 %v3697, %v1587
      %v3986 = vmul.f32 %v3698, %v1589
      %v3987 = vmul.f32 %v3699, %v1591
      %v3988 = vmul.f32 %v3700, %v1593
      %v3989 = vmul.f32 %v3701, %v1595
      %v3990 = vmul.f32 %v3702, %v1597
      %v3991 = vmul.f32 %v3703, %v1599
      %v3992 = vmul.f32 %v3704, %v1601
      %v3993 = vmul.f32 %v3705, %v1603
      %v3994 = vmul.f32 %v3706, %v1605
      %v3995 = vmul.f32 %v3707, %v1607
      %v3996 = vmul.f32 %v3708, %v1609
      %v3997 = vmul.f32 %v3709, %v1611
      %v3998 = vmul.f32 %v3710, %v1613
      %v3999 = vmul.f32 %v3711, %v1615
      %v4000 = vmul.f32 %v3712, %v1617
      %v4001 = vmul.f32 %v3713, %v1619
      %v4002 = vmul.f32 %v3714, %v1621
      %v4003 = vmul.f32 %v3715, %v1623
      %v4004 = vmul.f32 %v3716, %v1625
      %v4005 = vmul.f32 %v3717, %v1627
      %v4006 = vmul.f32 %v3718, %v1629
      %v4007 = vmul.f32 %v3719, %v1631
      %v4008 = vmul.f32 %v3720, %v1633
      %v4009 = vmul.f32 %v3721, %v1635
      %v4010 = vmul.f32 %v3722, %v1637
      %v4011 = vmul.f32 %v3723, %v1639
      %v4012 = vmul.f32 %v3724, %v1641
      %v4013 = vmul.f32 %v3725, %v1643
      %4046 = vrot.lane.b32.xlu0 %v3982, 16
      %v4047 = vpop.permute.xlu0 %4046
      %4048 = vrot.lane.b32.xlu0 %v3983, 16
      %v4049 = vpop.permute.xlu0 %4048
      %4050 = vrot.lane.b32.xlu0 %v3984, 16
      %v4051 = vpop.permute.xlu0 %4050
      %4052 = vrot.lane.b32.xlu0 %v3985, 16
      %v4053 = vpop.permute.xlu0 %4052
      %4054 = vrot.lane.b32.xlu0 %v3986, 16
      %v4055 = vpop.permute.xlu0 %4054
      %4056 = vrot.lane.b32.xlu0 %v3987, 16
      %v4057 = vpop.permute.xlu0 %4056
      %4058 = vrot.lane.b32.xlu0 %v3988, 16
      %v4059 = vpop.permute.xlu0 %4058
      %4060 = vrot.lane.b32.xlu0 %v3989, 16
      %v4061 = vpop.permute.xlu0 %4060
      %4062 = vrot.lane.b32.xlu0 %v3990, 16
      %v4063 = vpop.permute.xlu0 %4062
      %4064 = vrot.lane.b32.xlu0 %v3991, 16
      %v4065 = vpop.permute.xlu0 %4064
      %4066 = vrot.lane.b32.xlu0 %v3992, 16
      %v4067 = vpop.permute.xlu0 %4066
      %4068 = vrot.lane.b32.xlu0 %v3993, 16
      %v4069 = vpop.permute.xlu0 %4068
      %4070 = vrot.lane.b32.xlu0 %v3994, 16
      %v4071 = vpop.permute.xlu0 %4070
      %4072 = vrot.lane.b32.xlu0 %v3995, 16
      %v4073 = vpop.permute.xlu0 %4072
      %4074 = vrot.lane.b32.xlu0 %v3996, 16
      %v4075 = vpop.permute.xlu0 %4074
      %4076 = vrot.lane.b32.xlu0 %v3997, 16
      %v4077 = vpop.permute.xlu0 %4076
      %4078 = vrot.lane.b32.xlu0 %v3998, 16
      %v4079 = vpop.permute.xlu0 %4078
      %4080 = vrot.lane.b32.xlu0 %v3999, 16
      %v4081 = vpop.permute.xlu0 %4080
      %4082 = vrot.lane.b32.xlu0 %v4000, 16
      %v4083 = vpop.permute.xlu0 %4082
      %4084 = vrot.lane.b32.xlu0 %v4001, 16
      %v4085 = vpop.permute.xlu0 %4084
      %4086 = vrot.lane.b32.xlu0 %v4002, 16
      %v4087 = vpop.permute.xlu0 %4086
      %4088 = vrot.lane.b32.xlu0 %v4003, 16
      %v4089 = vpop.permute.xlu0 %4088
      %4090 = vrot.lane.b32.xlu0 %v4004, 16
      %v4091 = vpop.permute.xlu0 %4090
      %4092 = vrot.lane.b32.xlu0 %v4005, 16
      %v4093 = vpop.permute.xlu0 %4092
      %4094 = vrot.lane.b32.xlu0 %v4006, 16
      %v4095 = vpop.permute.xlu0 %4094
      %4096 = vrot.lane.b32.xlu0 %v4007, 16
      %v4097 = vpop.permute.xlu0 %4096
      %4098 = vrot.lane.b32.xlu0 %v4008, 16
      %v4099 = vpop.permute.xlu0 %4098
      %4100 = vrot.lane.b32.xlu0 %v4009, 16
      %v4101 = vpop.permute.xlu0 %4100
      %4102 = vrot.lane.b32.xlu0 %v4010, 16
      %v4103 = vpop.permute.xlu0 %4102
      %4104 = vrot.lane.b32.xlu0 %v4011, 16
      %v4105 = vpop.permute.xlu0 %4104
      %4106 = vrot.lane.b32.xlu0 %v4012, 16
      %v4107 = vpop.permute.xlu0 %4106
      %4108 = vrot.lane.b32.xlu0 %v4013, 16
      %v4109 = vpop.permute.xlu0 %4108
      %v4142 = vadd.f32 %v3950, %v4047
      %v4143 = vadd.f32 %v3951, %v4049
      %v4144 = vadd.f32 %v3952, %v4051
      %v4145 = vadd.f32 %v3953, %v4053
      %v4146 = vadd.f32 %v3954, %v4055
      %v4147 = vadd.f32 %v3955, %v4057
      %v4148 = vadd.f32 %v3956, %v4059
      %v4149 = vadd.f32 %v3957, %v4061
      %v4150 = vadd.f32 %v3958, %v4063
      %v4151 = vadd.f32 %v3959, %v4065
      %v4152 = vadd.f32 %v3960, %v4067
      %v4153 = vadd.f32 %v3961, %v4069
      %v4154 = vadd.f32 %v3962, %v4071
      %v4155 = vadd.f32 %v3963, %v4073
      %v4156 = vadd.f32 %v3964, %v4075
      %v4157 = vadd.f32 %v3965, %v4077
      %v4158 = vadd.f32 %v3966, %v4079
      %v4159 = vadd.f32 %v3967, %v4081
      %v4160 = vadd.f32 %v3968, %v4083
      %v4161 = vadd.f32 %v3969, %v4085
      %v4162 = vadd.f32 %v3970, %v4087
      %v4163 = vadd.f32 %v3971, %v4089
      %v4164 = vadd.f32 %v3972, %v4091
      %v4165 = vadd.f32 %v3973, %v4093
      %v4166 = vadd.f32 %v3974, %v4095
      %v4167 = vadd.f32 %v3975, %v4097
      %v4168 = vadd.f32 %v3976, %v4099
      %v4169 = vadd.f32 %v3977, %v4101
      %v4170 = vadd.f32 %v3978, %v4103
      %v4171 = vadd.f32 %v3979, %v4105
      %v4172 = vadd.f32 %v3980, %v4107
      %v4173 = vadd.f32 %v3981, %v4109
      %4174 = vst.msk [vmem:[%s262] sm:$0xff] %vm1868, %v4142
      %4175 = vst.msk [vmem:[%s262 + $0x8] sm:$0xff] %vm1868, %v4143
      %4176 = vst.msk [vmem:[%s262 + $0x10] sm:$0xff] %vm1868, %v4144
      %4177 = vst.msk [vmem:[%s262 + $0x18] sm:$0xff] %vm1868, %v4145
      %4178 = vst.msk [vmem:[%s262 + $0x20] sm:$0xff] %vm1868, %v4146
      %4179 = vst.msk [vmem:[%s262 + $0x28] sm:$0xff] %vm1868, %v4147
      %4180 = vst.msk [vmem:[%s262 + $0x30] sm:$0xff] %vm1868, %v4148
      %4181 = vst.msk [vmem:[%s262 + $0x38] sm:$0xff] %vm1868, %v4149
      %4182 = vst.msk [vmem:[%s262 + $0x40] sm:$0xff] %vm1868, %v4150
      %4183 = vst.msk [vmem:[%s262 + $0x48] sm:$0xff] %vm1868, %v4151
      %4184 = vst.msk [vmem:[%s262 + $0x50] sm:$0xff] %vm1868, %v4152
      %4185 = vst.msk [vmem:[%s262 + $0x58] sm:$0xff] %vm1868, %v4153
      %4186 = vst.msk [vmem:[%s262 + $0x60] sm:$0xff] %vm1868, %v4154
      %4187 = vst.msk [vmem:[%s262 + $0x68] sm:$0xff] %vm1868, %v4155
      %4188 = vst.msk [vmem:[%s262 + $0x70] sm:$0xff] %vm1868, %v4156
      %4189 = vst.msk [vmem:[%s262 + $0x78] sm:$0xff] %vm1868, %v4157
      %4190 = vst.msk [vmem:[%s262 + $0x80] sm:$0xff] %vm1868, %v4158
      %4191 = vst.msk [vmem:[%s262 + $0x88] sm:$0xff] %vm1868, %v4159
      %4192 = vst.msk [vmem:[%s262 + $0x90] sm:$0xff] %vm1868, %v4160
      %4193 = vst.msk [vmem:[%s262 + $0x98] sm:$0xff] %vm1868, %v4161
      %4194 = vst.msk [vmem:[%s262 + $0xa0] sm:$0xff] %vm1868, %v4162
      %4195 = vst.msk [vmem:[%s262 + $0xa8] sm:$0xff] %vm1868, %v4163
      %4196 = vst.msk [vmem:[%s262 + $0xb0] sm:$0xff] %vm1868, %v4164
      %4197 = vst.msk [vmem:[%s262 + $0xb8] sm:$0xff] %vm1868, %v4165
      %4198 = vst.msk [vmem:[%s262 + $0xc0] sm:$0xff] %vm1868, %v4166
      %4199 = vst.msk [vmem:[%s262 + $0xc8] sm:$0xff] %vm1868, %v4167
      %4200 = vst.msk [vmem:[%s262 + $0xd0] sm:$0xff] %vm1868, %v4168
      %4201 = vst.msk [vmem:[%s262 + $0xd8] sm:$0xff] %vm1868, %v4169
      %4202 = vst.msk [vmem:[%s262 + $0xe0] sm:$0xff] %vm1868, %v4170
      %4203 = vst.msk [vmem:[%s262 + $0xe8] sm:$0xff] %vm1868, %v4171
      %4204 = vst.msk [vmem:[%s262 + $0xf0] sm:$0xff] %vm1868, %v4172
      %4205 = vst.msk [vmem:[%s262 + $0xf8] sm:$0xff] %vm1868, %v4173
      %v4206 = vld [vmem:[%s243] sm:$0xff]
      %v4207 = vld [vmem:[%s243 + $0x8] sm:$0xff]
      %v4208 = vld [vmem:[%s243 + $0x10] sm:$0xff]
      %v4209 = vld [vmem:[%s243 + $0x18] sm:$0xff]
      %v4210 = vld [vmem:[%s243 + $0x20] sm:$0xff]
      %v4211 = vld [vmem:[%s243 + $0x28] sm:$0xff]
      %v4212 = vld [vmem:[%s243 + $0x30] sm:$0xff]
      %v4213 = vld [vmem:[%s243 + $0x38] sm:$0xff]
      %v4214 = vld [vmem:[%s243 + $0x40] sm:$0xff]
      %v4215 = vld [vmem:[%s243 + $0x48] sm:$0xff]
      %v4216 = vld [vmem:[%s243 + $0x50] sm:$0xff]
      %v4217 = vld [vmem:[%s243 + $0x58] sm:$0xff]
      %v4218 = vld [vmem:[%s243 + $0x60] sm:$0xff]
      %v4219 = vld [vmem:[%s243 + $0x68] sm:$0xff]
      %v4220 = vld [vmem:[%s243 + $0x70] sm:$0xff]
      %v4221 = vld [vmem:[%s243 + $0x78] sm:$0xff]
      %v4222 = vld [vmem:[%s243 + $0x80] sm:$0xff]
      %v4223 = vld [vmem:[%s243 + $0x88] sm:$0xff]
      %v4224 = vld [vmem:[%s243 + $0x90] sm:$0xff]
      %v4225 = vld [vmem:[%s243 + $0x98] sm:$0xff]
      %v4226 = vld [vmem:[%s243 + $0xa0] sm:$0xff]
      %v4227 = vld [vmem:[%s243 + $0xa8] sm:$0xff]
      %v4228 = vld [vmem:[%s243 + $0xb0] sm:$0xff]
      %v4229 = vld [vmem:[%s243 + $0xb8] sm:$0xff]
      %v4230 = vld [vmem:[%s243 + $0xc0] sm:$0xff]
      %v4231 = vld [vmem:[%s243 + $0xc8] sm:$0xff]
      %v4232 = vld [vmem:[%s243 + $0xd0] sm:$0xff]
      %v4233 = vld [vmem:[%s243 + $0xd8] sm:$0xff]
      %v4234 = vld [vmem:[%s243 + $0xe0] sm:$0xff]
      %v4235 = vld [vmem:[%s243 + $0xe8] sm:$0xff]
      %v4236 = vld [vmem:[%s243 + $0xf0] sm:$0xff]
      %v4237 = vld [vmem:[%s243 + $0xf8] sm:$0xff]
      %4238 = vst.msk [vmem:[%s262] sm:$0xff] %vm1933, %v4206
      %4239 = vst.msk [vmem:[%s262 + $0x8] sm:$0xff] %vm1933, %v4207
      %4240 = vst.msk [vmem:[%s262 + $0x10] sm:$0xff] %vm1933, %v4208
      %4241 = vst.msk [vmem:[%s262 + $0x18] sm:$0xff] %vm1933, %v4209
      %4242 = vst.msk [vmem:[%s262 + $0x20] sm:$0xff] %vm1933, %v4210
      %4243 = vst.msk [vmem:[%s262 + $0x28] sm:$0xff] %vm1933, %v4211
      %4244 = vst.msk [vmem:[%s262 + $0x30] sm:$0xff] %vm1933, %v4212
      %4245 = vst.msk [vmem:[%s262 + $0x38] sm:$0xff] %vm1933, %v4213
      %4246 = vst.msk [vmem:[%s262 + $0x40] sm:$0xff] %vm1933, %v4214
      %4247 = vst.msk [vmem:[%s262 + $0x48] sm:$0xff] %vm1933, %v4215
      %4248 = vst.msk [vmem:[%s262 + $0x50] sm:$0xff] %vm1933, %v4216
      %4249 = vst.msk [vmem:[%s262 + $0x58] sm:$0xff] %vm1933, %v4217
      %4250 = vst.msk [vmem:[%s262 + $0x60] sm:$0xff] %vm1933, %v4218
      %4251 = vst.msk [vmem:[%s262 + $0x68] sm:$0xff] %vm1933, %v4219
      %4252 = vst.msk [vmem:[%s262 + $0x70] sm:$0xff] %vm1933, %v4220
      %4253 = vst.msk [vmem:[%s262 + $0x78] sm:$0xff] %vm1933, %v4221
      %4254 = vst.msk [vmem:[%s262 + $0x80] sm:$0xff] %vm1933, %v4222
      %4255 = vst.msk [vmem:[%s262 + $0x88] sm:$0xff] %vm1933, %v4223
      %4256 = vst.msk [vmem:[%s262 + $0x90] sm:$0xff] %vm1933, %v4224
      %4257 = vst.msk [vmem:[%s262 + $0x98] sm:$0xff] %vm1933, %v4225
      %4258 = vst.msk [vmem:[%s262 + $0xa0] sm:$0xff] %vm1933, %v4226
      %4259 = vst.msk [vmem:[%s262 + $0xa8] sm:$0xff] %vm1933, %v4227
      %4260 = vst.msk [vmem:[%s262 + $0xb0] sm:$0xff] %vm1933, %v4228
      %4261 = vst.msk [vmem:[%s262 + $0xb8] sm:$0xff] %vm1933, %v4229
      %4262 = vst.msk [vmem:[%s262 + $0xc0] sm:$0xff] %vm1933, %v4230
      %4263 = vst.msk [vmem:[%s262 + $0xc8] sm:$0xff] %vm1933, %v4231
      %4264 = vst.msk [vmem:[%s262 + $0xd0] sm:$0xff] %vm1933, %v4232
      %4265 = vst.msk [vmem:[%s262 + $0xd8] sm:$0xff] %vm1933, %v4233
      %4266 = vst.msk [vmem:[%s262 + $0xe0] sm:$0xff] %vm1933, %v4234
      %4267 = vst.msk [vmem:[%s262 + $0xe8] sm:$0xff] %vm1933, %v4235
      %4268 = vst.msk [vmem:[%s262 + $0xf0] sm:$0xff] %vm1933, %v4236
      %4269 = vst.msk [vmem:[%s262 + $0xf8] sm:$0xff] %vm1933, %v4237
      %s4270 = smul.u32 32, %s16
      %p4271 = scmp.lt.s32.totalorder %s4270, 63
      %s4272 = scalar_select %p4271, %s4270, 63
      %s4273 = smul.addr %s4272, 2
      %s4274 = smul.addr %s4273, 8
      %s4275 = scalar_lea.vmem %s3, %s4274
      %s4276 = smul.u32 32, %s16
      %p4277 = scmp.lt.s32.totalorder %s4276, 63
      %s4278 = scalar_select %p4277, %s4276, 63
      %s4279 = smul.addr %s4278, 8
      %s4280 = scalar_lea.vmem %s4, %s4279
      // Predicated region
      $region33: #{rope_lora_forward.1} parent=31 // pred_check
        %p4281 = pneg %p112
      $region34: #{rope_lora_forward.1} parent=31 // pred_check_branch
        %4283 = sbr.rel (%p4281) target = $region36
      $region35: #{rope_lora_forward.1} parent=31 // pred_region
        %s4284 = smul.u32 32, %s16
      $region36: #{rope_lora_forward.1} parent=31 // pred_fallthru
        _
      // Predicated region
      $region37: #{rope_lora_forward.1} parent=31 // pred_check
        %p4285 = pneg %p138
      $region38: #{rope_lora_forward.1} parent=31 // pred_check_branch
        %4287 = sbr.rel (%p4285) target = $region40
      $region39: #{rope_lora_forward.1} parent=31 // pred_region
        %s4288 = smul.u32 32, %s16
      $region40: #{rope_lora_forward.1} parent=31 // pred_fallthru
        _
    $region32: #{rope_lora_forward.1} parent=5 // pred_fallthru
      _
    %p4289 = scmp.le.s32.totalorder 2, %s11
    // Predicated region
    $region41: #{rope_lora_forward.1} parent=5 // pred_check
      %p4290 = pneg %p4289
    $region42: #{rope_lora_forward.1} parent=5 // pred_check_branch
      %4292 = sbr.rel (%p4290) target = $region44
    $region43: #{rope_lora_forward.1} parent=5 // pred_region
      %s4293 = ssub.s32 %s11, 2
      // Predicated region
      $region45: #{rope_lora_forward.1} parent=43 // pred_check
        %p4294 = pneg %p118
      $region46: #{rope_lora_forward.1} parent=43 // pred_check_branch
        %4296 = sbr.rel (%p4294) target = $region48
      $region47: #{rope_lora_forward.1} parent=43 // pred_region
        %s4297 = smul.u32 32, %s17
        %p4298 = scmp.lt.s32.totalorder %s4297, 63
        %s4299 = scalar_select %p4298, %s4297, 63
        %s4300 = smul.addr %s4299, 2
        %s4301 = smul.addr %s4300, 8
        %s4302 = scalar_lea.vmem %s3, %s4301
      $region48: #{rope_lora_forward.1} parent=43 // pred_fallthru
        _
      // Predicated region
      $region49: #{rope_lora_forward.1} parent=43 // pred_check
        %p4303 = pneg %p144
      $region50: #{rope_lora_forward.1} parent=43 // pred_check_branch
        %4305 = sbr.rel (%p4303) target = $region52
      $region51: #{rope_lora_forward.1} parent=43 // pred_region
        %s4306 = smul.u32 32, %s17
        %p4307 = scmp.lt.s32.totalorder %s4306, 63
        %s4308 = scalar_select %p4307, %s4306, 63
        %s4309 = smul.addr %s4308, 8
        %s4310 = scalar_lea.vmem %s4, %s4309
      $region52: #{rope_lora_forward.1} parent=43 // pred_fallthru
        _
    $region44: #{rope_lora_forward.1} parent=5 // pred_fallthru
      _
  $region6: #{rope_lora_forward.1} parent=0 // loop_footer
    %s15 = sadd.s32 1, %s11
  $region7: #{rope_lora_forward.1} parent=0 // loop_footer_branch
    %10 = sbr.rel target = $region3
  $region8: #{rope_lora_forward.1} parent=0 // loop_exit
    _

</llo_original>
